<compile_context>
chip_gen: v5e
topology: v5e:2x2
jax: 0.10.0
libtpu: 0.0.40
codegen_flags: <defaults>
</compile_context>

<pallas_src>
import functools

import jax
import jax.numpy as jnp
from jax import lax
from jax.experimental import pallas as pl
from jax.experimental.pallas import tpu as pltpu


# ----------------------------- Pallas kernel ------------------------------ #

def _wn_kernel(x_ref, y_ref, w_start_ref, w_v_ref, w_conv_ref, w_o_ref,
               w_o_last_ref, w_end_ref, out_ref, *,
               dilations, radix, dil_chs, res_chs, skp_chs,
               t_tile, halo, seq_len):
    f32 = jnp.float32
    bf16 = jnp.bfloat16
    win = t_tile + 2 * halo
    n_layers = len(dilations)

    tt = pl.program_id(1)
    w0 = pl.multiple_of(tt * t_tile, t_tile)        # window start (padded rows)
    x_win = x_ref[0, pl.ds(w0, win), :]             # (win, in)  bf16
    y_win = y_ref[0, pl.ds(w0, win), :]             # (win, aux) bf16

    # validity of each window row w.r.t. the true sequence [0, seq_len);
    # built once per tile (hoisted out of the tap shifts).
    row = lax.broadcasted_iota(jnp.int32, (win, 1), 0)
    g = row + (tt * t_tile - halo)
    valid = jnp.logical_and(g >= 0, g < seq_len).astype(f32)   # (win, 1)

    # start 1x1 conv; the residual stream stays f32 across layers
    h = jnp.dot(x_win, w_start_ref[...], preferred_element_type=f32)

    cum_skip = jnp.zeros((t_tile, skp_chs), f32)

    for i, d in enumerate(dilations):
        pad = d * (radix - 1) // 2

        # per-layer conditioning chunk (1x1 conv of aux), computed on the fly
        wx = jnp.dot(y_win, w_v_ref[i], preferred_element_type=f32)  # (win, 2*dil)

        # dilated conv: radix per-tap matmuls accumulated in f32.  Roll wrap
        # and stale window edges only pollute halo rows, never the central
        # t_tile rows (halo >= sum of per-layer pads).
        # TODO(synk): on v6e/v7x cast h to bf16 *before* the roll once packed
        # sublane rotation is verified in the bundle dump (halves roll vregs);
        # keep f32 shifts on v5e.
        h_bf = h.astype(bf16)
        for k in range(radix):
            off = k * d - pad
            if off == 0:
                tap = h_bf
            else:
                tap = pltpu.roll(h, (-off) % win, axis=0).astype(bf16)
            wx = wx + jnp.dot(tap, w_conv_ref[i, k],
                              preferred_element_type=f32)

        # gated activation in f32: tanh + (exp, approx reciprocal) -> EUP slot.
        # the zw/zf split is 128-lane aligned when dil_chs % 128 == 0.
        zw = wx[:, :dil_chs]
        zf = wx[:, dil_chs:]
        gate = jnp.tanh(zw) * pl.reciprocal(1.0 + jnp.exp(-zf), approx=True)
        # zero rows outside [0, seq_len): reproduces the per-layer zero
        # padding of the reference conv at the true sequence boundaries.
        z = (gate * valid).astype(bf16)

        if i < n_layers - 1:
            zo = jnp.dot(z, w_o_ref[i], preferred_element_type=f32)  # (win, res+skip)
            h = h + zo[:, :res_chs]                                  # residual
            cum_skip = cum_skip + zo[halo:halo + t_tile, res_chs:]   # skip (center)
        else:
            # last layer only produces skip channels; only the central rows
            # feed the output, so slice before the matmul.
            z_c = z[halo:halo + t_tile, :]
            cum_skip = cum_skip + jnp.dot(z_c, w_o_last_ref[...],
                                          preferred_element_type=f32)

    # end 1x1 conv, emitted lane-dense in NCT layout: (2*in, skip) . (t, skip)^T
    # TODO(synk): check the lowering does not add an XLU transpose of cum_skip
    # for this NT contraction (once per tile, small either way).
    out_ref[0] = lax.dot_general(
        w_end_ref[...], cum_skip.astype(bf16),
        dimension_numbers=(((1,), (1,)), ((), ())),
        preferred_element_type=f32)                                  # (2*in, t_tile)


# ------------------------------ wrapper ----------------------------------- #

def wn_forward(x_nct, y_nct, kparams, *, dilations, radix, dil_chs, res_chs,
               skp_chs, t_tile=128):
    """x_nct: (B, in_chs, T), y_nct: (B, aux_chs, T) -> two (B, in_chs, T)."""
    w_start, w_v, w_conv, w_o, w_o_last, w_end = kparams
    B, in_chs, T = x_nct.shape
    aux_chs = y_nct.shape[1]
    depth = len(dilations)

    # TODO(synk): pad/mask a ragged final tile for T not a multiple of t_tile.
    assert T % t_tile == 0, "wrapper requires T % t_tile == 0"
    n_t = T // t_tile

    # receptive-field halo per side, rounded up to a sublane multiple
    halo = (radix - 1) // 2 * sum(dilations)
    halo = ((halo + 7) // 8) * 8
    win = t_tile + 2 * halo

    # time-major, channels-last, bf16 inputs, zero padded by `halo` per side
    pad_t = ((0, 0), (halo, halo), (0, 0))
    x_pad = jnp.pad(jnp.transpose(x_nct, (0, 2, 1)).astype(jnp.bfloat16), pad_t)
    y_pad = jnp.pad(jnp.transpose(y_nct, (0, 2, 1)).astype(jnp.bfloat16), pad_t)
    t_padded = T + 2 * halo

    kernel = functools.partial(
        _wn_kernel, dilations=tuple(dilations), radix=radix, dil_chs=dil_chs,
        res_chs=res_chs, skp_chs=skp_chs, t_tile=t_tile, halo=halo, seq_len=T)

    # advisory cost estimate for the whole call
    steps = B * n_t
    flops = steps * (
        2 * win * in_chs * res_chs
        + depth * 2 * win * aux_chs * (2 * dil_chs)
        + depth * radix * 2 * win * res_chs * (2 * dil_chs)
        + (depth - 1) * 2 * win * dil_chs * (res_chs + skp_chs)
        + 2 * t_tile * dil_chs * skp_chs
        + 2 * t_tile * skp_chs * (2 * in_chs))
    transcendentals = steps * depth * win * 3 * dil_chs
    weight_bytes = sum(int(w.size) * 2 for w in kparams)
    bytes_accessed = (int(x_pad.size) * 2 + int(y_pad.size) * 2
                      + B * T * 2 * in_chs * 4 + weight_bytes)

    # VMEM budget: double-buffered blocks + weights + activation working set,
    # 2x headroom, capped at 64 MiB so the limit is valid on v7x as well.
    in_block_bytes = t_padded * (in_chs + aux_chs) * 2
    out_block_bytes = 2 * in_chs * t_tile * 4
    act_bytes = (4 * win * (3 * res_chs + 3 * 2 * dil_chs + (res_chs + skp_chs))
                 + 4 * t_tile * skp_chs)
    vmem_budget = 2 * (in_block_bytes + out_block_bytes + weight_bytes) + act_bytes
    vmem_limit = int(min(64 * 2 ** 20, max(32 * 2 ** 20, 2 * vmem_budget)))

    out = pl.pallas_call(
        kernel,
        out_shape=jax.ShapeDtypeStruct((B, 2 * in_chs, T), jnp.float32),
        grid=(B, n_t),
        in_specs=[
            pl.BlockSpec((1, t_padded, in_chs), lambda b, t: (b, 0, 0)),
            pl.BlockSpec((1, t_padded, aux_chs), lambda b, t: (b, 0, 0)),
            pl.BlockSpec(w_start.shape, lambda b, t: (0, 0)),
            pl.BlockSpec(w_v.shape, lambda b, t: (0, 0, 0)),
            pl.BlockSpec(w_conv.shape, lambda b, t: (0, 0, 0, 0)),
            pl.BlockSpec(w_o.shape, lambda b, t: (0, 0, 0)),
            pl.BlockSpec(w_o_last.shape, lambda b, t: (0, 0)),
            pl.BlockSpec(w_end.shape, lambda b, t: (0, 0)),
        ],
        out_specs=pl.BlockSpec((1, 2 * in_chs, t_tile), lambda b, t: (b, 0, t)),
        compiler_params=pltpu.CompilerParams(
            dimension_semantics=("parallel", "parallel"),
            vmem_limit_bytes=vmem_limit),
        cost_estimate=pl.CostEstimate(flops=flops,
                                      transcendentals=transcendentals,
                                      bytes_accessed=bytes_accessed),
    )(x_pad, y_pad, w_start, w_v, w_conv, w_o, w_o_last, w_end)

    # output is already NCT: just split channels
    return out[:, :in_chs, :], out[:, in_chs:, :]


# ------------------------- parameter construction -------------------------- #

def init_conv_params(key, in_chs, aux_chs, dil_chs, res_chs, skp_chs, depth,
                     radix, zero_init):
    """PyTorch-layout conv weights (Cout, Cin, K), deterministic, bias=False."""
    keys = jax.random.split(key, 3 + 2 * depth)
    s = 0.1
    w_start = jax.random.normal(keys[0], (res_chs, in_chs, 1), jnp.float32) * s
    w_v = jax.random.normal(keys[1], (2 * dil_chs * depth, aux_chs, 1),
                            jnp.float32) * s
    w_conv, w_o = [], []
    for i in range(depth):
        w_conv.append(jax.random.normal(
            keys[2 + 2 * i], (2 * dil_chs, res_chs, radix), jnp.float32) * s)
        if i < depth - 1:
            w_o.append(jax.random.normal(
                keys[3 + 2 * i], (res_chs + skp_chs, dil_chs, 1),
                jnp.float32) * s)
        else:  # last layer only produces skip channels
            w_o.append(jax.random.normal(
                keys[3 + 2 * i], (skp_chs, dil_chs, 1), jnp.float32) * s)
    if zero_init:
        w_end = jnp.zeros((2 * in_chs, skp_chs, 1), jnp.float32)
    else:
        w_end = jax.random.normal(keys[2 + 2 * depth],
                                  (2 * in_chs, skp_chs, 1), jnp.float32) * s
    return w_start, w_v, w_conv, w_o, w_end


def to_kernel_params(conv_params, dil_chs, res_chs, depth, radix):
    """Build bf16 matmul-layout weights used by the kernel."""
    w_start_c, w_v_c, w_conv_c, w_o_c, w_end_c = conv_params

    w_start = w_start_c[:, :, 0].T                           # (in, res)
    # per-layer conditioning weights: (depth, aux, 2*dil)
    w_v = jnp.transpose(w_v_c[:, :, 0].reshape(depth, 2 * dil_chs, -1),
                        (0, 2, 1))
    # dilated conv, one (res, 2*dil) matrix per (layer, tap)
    w_conv = jnp.stack([jnp.transpose(w, (2, 1, 0)) for w in w_conv_c])
    # W_o of the first depth-1 layers: (depth-1, dil, res+skip)
    w_o = jnp.stack([w_o_c[i][:, :, 0].T for i in range(depth - 1)])
    w_o_last = w_o_c[-1][:, :, 0].T                          # (dil, skip)
    w_end = w_end_c[:, :, 0]                                 # (2*in, skip)

    cast = lambda a: a.astype(jnp.bfloat16)
    return (cast(w_start), cast(w_v), cast(w_conv), cast(w_o),
            cast(w_o_last), cast(w_end))


# --------------------------- pure-JAX reference ----------------------------- #

def _conv1d(x, w, dilation=1, padding=0):
    return lax.conv_general_dilated(
        x, w, window_strides=(1,), padding=[(padding, padding)],
        rhs_dilation=(dilation,), dimension_numbers=('NCH', 'OIH', 'NCH'),
        precision=lax.Precision.HIGHEST)


def wn_reference(x, y, conv_params, dilations, radix, res_chs, in_chs):
    w_start_c, w_v_c, w_conv_c, w_o_c, w_end_c = conv_params
    h = _conv1d(x, w_start_c)
    yp = _conv1d(y, w_v_c)
    depth = len(dilations)
    chunks = jnp.split(yp, depth, axis=1)
    cum_skip = 0.0
    for i, d in enumerate(dilations):
        pad = d * (radix - 1) // 2
        xy = _conv1d(h, w_conv_c[i], dilation=d, padding=pad) + chunks[i]
        zw, zf = jnp.split(xy, 2, axis=1)
        z = jnp.tanh(zw) * jax.nn.sigmoid(zf)
        zo = _conv1d(z, w_o_c[i])
        if i < depth - 1:
            h = h + zo[:, :res_chs]
            skip = zo[:, res_chs:]
        else:
            skip = zo
        cum_skip = cum_skip + skip
    out = _conv1d(cum_skip, w_end_c)
    return out[:, :in_chs], out[:, in_chs:]


# ---------------------------------- main ------------------------------------ #

if __name__ == "__main__":
    # Small but layout-friendly shapes: channel widths are multiples of 128 so
    # the gate / residual / skip lane splits are 128-aligned; T = 2 tiles of
    # 128 exercises the halo + boundary-mask path.
    B, T = 2, 256
    in_chs, aux_chs = 4, 6
    dil_chs = res_chs = skp_chs = 128
    depth, radix = 4, 3
    dilations = [2 ** i for i in range(depth)]

    key = jax.random.PRNGKey(0)
    kx, ky, kw = jax.random.split(key, 3)
    x = jax.random.normal(kx, (B, in_chs, T), jnp.float32)
    y = jax.random.normal(ky, (B, aux_chs, T), jnp.float32)

    # NOTE: module default zero_init=True zeroes the `end` conv (output would
    # be trivially zero); use zero_init=False for a meaningful numerical check.
    conv_params = init_conv_params(kw, in_chs, aux_chs, dil_chs, res_chs,
                                   skp_chs, depth, radix, zero_init=False)
    # round weights to bf16 once so kernel and f32 reference share identical
    # weights; remaining error is the bf16 activation path only.
    conv_params = jax.tree_util.tree_map(
        lambda a: a.astype(jnp.bfloat16).astype(jnp.float32), conv_params)

    kparams = to_kernel_params(conv_params, dil_chs, res_chs, depth, radix)

    z1, z2 = wn_forward(x, y, kparams, dilations=dilations, radix=radix,
                        dil_chs=dil_chs, res_chs=res_chs, skp_chs=skp_chs,
                        t_tile=128)
    jax.block_until_ready((z1, z2))

    r1, r2 = wn_reference(x, y, conv_params, dilations, radix, res_chs, in_chs)
    assert z1.shape == (B, in_chs, T) and z2.shape == (B, in_chs, T)
    # bf16 matmul operands with f32 accumulation at 128-channel width / depth 4
    assert jnp.allclose(z1, r1, rtol=5e-2, atol=5e-2), \
        float(jnp.max(jnp.abs(z1 - r1)))
    assert jnp.allclose(z2, r2, rtol=5e-2, atol=5e-2), \
        float(jnp.max(jnp.abs(z2 - r2)))

    print("KERNEL_OK")
</pallas_src>

<mosaic_0001>
module attributes {stable_mosaic.version = 11 : i64} {
  func.func @_wn_kernel(%arg0: i32, %arg1: i32, %arg2: memref<1x288x4xbf16, #tpu.memory_space<vmem>>, %arg3: memref<1x288x6xbf16, #tpu.memory_space<vmem>>, %arg4: memref<4x128xbf16, #tpu.memory_space<vmem>>, %arg5: memref<4x6x256xbf16, #tpu.memory_space<vmem>>, %arg6: memref<4x3x128x256xbf16, #tpu.memory_space<vmem>>, %arg7: memref<3x128x256xbf16, #tpu.memory_space<vmem>>, %arg8: memref<128x128xbf16, #tpu.memory_space<vmem>>, %arg9: memref<8x128xbf16, #tpu.memory_space<vmem>>, %arg10: memref<1x8x128xf32, #tpu.memory_space<vmem>>) attributes {dimension_semantics = [#tpu.dimension_semantics<parallel>, #tpu.dimension_semantics<parallel>], iteration_bounds = array<i64: 2, 2>, scalar_prefetch = 0 : i64, scratch_operands = 0 : i64, tpu.core_type = #tpu.core_type<tc>, window_params = [{transform_indices = @transform_0, window_bounds = array<i64: 1, 288, 4>}, {transform_indices = @transform_1, window_bounds = array<i64: 1, 288, 6>}, {pipeline_mode = #tpu.pipeline_mode<synchronous>, transform_indices = @transform_2, window_bounds = array<i64: 4, 128>}, {pipeline_mode = #tpu.pipeline_mode<synchronous>, transform_indices = @transform_3, window_bounds = array<i64: 4, 6, 256>}, {pipeline_mode = #tpu.pipeline_mode<synchronous>, transform_indices = @transform_4, window_bounds = array<i64: 4, 3, 128, 256>}, {pipeline_mode = #tpu.pipeline_mode<synchronous>, transform_indices = @transform_5, window_bounds = array<i64: 3, 128, 256>}, {pipeline_mode = #tpu.pipeline_mode<synchronous>, transform_indices = @transform_6, window_bounds = array<i64: 128, 128>}, {pipeline_mode = #tpu.pipeline_mode<synchronous>, transform_indices = @transform_7, window_bounds = array<i64: 8, 128>}, {transform_indices = @transform_8, window_bounds = array<i64: 1, 8, 128>}]} {
    %c128_i32 = arith.constant 128 : i32
    %0 = arith.muli %arg1, %c128_i32 : i32
    %1 = tpu.assume_multiple %0, 128 : i32
    %c0 = arith.constant 0 : index
    %2 = arith.index_cast %1 : i32 to index
    %c0_0 = arith.constant 0 : index
    %3 = vector.load %arg2[%c0, %2, %c0_0] : memref<1x288x4xbf16, #tpu.memory_space<vmem>>, vector<1x160x4xbf16>
    %4 = vector.shape_cast %3 : vector<1x160x4xbf16> to vector<160x4xbf16>
    %c0_1 = arith.constant 0 : index
    %5 = arith.index_cast %1 : i32 to index
    %c0_2 = arith.constant 0 : index
    %6 = vector.load %arg3[%c0_1, %5, %c0_2] : memref<1x288x6xbf16, #tpu.memory_space<vmem>>, vector<1x160x6xbf16>
    %7 = vector.shape_cast %6 : vector<1x160x6xbf16> to vector<160x6xbf16>
    %8 = tpu.iota {dimensions = array<i32: 0>} : vector<160x1xi32>
    %c128_i32_3 = arith.constant 128 : i32
    %9 = arith.muli %arg1, %c128_i32_3 : i32
    %c16_i32 = arith.constant 16 : i32
    %10 = arith.subi %9, %c16_i32 : i32
    %11 = vector.broadcast %10 : i32 to vector<160x1xi32>
    %12 = arith.addi %8, %11 : vector<160x1xi32>
    %c0_i32 = arith.constant 0 : i32
    %13 = vector.broadcast %c0_i32 : i32 to vector<160x1xi32>
    %14 = arith.cmpi sge, %12, %13 : vector<160x1xi32>
    %c256_i32 = arith.constant 256 : i32
    %15 = vector.broadcast %c256_i32 : i32 to vector<160x1xi32>
    %16 = arith.cmpi slt, %12, %15 : vector<160x1xi32>
    %17 = arith.andi %14, %16 : vector<160x1xi1>
    %18 = arith.extui %17 : vector<160x1xi1> to vector<160x1xi32>
    %19 = arith.sitofp %18 : vector<160x1xi32> to vector<160x1xf32>
    %c0_4 = arith.constant 0 : index
    %c0_5 = arith.constant 0 : index
    %20 = vector.load %arg4[%c0_4, %c0_5] : memref<4x128xbf16, #tpu.memory_space<vmem>>, vector<4x128xbf16>
    %cst = arith.constant dense<0.000000e+00> : vector<160x128xf32>
    %21 = tpu.matmul %4, %20, %cst {dimension_numbers = #tpu.dot_dimension_numbers<[1], [0], [0], [1], [0, 0, 1, 1], [], []>} : vector<160x4xbf16>, vector<4x128xbf16>, vector<160x128xf32> -> vector<160x128xf32>
    %cst_6 = arith.constant 0.000000e+00 : f32
    %22 = vector.broadcast %cst_6 : f32 to vector<128x128xf32>
    %c0_7 = arith.constant 0 : index
    %c0_8 = arith.constant 0 : index
    %c0_9 = arith.constant 0 : index
    %23 = vector.load %arg5[%c0_7, %c0_8, %c0_9] : memref<4x6x256xbf16, #tpu.memory_space<vmem>>, vector<1x6x256xbf16>
    %24 = vector.shape_cast %23 : vector<1x6x256xbf16> to vector<6x256xbf16>
    %cst_10 = arith.constant dense<0.000000e+00> : vector<160x256xf32>
    %25 = tpu.matmul %7, %24, %cst_10 {dimension_numbers = #tpu.dot_dimension_numbers<[1], [0], [0], [1], [0, 0, 1, 1], [], []>} : vector<160x6xbf16>, vector<6x256xbf16>, vector<160x256xf32> -> vector<160x256xf32>
    %26 = arith.truncf %21 : vector<160x128xf32> to vector<160x128xbf16>
    %c1_i32 = arith.constant 1 : i32
    %27 = tpu.dynamic_rotate %21 by %c1_i32 dim 0 : vector<160x128xf32>, i32 -> vector<160x128xf32>
    %28 = arith.truncf %27 : vector<160x128xf32> to vector<160x128xbf16>
    %c0_11 = arith.constant 0 : index
    %c0_12 = arith.constant 0 : index
    %c0_13 = arith.constant 0 : index
    %c0_14 = arith.constant 0 : index
    %29 = vector.load %arg6[%c0_11, %c0_12, %c0_13, %c0_14] : memref<4x3x128x256xbf16, #tpu.memory_space<vmem>>, vector<1x1x128x256xbf16>
    %30 = vector.shape_cast %29 : vector<1x1x128x256xbf16> to vector<128x256xbf16>
    %cst_15 = arith.constant dense<0.000000e+00> : vector<160x256xf32>
    %31 = tpu.matmul %28, %30, %cst_15 {dimension_numbers = #tpu.dot_dimension_numbers<[1], [0], [0], [1], [0, 0, 1, 1], [], []>} : vector<160x128xbf16>, vector<128x256xbf16>, vector<160x256xf32> -> vector<160x256xf32>
    %32 = arith.addf %25, %31 : vector<160x256xf32>
    %c0_16 = arith.constant 0 : index
    %c1 = arith.constant 1 : index
    %c0_17 = arith.constant 0 : index
    %c0_18 = arith.constant 0 : index
    %33 = vector.load %arg6[%c0_16, %c1, %c0_17, %c0_18] : memref<4x3x128x256xbf16, #tpu.memory_space<vmem>>, vector<1x1x128x256xbf16>
    %34 = vector.shape_cast %33 : vector<1x1x128x256xbf16> to vector<128x256xbf16>
    %cst_19 = arith.constant dense<0.000000e+00> : vector<160x256xf32>
    %35 = tpu.matmul %26, %34, %cst_19 {dimension_numbers = #tpu.dot_dimension_numbers<[1], [0], [0], [1], [0, 0, 1, 1], [], []>} : vector<160x128xbf16>, vector<128x256xbf16>, vector<160x256xf32> -> vector<160x256xf32>
    %36 = arith.addf %32, %35 : vector<160x256xf32>
    %c159_i32 = arith.constant 159 : i32
    %37 = tpu.dynamic_rotate %21 by %c159_i32 dim 0 : vector<160x128xf32>, i32 -> vector<160x128xf32>
    %38 = arith.truncf %37 : vector<160x128xf32> to vector<160x128xbf16>
    %c0_20 = arith.constant 0 : index
    %c2 = arith.constant 2 : index
    %c0_21 = arith.constant 0 : index
    %c0_22 = arith.constant 0 : index
    %39 = vector.load %arg6[%c0_20, %c2, %c0_21, %c0_22] : memref<4x3x128x256xbf16, #tpu.memory_space<vmem>>, vector<1x1x128x256xbf16>
    %40 = vector.shape_cast %39 : vector<1x1x128x256xbf16> to vector<128x256xbf16>
    %cst_23 = arith.constant dense<0.000000e+00> : vector<160x256xf32>
    %41 = tpu.matmul %38, %40, %cst_23 {dimension_numbers = #tpu.dot_dimension_numbers<[1], [0], [0], [1], [0, 0, 1, 1], [], []>} : vector<160x128xbf16>, vector<128x256xbf16>, vector<160x256xf32> -> vector<160x256xf32>
    %42 = arith.addf %36, %41 : vector<160x256xf32>
    %43 = vector.extract_strided_slice %42 {offsets = [0, 0], sizes = [160, 128], strides = [1, 1]} : vector<160x256xf32> to vector<160x128xf32>
    %44 = vector.extract_strided_slice %42 {offsets = [0, 128], sizes = [160, 128], strides = [1, 1]} : vector<160x256xf32> to vector<160x128xf32>
    %45 = math.tanh %43 : vector<160x128xf32>
    %cst_24 = arith.constant 0.000000e+00 : f32
    %46 = vector.broadcast %cst_24 : f32 to vector<160x128xf32>
    %47 = arith.subf %46, %44 : vector<160x128xf32>
    %48 = math.exp %47 : vector<160x128xf32>
    %cst_25 = arith.constant 1.000000e+00 : f32
    %49 = vector.broadcast %cst_25 : f32 to vector<160x128xf32>
    %50 = arith.addf %49, %48 : vector<160x128xf32>
    %51 = tpu.reciprocal %50 {approx = true} : vector<160x128xf32> -> vector<160x128xf32>
    %52 = arith.mulf %45, %51 : vector<160x128xf32>
    %53 = vector.broadcast %19 : vector<160x1xf32> to vector<160x128xf32>
    %54 = arith.mulf %52, %53 : vector<160x128xf32>
    %55 = arith.truncf %54 : vector<160x128xf32> to vector<160x128xbf16>
    %c0_26 = arith.constant 0 : index
    %c0_27 = arith.constant 0 : index
    %c0_28 = arith.constant 0 : index
    %56 = vector.load %arg7[%c0_26, %c0_27, %c0_28] : memref<3x128x256xbf16, #tpu.memory_space<vmem>>, vector<1x128x256xbf16>
    %57 = vector.shape_cast %56 : vector<1x128x256xbf16> to vector<128x256xbf16>
    %cst_29 = arith.constant dense<0.000000e+00> : vector<160x256xf32>
    %58 = tpu.matmul %55, %57, %cst_29 {dimension_numbers = #tpu.dot_dimension_numbers<[1], [0], [0], [1], [0, 0, 1, 1], [], []>} : vector<160x128xbf16>, vector<128x256xbf16>, vector<160x256xf32> -> vector<160x256xf32>
    %59 = vector.extract_strided_slice %58 {offsets = [0, 0], sizes = [160, 128], strides = [1, 1]} : vector<160x256xf32> to vector<160x128xf32>
    %60 = arith.addf %21, %59 : vector<160x128xf32>
    %61 = vector.extract_strided_slice %58 {offsets = [16, 128], sizes = [128, 128], strides = [1, 1]} : vector<160x256xf32> to vector<128x128xf32>
    %62 = arith.addf %22, %61 : vector<128x128xf32>
    %c1_30 = arith.constant 1 : index
    %c0_31 = arith.constant 0 : index
    %c0_32 = arith.constant 0 : index
    %63 = vector.load %arg5[%c1_30, %c0_31, %c0_32] : memref<4x6x256xbf16, #tpu.memory_space<vmem>>, vector<1x6x256xbf16>
    %64 = vector.shape_cast %63 : vector<1x6x256xbf16> to vector<6x256xbf16>
    %cst_33 = arith.constant dense<0.000000e+00> : vector<160x256xf32>
    %65 = tpu.matmul %7, %64, %cst_33 {dimension_numbers = #tpu.dot_dimension_numbers<[1], [0], [0], [1], [0, 0, 1, 1], [], []>} : vector<160x6xbf16>, vector<6x256xbf16>, vector<160x256xf32> -> vector<160x256xf32>
    %66 = arith.truncf %60 : vector<160x128xf32> to vector<160x128xbf16>
    %c2_i32 = arith.constant 2 : i32
    %67 = tpu.dynamic_rotate %60 by %c2_i32 dim 0 : vector<160x128xf32>, i32 -> vector<160x128xf32>
    %68 = arith.truncf %67 : vector<160x128xf32> to vector<160x128xbf16>
    %c1_34 = arith.constant 1 : index
    %c0_35 = arith.constant 0 : index
    %c0_36 = arith.constant 0 : index
    %c0_37 = arith.constant 0 : index
    %69 = vector.load %arg6[%c1_34, %c0_35, %c0_36, %c0_37] : memref<4x3x128x256xbf16, #tpu.memory_space<vmem>>, vector<1x1x128x256xbf16>
    %70 = vector.shape_cast %69 : vector<1x1x128x256xbf16> to vector<128x256xbf16>
    %cst_38 = arith.constant dense<0.000000e+00> : vector<160x256xf32>
    %71 = tpu.matmul %68, %70, %cst_38 {dimension_numbers = #tpu.dot_dimension_numbers<[1], [0], [0], [1], [0, 0, 1, 1], [], []>} : vector<160x128xbf16>, vector<128x256xbf16>, vector<160x256xf32> -> vector<160x256xf32>
    %72 = arith.addf %65, %71 : vector<160x256xf32>
    %c1_39 = arith.constant 1 : index
    %c1_40 = arith.constant 1 : index
    %c0_41 = arith.constant 0 : index
    %c0_42 = arith.constant 0 : index
    %73 = vector.load %arg6[%c1_39, %c1_40, %c0_41, %c0_42] : memref<4x3x128x256xbf16, #tpu.memory_space<vmem>>, vector<1x1x128x256xbf16>
    %74 = vector.shape_cast %73 : vector<1x1x128x256xbf16> to vector<128x256xbf16>
    %cst_43 = arith.constant dense<0.000000e+00> : vector<160x256xf32>
    %75 = tpu.matmul %66, %74, %cst_43 {dimension_numbers = #tpu.dot_dimension_numbers<[1], [0], [0], [1], [0, 0, 1, 1], [], []>} : vector<160x128xbf16>, vector<128x256xbf16>, vector<160x256xf32> -> vector<160x256xf32>
    %76 = arith.addf %72, %75 : vector<160x256xf32>
    %c158_i32 = arith.constant 158 : i32
    %77 = tpu.dynamic_rotate %60 by %c158_i32 dim 0 : vector<160x128xf32>, i32 -> vector<160x128xf32>
    %78 = arith.truncf %77 : vector<160x128xf32> to vector<160x128xbf16>
    %c1_44 = arith.constant 1 : index
    %c2_45 = arith.constant 2 : index
    %c0_46 = arith.constant 0 : index
    %c0_47 = arith.constant 0 : index
    %79 = vector.load %arg6[%c1_44, %c2_45, %c0_46, %c0_47] : memref<4x3x128x256xbf16, #tpu.memory_space<vmem>>, vector<1x1x128x256xbf16>
    %80 = vector.shape_cast %79 : vector<1x1x128x256xbf16> to vector<128x256xbf16>
    %cst_48 = arith.constant dense<0.000000e+00> : vector<160x256xf32>
    %81 = tpu.matmul %78, %80, %cst_48 {dimension_numbers = #tpu.dot_dimension_numbers<[1], [0], [0], [1], [0, 0, 1, 1], [], []>} : vector<160x128xbf16>, vector<128x256xbf16>, vector<160x256xf32> -> vector<160x256xf32>
    %82 = arith.addf %76, %81 : vector<160x256xf32>
    %83 = vector.extract_strided_slice %82 {offsets = [0, 0], sizes = [160, 128], strides = [1, 1]} : vector<160x256xf32> to vector<160x128xf32>
    %84 = vector.extract_strided_slice %82 {offsets = [0, 128], sizes = [160, 128], strides = [1, 1]} : vector<160x256xf32> to vector<160x128xf32>
    %85 = math.tanh %83 : vector<160x128xf32>
    %cst_49 = arith.constant 0.000000e+00 : f32
    %86 = vector.broadcast %cst_49 : f32 to vector<160x128xf32>
    %87 = arith.subf %86, %84 : vector<160x128xf32>
    %88 = math.exp %87 : vector<160x128xf32>
    %cst_50 = arith.constant 1.000000e+00 : f32
    %89 = vector.broadcast %cst_50 : f32 to vector<160x128xf32>
    %90 = arith.addf %89, %88 : vector<160x128xf32>
    %91 = tpu.reciprocal %90 {approx = true} : vector<160x128xf32> -> vector<160x128xf32>
    %92 = arith.mulf %85, %91 : vector<160x128xf32>
    %93 = vector.broadcast %19 : vector<160x1xf32> to vector<160x128xf32>
    %94 = arith.mulf %92, %93 : vector<160x128xf32>
    %95 = arith.truncf %94 : vector<160x128xf32> to vector<160x128xbf16>
    %c1_51 = arith.constant 1 : index
    %c0_52 = arith.constant 0 : index
    %c0_53 = arith.constant 0 : index
    %96 = vector.load %arg7[%c1_51, %c0_52, %c0_53] : memref<3x128x256xbf16, #tpu.memory_space<vmem>>, vector<1x128x256xbf16>
    %97 = vector.shape_cast %96 : vector<1x128x256xbf16> to vector<128x256xbf16>
    %cst_54 = arith.constant dense<0.000000e+00> : vector<160x256xf32>
    %98 = tpu.matmul %95, %97, %cst_54 {dimension_numbers = #tpu.dot_dimension_numbers<[1], [0], [0], [1], [0, 0, 1, 1], [], []>} : vector<160x128xbf16>, vector<128x256xbf16>, vector<160x256xf32> -> vector<160x256xf32>
    %99 = vector.extract_strided_slice %98 {offsets = [0, 0], sizes = [160, 128], strides = [1, 1]} : vector<160x256xf32> to vector<160x128xf32>
    %100 = arith.addf %60, %99 : vector<160x128xf32>
    %101 = vector.extract_strided_slice %98 {offsets = [16, 128], sizes = [128, 128], strides = [1, 1]} : vector<160x256xf32> to vector<128x128xf32>
    %102 = arith.addf %62, %101 : vector<128x128xf32>
    %c2_55 = arith.constant 2 : index
    %c0_56 = arith.constant 0 : index
    %c0_57 = arith.constant 0 : index
    %103 = vector.load %arg5[%c2_55, %c0_56, %c0_57] : memref<4x6x256xbf16, #tpu.memory_space<vmem>>, vector<1x6x256xbf16>
    %104 = vector.shape_cast %103 : vector<1x6x256xbf16> to vector<6x256xbf16>
    %cst_58 = arith.constant dense<0.000000e+00> : vector<160x256xf32>
    %105 = tpu.matmul %7, %104, %cst_58 {dimension_numbers = #tpu.dot_dimension_numbers<[1], [0], [0], [1], [0, 0, 1, 1], [], []>} : vector<160x6xbf16>, vector<6x256xbf16>, vector<160x256xf32> -> vector<160x256xf32>
    %106 = arith.truncf %100 : vector<160x128xf32> to vector<160x128xbf16>
    %c4_i32 = arith.constant 4 : i32
    %107 = tpu.dynamic_rotate %100 by %c4_i32 dim 0 : vector<160x128xf32>, i32 -> vector<160x128xf32>
    %108 = arith.truncf %107 : vector<160x128xf32> to vector<160x128xbf16>
    %c2_59 = arith.constant 2 : index
    %c0_60 = arith.constant 0 : index
    %c0_61 = arith.constant 0 : index
    %c0_62 = arith.constant 0 : index
    %109 = vector.load %arg6[%c2_59, %c0_60, %c0_61, %c0_62] : memref<4x3x128x256xbf16, #tpu.memory_space<vmem>>, vector<1x1x128x256xbf16>
    %110 = vector.shape_cast %109 : vector<1x1x128x256xbf16> to vector<128x256xbf16>
    %cst_63 = arith.constant dense<0.000000e+00> : vector<160x256xf32>
    %111 = tpu.matmul %108, %110, %cst_63 {dimension_numbers = #tpu.dot_dimension_numbers<[1], [0], [0], [1], [0, 0, 1, 1], [], []>} : vector<160x128xbf16>, vector<128x256xbf16>, vector<160x256xf32> -> vector<160x256xf32>
    %112 = arith.addf %105, %111 : vector<160x256xf32>
    %c2_64 = arith.constant 2 : index
    %c1_65 = arith.constant 1 : index
    %c0_66 = arith.constant 0 : index
    %c0_67 = arith.constant 0 : index
    %113 = vector.load %arg6[%c2_64, %c1_65, %c0_66, %c0_67] : memref<4x3x128x256xbf16, #tpu.memory_space<vmem>>, vector<1x1x128x256xbf16>
    %114 = vector.shape_cast %113 : vector<1x1x128x256xbf16> to vector<128x256xbf16>
    %cst_68 = arith.constant dense<0.000000e+00> : vector<160x256xf32>
    %115 = tpu.matmul %106, %114, %cst_68 {dimension_numbers = #tpu.dot_dimension_numbers<[1], [0], [0], [1], [0, 0, 1, 1], [], []>} : vector<160x128xbf16>, vector<128x256xbf16>, vector<160x256xf32> -> vector<160x256xf32>
    %116 = arith.addf %112, %115 : vector<160x256xf32>
    %c156_i32 = arith.constant 156 : i32
    %117 = tpu.dynamic_rotate %100 by %c156_i32 dim 0 : vector<160x128xf32>, i32 -> vector<160x128xf32>
    %118 = arith.truncf %117 : vector<160x128xf32> to vector<160x128xbf16>
    %c2_69 = arith.constant 2 : index
    %c2_70 = arith.constant 2 : index
    %c0_71 = arith.constant 0 : index
    %c0_72 = arith.constant 0 : index
    %119 = vector.load %arg6[%c2_69, %c2_70, %c0_71, %c0_72] : memref<4x3x128x256xbf16, #tpu.memory_space<vmem>>, vector<1x1x128x256xbf16>
    %120 = vector.shape_cast %119 : vector<1x1x128x256xbf16> to vector<128x256xbf16>
    %cst_73 = arith.constant dense<0.000000e+00> : vector<160x256xf32>
    %121 = tpu.matmul %118, %120, %cst_73 {dimension_numbers = #tpu.dot_dimension_numbers<[1], [0], [0], [1], [0, 0, 1, 1], [], []>} : vector<160x128xbf16>, vector<128x256xbf16>, vector<160x256xf32> -> vector<160x256xf32>
    %122 = arith.addf %116, %121 : vector<160x256xf32>
    %123 = vector.extract_strided_slice %122 {offsets = [0, 0], sizes = [160, 128], strides = [1, 1]} : vector<160x256xf32> to vector<160x128xf32>
    %124 = vector.extract_strided_slice %122 {offsets = [0, 128], sizes = [160, 128], strides = [1, 1]} : vector<160x256xf32> to vector<160x128xf32>
    %125 = math.tanh %123 : vector<160x128xf32>
    %cst_74 = arith.constant 0.000000e+00 : f32
    %126 = vector.broadcast %cst_74 : f32 to vector<160x128xf32>
    %127 = arith.subf %126, %124 : vector<160x128xf32>
    %128 = math.exp %127 : vector<160x128xf32>
    %cst_75 = arith.constant 1.000000e+00 : f32
    %129 = vector.broadcast %cst_75 : f32 to vector<160x128xf32>
    %130 = arith.addf %129, %128 : vector<160x128xf32>
    %131 = tpu.reciprocal %130 {approx = true} : vector<160x128xf32> -> vector<160x128xf32>
    %132 = arith.mulf %125, %131 : vector<160x128xf32>
    %133 = vector.broadcast %19 : vector<160x1xf32> to vector<160x128xf32>
    %134 = arith.mulf %132, %133 : vector<160x128xf32>
    %135 = arith.truncf %134 : vector<160x128xf32> to vector<160x128xbf16>
    %c2_76 = arith.constant 2 : index
    %c0_77 = arith.constant 0 : index
    %c0_78 = arith.constant 0 : index
    %136 = vector.load %arg7[%c2_76, %c0_77, %c0_78] : memref<3x128x256xbf16, #tpu.memory_space<vmem>>, vector<1x128x256xbf16>
    %137 = vector.shape_cast %136 : vector<1x128x256xbf16> to vector<128x256xbf16>
    %cst_79 = arith.constant dense<0.000000e+00> : vector<160x256xf32>
    %138 = tpu.matmul %135, %137, %cst_79 {dimension_numbers = #tpu.dot_dimension_numbers<[1], [0], [0], [1], [0, 0, 1, 1], [], []>} : vector<160x128xbf16>, vector<128x256xbf16>, vector<160x256xf32> -> vector<160x256xf32>
    %139 = vector.extract_strided_slice %138 {offsets = [0, 0], sizes = [160, 128], strides = [1, 1]} : vector<160x256xf32> to vector<160x128xf32>
    %140 = arith.addf %100, %139 : vector<160x128xf32>
    %141 = vector.extract_strided_slice %138 {offsets = [16, 128], sizes = [128, 128], strides = [1, 1]} : vector<160x256xf32> to vector<128x128xf32>
    %142 = arith.addf %102, %141 : vector<128x128xf32>
    %c3 = arith.constant 3 : index
    %c0_80 = arith.constant 0 : index
    %c0_81 = arith.constant 0 : index
    %143 = vector.load %arg5[%c3, %c0_80, %c0_81] : memref<4x6x256xbf16, #tpu.memory_space<vmem>>, vector<1x6x256xbf16>
    %144 = vector.shape_cast %143 : vector<1x6x256xbf16> to vector<6x256xbf16>
    %cst_82 = arith.constant dense<0.000000e+00> : vector<160x256xf32>
    %145 = tpu.matmul %7, %144, %cst_82 {dimension_numbers = #tpu.dot_dimension_numbers<[1], [0], [0], [1], [0, 0, 1, 1], [], []>} : vector<160x6xbf16>, vector<6x256xbf16>, vector<160x256xf32> -> vector<160x256xf32>
    %146 = arith.truncf %140 : vector<160x128xf32> to vector<160x128xbf16>
    %c8_i32 = arith.constant 8 : i32
    %147 = tpu.dynamic_rotate %140 by %c8_i32 dim 0 : vector<160x128xf32>, i32 -> vector<160x128xf32>
    %148 = arith.truncf %147 : vector<160x128xf32> to vector<160x128xbf16>
    %c3_83 = arith.constant 3 : index
    %c0_84 = arith.constant 0 : index
    %c0_85 = arith.constant 0 : index
    %c0_86 = arith.constant 0 : index
    %149 = vector.load %arg6[%c3_83, %c0_84, %c0_85, %c0_86] : memref<4x3x128x256xbf16, #tpu.memory_space<vmem>>, vector<1x1x128x256xbf16>
    %150 = vector.shape_cast %149 : vector<1x1x128x256xbf16> to vector<128x256xbf16>
    %cst_87 = arith.constant dense<0.000000e+00> : vector<160x256xf32>
    %151 = tpu.matmul %148, %150, %cst_87 {dimension_numbers = #tpu.dot_dimension_numbers<[1], [0], [0], [1], [0, 0, 1, 1], [], []>} : vector<160x128xbf16>, vector<128x256xbf16>, vector<160x256xf32> -> vector<160x256xf32>
    %152 = arith.addf %145, %151 : vector<160x256xf32>
    %c3_88 = arith.constant 3 : index
    %c1_89 = arith.constant 1 : index
    %c0_90 = arith.constant 0 : index
    %c0_91 = arith.constant 0 : index
    %153 = vector.load %arg6[%c3_88, %c1_89, %c0_90, %c0_91] : memref<4x3x128x256xbf16, #tpu.memory_space<vmem>>, vector<1x1x128x256xbf16>
    %154 = vector.shape_cast %153 : vector<1x1x128x256xbf16> to vector<128x256xbf16>
    %cst_92 = arith.constant dense<0.000000e+00> : vector<160x256xf32>
    %155 = tpu.matmul %146, %154, %cst_92 {dimension_numbers = #tpu.dot_dimension_numbers<[1], [0], [0], [1], [0, 0, 1, 1], [], []>} : vector<160x128xbf16>, vector<128x256xbf16>, vector<160x256xf32> -> vector<160x256xf32>
    %156 = arith.addf %152, %155 : vector<160x256xf32>
    %c152_i32 = arith.constant 152 : i32
    %157 = tpu.dynamic_rotate %140 by %c152_i32 dim 0 : vector<160x128xf32>, i32 -> vector<160x128xf32>
    %158 = arith.truncf %157 : vector<160x128xf32> to vector<160x128xbf16>
    %c3_93 = arith.constant 3 : index
    %c2_94 = arith.constant 2 : index
    %c0_95 = arith.constant 0 : index
    %c0_96 = arith.constant 0 : index
    %159 = vector.load %arg6[%c3_93, %c2_94, %c0_95, %c0_96] : memref<4x3x128x256xbf16, #tpu.memory_space<vmem>>, vector<1x1x128x256xbf16>
    %160 = vector.shape_cast %159 : vector<1x1x128x256xbf16> to vector<128x256xbf16>
    %cst_97 = arith.constant dense<0.000000e+00> : vector<160x256xf32>
    %161 = tpu.matmul %158, %160, %cst_97 {dimension_numbers = #tpu.dot_dimension_numbers<[1], [0], [0], [1], [0, 0, 1, 1], [], []>} : vector<160x128xbf16>, vector<128x256xbf16>, vector<160x256xf32> -> vector<160x256xf32>
    %162 = arith.addf %156, %161 : vector<160x256xf32>
    %163 = vector.extract_strided_slice %162 {offsets = [0, 0], sizes = [160, 128], strides = [1, 1]} : vector<160x256xf32> to vector<160x128xf32>
    %164 = vector.extract_strided_slice %162 {offsets = [0, 128], sizes = [160, 128], strides = [1, 1]} : vector<160x256xf32> to vector<160x128xf32>
    %165 = math.tanh %163 : vector<160x128xf32>
    %cst_98 = arith.constant 0.000000e+00 : f32
    %166 = vector.broadcast %cst_98 : f32 to vector<160x128xf32>
    %167 = arith.subf %166, %164 : vector<160x128xf32>
    %168 = math.exp %167 : vector<160x128xf32>
    %cst_99 = arith.constant 1.000000e+00 : f32
    %169 = vector.broadcast %cst_99 : f32 to vector<160x128xf32>
    %170 = arith.addf %169, %168 : vector<160x128xf32>
    %171 = tpu.reciprocal %170 {approx = true} : vector<160x128xf32> -> vector<160x128xf32>
    %172 = arith.mulf %165, %171 : vector<160x128xf32>
    %173 = vector.broadcast %19 : vector<160x1xf32> to vector<160x128xf32>
    %174 = arith.mulf %172, %173 : vector<160x128xf32>
    %175 = arith.truncf %174 : vector<160x128xf32> to vector<160x128xbf16>
    %176 = vector.extract_strided_slice %175 {offsets = [16, 0], sizes = [128, 128], strides = [1, 1]} : vector<160x128xbf16> to vector<128x128xbf16>
    %c0_100 = arith.constant 0 : index
    %c0_101 = arith.constant 0 : index
    %177 = vector.load %arg8[%c0_100, %c0_101] : memref<128x128xbf16, #tpu.memory_space<vmem>>, vector<128x128xbf16>
    %cst_102 = arith.constant dense<0.000000e+00> : vector<128x128xf32>
    %178 = tpu.matmul %176, %177, %cst_102 {dimension_numbers = #tpu.dot_dimension_numbers<[1], [0], [0], [1], [0, 0, 1, 1], [], []>} : vector<128x128xbf16>, vector<128x128xbf16>, vector<128x128xf32> -> vector<128x128xf32>
    %179 = arith.addf %142, %178 : vector<128x128xf32>
    %c0_103 = arith.constant 0 : index
    %c0_104 = arith.constant 0 : index
    %180 = vector.load %arg9[%c0_103, %c0_104] : memref<8x128xbf16, #tpu.memory_space<vmem>>, vector<8x128xbf16>
    %181 = arith.truncf %179 : vector<128x128xf32> to vector<128x128xbf16>
    %cst_105 = arith.constant dense<0.000000e+00> : vector<8x128xf32>
    %182 = tpu.matmul %180, %181, %cst_105 {dimension_numbers = #tpu.dot_dimension_numbers<[1], [1], [0], [0], [0, 0, 1, 0], [], []>} : vector<8x128xbf16>, vector<128x128xbf16>, vector<8x128xf32> -> vector<8x128xf32>
    %c0_106 = arith.constant 0 : index
    %c0_107 = arith.constant 0 : index
    %c0_108 = arith.constant 0 : index
    %183 = vector.load %arg10[%c0_106, %c0_107, %c0_108] : memref<1x8x128xf32, #tpu.memory_space<vmem>>, vector<1x8x128xf32>
    %184 = vector.shape_cast %183 : vector<1x8x128xf32> to vector<8x128xf32>
    %185 = vector.shape_cast %182 : vector<8x128xf32> to vector<1x8x128xf32>
    tpu.vector_store %arg10[%c0_106, %c0_107, %c0_108], %185 {strides = array<i32>} : memref<1x8x128xf32, #tpu.memory_space<vmem>>, vector<1x8x128xf32>,
    return
  }
  func.func @transform_0(%arg0: i32, %arg1: i32) -> (i32, i32, i32) {
    %c0_i32 = arith.constant 0 : i32
    %c0_i32_0 = arith.constant 0 : i32
    %c0_i32_1 = arith.constant 0 : i32
    return %arg0, %c0_i32, %c0_i32_0 : i32, i32, i32
  }
  func.func @transform_1(%arg0: i32, %arg1: i32) -> (i32, i32, i32) {
    %c0_i32 = arith.constant 0 : i32
    %c0_i32_0 = arith.constant 0 : i32
    %c0_i32_1 = arith.constant 0 : i32
    return %arg0, %c0_i32, %c0_i32_0 : i32, i32, i32
  }
  func.func @transform_2(%arg0: i32, %arg1: i32) -> (i32, i32) {
    %c0_i32 = arith.constant 0 : i32
    %c0_i32_0 = arith.constant 0 : i32
    %c0_i32_1 = arith.constant 0 : i32
    return %c0_i32, %c0_i32_0 : i32, i32
  }
  func.func @transform_3(%arg0: i32, %arg1: i32) -> (i32, i32, i32) {
    %c0_i32 = arith.constant 0 : i32
    %c0_i32_0 = arith.constant 0 : i32
    %c0_i32_1 = arith.constant 0 : i32
    %c0_i32_2 = arith.constant 0 : i32
    return %c0_i32, %c0_i32_0, %c0_i32_1 : i32, i32, i32
  }
  func.func @transform_4(%arg0: i32, %arg1: i32) -> (i32, i32, i32, i32) {
    %c0_i32 = arith.constant 0 : i32
    %c0_i32_0 = arith.constant 0 : i32
    %c0_i32_1 = arith.constant 0 : i32
    %c0_i32_2 = arith.constant 0 : i32
    %c0_i32_3 = arith.constant 0 : i32
    return %c0_i32, %c0_i32_0, %c0_i32_1, %c0_i32_2 : i32, i32, i32, i32
  }
  func.func @transform_5(%arg0: i32, %arg1: i32) -> (i32, i32, i32) {
    %c0_i32 = arith.constant 0 : i32
    %c0_i32_0 = arith.constant 0 : i32
    %c0_i32_1 = arith.constant 0 : i32
    %c0_i32_2 = arith.constant 0 : i32
    return %c0_i32, %c0_i32_0, %c0_i32_1 : i32, i32, i32
  }
  func.func @transform_6(%arg0: i32, %arg1: i32) -> (i32, i32) {
    %c0_i32 = arith.constant 0 : i32
    %c0_i32_0 = arith.constant 0 : i32
    %c0_i32_1 = arith.constant 0 : i32
    return %c0_i32, %c0_i32_0 : i32, i32
  }
  func.func @transform_7(%arg0: i32, %arg1: i32) -> (i32, i32) {
    %c0_i32 = arith.constant 0 : i32
    %c0_i32_0 = arith.constant 0 : i32
    %c0_i32_1 = arith.constant 0 : i32
    return %c0_i32, %c0_i32_0 : i32, i32
  }
  func.func @transform_8(%arg0: i32, %arg1: i32) -> (i32, i32, i32) {
    %c0_i32 = arith.constant 0 : i32
    %c0_i32_0 = arith.constant 0 : i32
    return %arg0, %c0_i32, %arg1 : i32, i32, i32
  }
}

</mosaic_0001>

<llo_original>
// kernel: tpu_custom_call.1
$region0: #{tpu_custom_call.1}
  #allocation0 [shape = 'u32[]', space=smem, size = 0x4, offset = 0x4, fixed_abs, tag = 'smem constant byte address 0x4 - core index']
  #allocation1 [shape = 'u32[72,128]{1,0:T(1,128)}', space=vmem, size = 0x9000, scoped, tag = 'internal scratch']
  %s0 = inlined_call_operand.vmem [shape: bf16[2,288,4], index: 0, kind: input, shape index: {}]
  %s1 = inlined_call_operand.vmem [shape: bf16[2,288,6], index: 1, kind: input, shape index: {}]
  %s2 = inlined_call_operand.vmem [shape: bf16[4,128], index: 2, kind: input, shape index: {}]
  %s3 = inlined_call_operand.vmem [shape: bf16[4,6,256], index: 3, kind: input, shape index: {}]
  %s4 = inlined_call_operand.hbm [shape: bf16[4,3,128,256], index: 4, kind: input, shape index: {}]
  %s5 = inlined_call_operand.vmem [shape: bf16[3,128,256], index: 5, kind: input, shape index: {}]
  %s6 = inlined_call_operand.vmem [shape: bf16[128,128], index: 6, kind: input, shape index: {}]
  %s7 = inlined_call_operand.vmem [shape: bf16[8,128], index: 7, kind: input, shape index: {}]
  %s8 = inlined_call_operand.hbm [shape: f32[2,8,256], index: 8, kind: output, shape index: {}]
  %s9 = sld [smem:[#allocation0]]
  $region69: #{tpu_custom_call.1} parent=0
    _
  %s11 = ssub.s32 1, %s9
  %s12 = scalar_select 0, %s11, %s9
  $region1: #{tpu_custom_call.1} parent=0
    #allocation2 [shape = 'u8[786432]{0}', space=vmem, size = 0xc0000, scoped, tag = 'input window, operand 4, single buffered']
    #allocation3 [shape = 's32[2]{0}', space=sflag, size = 0x8, scoped, tag = 'scoped memory for tpu_custom_call.1']
    #allocation4 [shape = 's32[2]{0}', space=sflag, size = 0x8, scoped, tag = 'scoped memory for tpu_custom_call.1']
    #allocation5 [shape = 'u8[8192]{0}', space=vmem, size = 0x2000, scoped, tag = 'output window, operand 0']
    %13 = vsyncpa [#allocation3], 0
    %14 = vsyncpa [#allocation4], 0
    %s15 = scalar_lea.sflag [#allocation4], 1
    %16 = vsyncpa %s15, 0
    loop: start=0, step=1, limit=6
    $region2: #{tpu_custom_call.1} parent=1 // loop_pre_header
      _
    $region3: #{tpu_custom_call.1} parent=1 // loop_header
      %s18 = sphi 0, %s22
      %p19 = scmp.ge.s32.totalorder %s18, 6
      %s25 = sphi 0, %s37
      %s26 = sphi 0, %s33
      %s27 = sphi 0, %s25
      %s28 = sphi 0, %s26
      %s29 = sphi 0, %s27
      %s30 = sphi 0, %s28
      %s40 = sphi 0, %s42
      %s43 = sphi 0, %s40
      %s44 = sphi 0, %s43
      %s60 = sphi 0, %s44
      %s66 = sphi 0, %s68
      %s69 = sphi 0, %s66
      %s70 = sphi 0, %s69
      %s86 = sphi 0, %s70
      %s90 = sphi 0, %s90
      %s92 = sphi 0, %s90
      %s93 = sphi 0, %s92
      %s107 = sphi 0, %s93
      %s111 = sphi 0, %s111
      %s113 = sphi 0, %s111
      %s114 = sphi 0, %s113
      %s128 = sphi 0, %s114
      %s132 = sphi 0, %s132
      %s134 = sphi 0, %s132
      %s135 = sphi 0, %s134
      %s149 = sphi 0, %s135
      %s153 = sphi 0, %s153
      %s155 = sphi 0, %s153
      %s156 = sphi 0, %s155
      %s170 = sphi 0, %s156
      %s174 = sphi 0, %s174
      %s176 = sphi 0, %s174
      %s177 = sphi 0, %s176
      %s191 = sphi 0, %s177
      %s195 = sphi 0, %s195
      %s197 = sphi 0, %s195
      %s198 = sphi 0, %s197
      %s212 = sphi 0, %s198
      %s220 = sphi 0, %s222
      %s223 = sphi 0, %s220
      %s224 = sphi 0, %s223
      %s240 = sphi 0, %s224
    $region4: #{tpu_custom_call.1} parent=1 // loop_header_branch
      %21 = sbr.rel (%p19) target = $region8
    $region5: #{tpu_custom_call.1} parent=1 // loop_body
      %s23 = ssub.s32 %s18, 1
      %s24 = ssub.s32 %s18, 2
      %s31 = sadd.s32 1, %s26
      %p32 = scmp.ge.s32.totalorder %s31, 2
      %s33 = scalar_select %p32, 0, %s31
      %s34 = sadd.s32 1, %s25
      %s35 = scalar_select %p32, %s34, %s25
      %p36 = scmp.ge.s32.totalorder %s35, 2
      %s37 = scalar_select %p36, 0, %s35
      %s38 = ssub.s32 %s25, %s37
      %p39 = scmp.eq.s32.totalorder %s38, 0
      %s41 = sadd.s32 %s40, 1
      %s42 = scalar_select %p39, %s40, %s41
      %p45 = pneg %p39
      %p46 = scmp.eq.s32.totalorder %s18, 3
      %p47 = por %p45, %p46
      %p48 = scmp.ne.s32.totalorder %s40, %s43
      %p49 = scmp.eq.s32.totalorder %s18, 0
      %p50 = por %p48, %p49
      %p51 = scmp.ne.s32.totalorder %s40, %s43
      %p52 = scmp.eq.s32.totalorder %s23, 3
      %p53 = por %p51, %p52
      %p54 = scmp.ne.s32.totalorder %s43, %s44
      %p55 = scmp.eq.s32.totalorder %s23, 0
      %p56 = por %p54, %p55
      %p57 = scmp.ne.s32.totalorder %s43, %s44
      %p58 = scmp.eq.s32.totalorder %s24, 3
      %p59 = por %p57, %p58
      %p61 = scmp.ne.s32.totalorder %s44, %s60
      %p62 = scmp.eq.s32.totalorder %s24, 0
      %p63 = por %p61, %p62
      %s64 = ssub.s32 %s25, %s37
      %p65 = scmp.eq.s32.totalorder %s64, 0
      %s67 = sadd.s32 %s66, 1
      %s68 = scalar_select %p65, %s66, %s67
      %p71 = pneg %p65
      %p72 = scmp.eq.s32.totalorder %s18, 3
      %p73 = por %p71, %p72
      %p74 = scmp.ne.s32.totalorder %s66, %s69
      %p75 = scmp.eq.s32.totalorder %s18, 0
      %p76 = por %p74, %p75
      %p77 = scmp.ne.s32.totalorder %s66, %s69
      %p78 = scmp.eq.s32.totalorder %s23, 3
      %p79 = por %p77, %p78
      %p80 = scmp.ne.s32.totalorder %s69, %s70
      %p81 = scmp.eq.s32.totalorder %s23, 0
      %p82 = por %p80, %p81
      %p83 = scmp.ne.s32.totalorder %s69, %s70
      %p84 = scmp.eq.s32.totalorder %s24, 3
      %p85 = por %p83, %p84
      %p87 = scmp.ne.s32.totalorder %s70, %s86
      %p88 = scmp.eq.s32.totalorder %s24, 0
      %p89 = por %p87, %p88
      %s91 = sadd.s32 %s90, 1
      %p94 = scmp.eq.s32.totalorder %s18, 3
      %p95 = scmp.ne.s32.totalorder %s90, %s92
      %p96 = scmp.eq.s32.totalorder %s18, 0
      %p97 = por %p95, %p96
      %p98 = scmp.ne.s32.totalorder %s90, %s92
      %p99 = scmp.eq.s32.totalorder %s23, 3
      %p100 = por %p98, %p99
      %p101 = scmp.ne.s32.totalorder %s92, %s93
      %p102 = scmp.eq.s32.totalorder %s23, 0
      %p103 = por %p101, %p102
      %p104 = scmp.ne.s32.totalorder %s92, %s93
      %p105 = scmp.eq.s32.totalorder %s24, 3
      %p106 = por %p104, %p105
      %p108 = scmp.ne.s32.totalorder %s93, %s107
      %p109 = scmp.eq.s32.totalorder %s24, 0
      %p110 = por %p108, %p109
      %s112 = sadd.s32 %s111, 1
      %p115 = scmp.eq.s32.totalorder %s18, 3
      %p116 = scmp.ne.s32.totalorder %s111, %s113
      %p117 = scmp.eq.s32.totalorder %s18, 0
      %p118 = por %p116, %p117
      %p119 = scmp.ne.s32.totalorder %s111, %s113
      %p120 = scmp.eq.s32.totalorder %s23, 3
      %p121 = por %p119, %p120
      %p122 = scmp.ne.s32.totalorder %s113, %s114
      %p123 = scmp.eq.s32.totalorder %s23, 0
      %p124 = por %p122, %p123
      %p125 = scmp.ne.s32.totalorder %s113, %s114
      %p126 = scmp.eq.s32.totalorder %s24, 3
      %p127 = por %p125, %p126
      %p129 = scmp.ne.s32.totalorder %s114, %s128
      %p130 = scmp.eq.s32.totalorder %s24, 0
      %p131 = por %p129, %p130
      %s133 = sadd.s32 %s132, 1
      %p136 = scmp.eq.s32.totalorder %s18, 3
      %p137 = scmp.ne.s32.totalorder %s132, %s134
      %p138 = scmp.eq.s32.totalorder %s18, 0
      %p139 = por %p137, %p138
      %p140 = scmp.ne.s32.totalorder %s132, %s134
      %p141 = scmp.eq.s32.totalorder %s23, 3
      %p142 = por %p140, %p141
      %p143 = scmp.ne.s32.totalorder %s134, %s135
      %p144 = scmp.eq.s32.totalorder %s23, 0
      %p145 = por %p143, %p144
      %p146 = scmp.ne.s32.totalorder %s134, %s135
      %p147 = scmp.eq.s32.totalorder %s24, 3
      %p148 = por %p146, %p147
      %p150 = scmp.ne.s32.totalorder %s135, %s149
      %p151 = scmp.eq.s32.totalorder %s24, 0
      %p152 = por %p150, %p151
      %s154 = sadd.s32 %s153, 1
      %p157 = scmp.eq.s32.totalorder %s18, 3
      %p158 = scmp.ne.s32.totalorder %s153, %s155
      %p159 = scmp.eq.s32.totalorder %s18, 0
      %p160 = por %p158, %p159
      %p161 = scmp.ne.s32.totalorder %s153, %s155
      %p162 = scmp.eq.s32.totalorder %s23, 3
      %p163 = por %p161, %p162
      %p164 = scmp.ne.s32.totalorder %s155, %s156
      %p165 = scmp.eq.s32.totalorder %s23, 0
      %p166 = por %p164, %p165
      %p167 = scmp.ne.s32.totalorder %s155, %s156
      %p168 = scmp.eq.s32.totalorder %s24, 3
      %p169 = por %p167, %p168
      %p171 = scmp.ne.s32.totalorder %s156, %s170
      %p172 = scmp.eq.s32.totalorder %s24, 0
      %p173 = por %p171, %p172
      %s175 = sadd.s32 %s174, 1
      %p178 = scmp.eq.s32.totalorder %s18, 3
      %p179 = scmp.ne.s32.totalorder %s174, %s176
      %p180 = scmp.eq.s32.totalorder %s18, 0
      %p181 = por %p179, %p180
      %p182 = scmp.ne.s32.totalorder %s174, %s176
      %p183 = scmp.eq.s32.totalorder %s23, 3
      %p184 = por %p182, %p183
      %p185 = scmp.ne.s32.totalorder %s176, %s177
      %p186 = scmp.eq.s32.totalorder %s23, 0
      %p187 = por %p185, %p186
      %p188 = scmp.ne.s32.totalorder %s176, %s177
      %p189 = scmp.eq.s32.totalorder %s24, 3
      %p190 = por %p188, %p189
      %p192 = scmp.ne.s32.totalorder %s177, %s191
      %p193 = scmp.eq.s32.totalorder %s24, 0
      %p194 = por %p192, %p193
      %s196 = sadd.s32 %s195, 1
      %p199 = scmp.eq.s32.totalorder %s18, 3
      %p200 = scmp.ne.s32.totalorder %s195, %s197
      %p201 = scmp.eq.s32.totalorder %s18, 0
      %p202 = por %p200, %p201
      %p203 = scmp.ne.s32.totalorder %s195, %s197
      %p204 = scmp.eq.s32.totalorder %s23, 3
      %p205 = por %p203, %p204
      %p206 = scmp.ne.s32.totalorder %s197, %s198
      %p207 = scmp.eq.s32.totalorder %s23, 0
      %p208 = por %p206, %p207
      %p209 = scmp.ne.s32.totalorder %s197, %s198
      %p210 = scmp.eq.s32.totalorder %s24, 3
      %p211 = por %p209, %p210
      %p213 = scmp.ne.s32.totalorder %s198, %s212
      %p214 = scmp.eq.s32.totalorder %s24, 0
      %p215 = por %p213, %p214
      %s216 = ssub.s32 %s25, %s37
      %s217 = ssub.s32 %s26, %s33
      %s218 = sor.u32 %s216, %s217
      %p219 = scmp.eq.s32.totalorder %s218, 0
      %s221 = sadd.s32 %s220, 1
      %s222 = scalar_select %p219, %s220, %s221
      %p225 = pneg %p219
      %p226 = scmp.eq.s32.totalorder %s18, 3
      %p227 = por %p225, %p226
      %p228 = scmp.ne.s32.totalorder %s220, %s223
      %p229 = scmp.eq.s32.totalorder %s18, 0
      %p230 = por %p228, %p229
      %p231 = scmp.ne.s32.totalorder %s220, %s223
      %p232 = scmp.eq.s32.totalorder %s23, 3
      %p233 = por %p231, %p232
      %p234 = scmp.ne.s32.totalorder %s223, %s224
      %p235 = scmp.eq.s32.totalorder %s23, 0
      %p236 = por %p234, %p235
      %p237 = scmp.ne.s32.totalorder %s223, %s224
      %p238 = scmp.eq.s32.totalorder %s24, 3
      %p239 = por %p237, %p238
      %p241 = scmp.ne.s32.totalorder %s224, %s240
      %p242 = scmp.eq.s32.totalorder %s24, 0
      %p243 = por %p241, %p242
      %p244 = scmp.le.s32.totalorder 1, %s18
      %p245 = scmp.lt.s32.totalorder %s18, 5
      %p246 = pnand %p244, %p245
      %p247 = pneg %p246
      // Predicated region
      $region9: #{tpu_custom_call.1} parent=5 // pred_check
        _
      $region10: #{tpu_custom_call.1} parent=5 // pred_check_branch
        %249 = sbr.rel (%p246) target = $region12
      $region11: #{tpu_custom_call.1} parent=5 // pred_region
        %s250 = ssub.s32 %s18, 1
        // Predicated region
        $region13: #{tpu_custom_call.1} parent=11 // pred_check
          %p251 = pneg %p103
        $region14: #{tpu_custom_call.1} parent=11 // pred_check_branch
          %253 = sbr.rel (%p251) target = $region16
        $region15: #{tpu_custom_call.1} parent=11 // pred_region
          _
        $region16: #{tpu_custom_call.1} parent=11 // pred_fallthru
          _
        // Predicated region
        $region17: #{tpu_custom_call.1} parent=11 // pred_check
          %p254 = pneg %p124
        $region18: #{tpu_custom_call.1} parent=11 // pred_check_branch
          %256 = sbr.rel (%p254) target = $region20
        $region19: #{tpu_custom_call.1} parent=11 // pred_region
          _
        $region20: #{tpu_custom_call.1} parent=11 // pred_fallthru
          _
        // Predicated region
        $region21: #{tpu_custom_call.1} parent=11 // pred_check
          %p257 = pneg %p145
        $region22: #{tpu_custom_call.1} parent=11 // pred_check_branch
          %259 = sbr.rel (%p257) target = $region24
        $region23: #{tpu_custom_call.1} parent=11 // pred_region
          %261 = vsyncadd [#allocation3], 0
          %s262 = sshll.u32 %s4, 4
          %s263 = int_to_ptr.hbm [resolvable:$true] %s262
          %s264 = sshll.u32 [#allocation2], 4
          %s265 = int_to_ptr.vmem [resolvable:$true] %s264
          %270 = dma.hbm_to_vmem [thread:$0]  %s263, 24576, %s265, [#allocation3], 128, 128, 8
        $region24: #{tpu_custom_call.1} parent=11 // pred_fallthru
          _
        // Predicated region
        $region25: #{tpu_custom_call.1} parent=11 // pred_check
          %p271 = pneg %p166
        $region26: #{tpu_custom_call.1} parent=11 // pred_check_branch
          %273 = sbr.rel (%p271) target = $region28
        $region27: #{tpu_custom_call.1} parent=11 // pred_region
          _
        $region28: #{tpu_custom_call.1} parent=11 // pred_fallthru
          _
        // Predicated region
        $region29: #{tpu_custom_call.1} parent=11 // pred_check
          %p274 = pneg %p187
        $region30: #{tpu_custom_call.1} parent=11 // pred_check_branch
          %276 = sbr.rel (%p274) target = $region32
        $region31: #{tpu_custom_call.1} parent=11 // pred_region
          _
        $region32: #{tpu_custom_call.1} parent=11 // pred_fallthru
          _
        // Predicated region
        $region33: #{tpu_custom_call.1} parent=11 // pred_check
          %p277 = pneg %p208
        $region34: #{tpu_custom_call.1} parent=11 // pred_check_branch
          %279 = sbr.rel (%p277) target = $region36
        $region35: #{tpu_custom_call.1} parent=11 // pred_region
          _
        $region36: #{tpu_custom_call.1} parent=11 // pred_fallthru
          _
      $region12: #{tpu_custom_call.1} parent=5 // pred_fallthru
        _
      %p280 = scmp.lt.s32.totalorder %s18, 4
      // Predicated region
      $region37: #{tpu_custom_call.1} parent=5 // pred_check
        %p281 = pneg %p280
      $region38: #{tpu_custom_call.1} parent=5 // pred_check_branch
        %283 = sbr.rel (%p281) target = $region40
      $region39: #{tpu_custom_call.1} parent=5 // pred_region
        // Predicated region
        $region41: #{tpu_custom_call.1} parent=39 // pred_check
          %p284 = pneg %p50
        $region42: #{tpu_custom_call.1} parent=39 // pred_check_branch
          %286 = sbr.rel (%p284) target = $region44
        $region43: #{tpu_custom_call.1} parent=39 // pred_region
          %p287 = scmp.lt.s32.totalorder %s25, 1
          %s288 = scalar_select %p287, %s25, 1
          %s289 = smul.addr %s288, 36
          %s290 = smul.addr %s289, 4
          %s291 = scalar_lea.vmem %s0, %s290
        $region44: #{tpu_custom_call.1} parent=39 // pred_fallthru
          _
        // Predicated region
        $region45: #{tpu_custom_call.1} parent=39 // pred_check
          %p292 = pneg %p76
        $region46: #{tpu_custom_call.1} parent=39 // pred_check_branch
          %294 = sbr.rel (%p292) target = $region48
        $region47: #{tpu_custom_call.1} parent=39 // pred_region
          %p295 = scmp.lt.s32.totalorder %s25, 1
          %s296 = scalar_select %p295, %s25, 1
          %s297 = smul.addr %s296, 36
          %s298 = smul.addr %s297, 4
          %s299 = scalar_lea.vmem %s1, %s298
        $region48: #{tpu_custom_call.1} parent=39 // pred_fallthru
          _
      $region40: #{tpu_custom_call.1} parent=5 // pred_fallthru
        _
      %p300 = scmp.le.s32.totalorder 1, %s18
      %p301 = scmp.lt.s32.totalorder %s18, 5
      %p302 = pnand %p300, %p301
      %p303 = pneg %p302
      // Predicated region
      $region49: #{tpu_custom_call.1} parent=5 // pred_check
        _
      $region50: #{tpu_custom_call.1} parent=5 // pred_check_branch
        %305 = sbr.rel (%p302) target = $region52
      $region51: #{tpu_custom_call.1} parent=5 // pred_region
        %s306 = ssub.s32 %s18, 1
        // Predicated region
        $region53: #{tpu_custom_call.1} parent=51 // pred_check
          %p307 = pneg %p145
        $region54: #{tpu_custom_call.1} parent=51 // pred_check_branch
          %309 = sbr.rel (%p307) target = $region56
        $region55: #{tpu_custom_call.1} parent=51 // pred_region
          %311 = dma.done [#allocation3], 24576
        $region56: #{tpu_custom_call.1} parent=51 // pred_fallthru
          _
        %p312 = scmp.lt.s32.totalorder %s27, 1
        %s313 = scalar_select %p312, %s27, 1
        %s314 = smul.addr %s313, 36
        %s315 = smul.addr %s314, 4
        %s316 = scalar_lea.vmem %s0, %s315
        %p317 = pneg %p56
        %p318 = pneg %p53
        %p319 = scmp.lt.s32.totalorder %s27, 1
        %s320 = scalar_select %p319, %s27, 1
        %s321 = smul.addr %s320, 36
        %s322 = smul.addr %s321, 4
        %s323 = scalar_lea.vmem %s1, %s322
        %p324 = pneg %p82
        %p325 = pneg %p79
        %p326 = pneg %p103
        %p327 = pneg %p100
        %p328 = pneg %p124
        %p329 = pneg %p121
        %p330 = pneg %p145
        %p331 = pneg %p142
        %p332 = pneg %p166
        %p333 = pneg %p163
        %p334 = pneg %p187
        %p335 = pneg %p184
        %p336 = pneg %p208
        %p337 = pneg %p205
        %p338 = pneg %p236
        %p339 = pneg %p233
        %s340 = sand.u32 %s223, 1
        %s341 = scalar_lea.sflag [#allocation4], %s340
        %s342 = sand.u32 %s223, 1
        %s343 = smul.addr %s342, 8
        %s344 = scalar_lea.vmem [#allocation5], %s343
        %p345 = scmp.lt.s32.totalorder %s27, 1
        %s346 = scalar_select %p345, %s27, 1
        %s347 = smul.addr %s346, 36
        %s348 = smul.addr %s347, 4
        %s349 = scalar_lea.vmem %s0, %s348
        %p350 = scmp.lt.s32.totalorder %s27, 1
        %s351 = scalar_select %p350, %s27, 1
        %s352 = smul.addr %s351, 36
        %s353 = smul.addr %s352, 4
        %s354 = scalar_lea.vmem %s1, %s353
        %s356 = smul.u32 %s28, 128
        %s357 = sshra.s32 %s356, 3
        %s358 = sand.u32 %s356, 7
        %s359 = smul.addr %s357, 4
        %s360 = scalar_lea.vmem %s349, %s359
        %v361 = vld [vmem:[%s360] sm:$0xf]
        %v362 = vld [vmem:[%s360 + $0x4] sm:$0xf]
        %v363 = vld [vmem:[%s360 + $0x8] sm:$0xf]
        %v364 = vld [vmem:[%s360 + $0xc] sm:$0xf]
        %v365 = vld [vmem:[%s360 + $0x10] sm:$0xf]
        %v366 = vld [vmem:[%s360 + $0x14] sm:$0xf]
        %v367 = vld [vmem:[%s360 + $0x18] sm:$0xf]
        %v368 = vld [vmem:[%s360 + $0x1c] sm:$0xf]
        %v369 = vld [vmem:[%s360 + $0x20] sm:$0xf]
        %v370 = vld [vmem:[%s360 + $0x24] sm:$0xf]
        %v371 = vld [vmem:[%s360 + $0x28] sm:$0xf]
        %v372 = vld [vmem:[%s360 + $0x2c] sm:$0xf]
        %v373 = vld [vmem:[%s360 + $0x30] sm:$0xf]
        %v374 = vld [vmem:[%s360 + $0x34] sm:$0xf]
        %v375 = vld [vmem:[%s360 + $0x38] sm:$0xf]
        %v376 = vld [vmem:[%s360 + $0x3c] sm:$0xf]
        %v377 = vld [vmem:[%s360 + $0x40] sm:$0xf]
        %v378 = vld [vmem:[%s360 + $0x44] sm:$0xf]
        %v379 = vld [vmem:[%s360 + $0x48] sm:$0xf]
        %v380 = vld [vmem:[%s360 + $0x4c] sm:$0xf]
        %s381 = smul.addr %s357, 4
        %s382 = scalar_lea.vmem %s354, %s381
        %v383 = vld [vmem:[%s382] sm:$0xf]
        %v384 = vld [vmem:[%s382 + $0x4] sm:$0xf]
        %v385 = vld [vmem:[%s382 + $0x8] sm:$0xf]
        %v386 = vld [vmem:[%s382 + $0xc] sm:$0xf]
        %v387 = vld [vmem:[%s382 + $0x10] sm:$0xf]
        %v388 = vld [vmem:[%s382 + $0x14] sm:$0xf]
        %v389 = vld [vmem:[%s382 + $0x18] sm:$0xf]
        %v390 = vld [vmem:[%s382 + $0x1c] sm:$0xf]
        %v391 = vld [vmem:[%s382 + $0x20] sm:$0xf]
        %v392 = vld [vmem:[%s382 + $0x24] sm:$0xf]
        %v393 = vld [vmem:[%s382 + $0x28] sm:$0xf]
        %v394 = vld [vmem:[%s382 + $0x2c] sm:$0xf]
        %v395 = vld [vmem:[%s382 + $0x30] sm:$0xf]
        %v396 = vld [vmem:[%s382 + $0x34] sm:$0xf]
        %v397 = vld [vmem:[%s382 + $0x38] sm:$0xf]
        %v398 = vld [vmem:[%s382 + $0x3c] sm:$0xf]
        %v399 = vld [vmem:[%s382 + $0x40] sm:$0xf]
        %v400 = vld [vmem:[%s382 + $0x44] sm:$0xf]
        %v401 = vld [vmem:[%s382 + $0x48] sm:$0xf]
        %v402 = vld [vmem:[%s382 + $0x4c] sm:$0xf]
        %v403 = vlaneseq
        %v404 = vshrl.u32 %v403, 7
        %v405 = vadd.s32 %v404, 8
        %v406 = vadd.s32 %v404, 16
        %v407 = vadd.s32 %v404, 24
        %v408 = vadd.s32 %v404, 32
        %v409 = vadd.s32 %v404, 40
        %v410 = vadd.s32 %v404, 48
        %v411 = vadd.s32 %v404, 56
        %v412 = vadd.s32 %v404, 64
        %v413 = vadd.s32 %v404, 72
        %v414 = vadd.s32 %v404, 80
        %v415 = vadd.s32 %v404, 88
        %v416 = vadd.s32 %v404, 96
        %v417 = vadd.s32 %v404, 104
        %v418 = vadd.s32 %v404, 112
        %v419 = vadd.s32 %v404, 120
        %v420 = vadd.s32 %v404, 128
        %v421 = vadd.s32 %v404, 136
        %v422 = vadd.s32 %v404, 144
        %v423 = vadd.s32 %v404, 152
        %s424 = ssub.s32 %s356, 16
        %v425 = vstv %s424
        %v426 = vadd.s32 %v404, %v425
        %v427 = vadd.s32 %v405, %v425
        %v428 = vadd.s32 %v406, %v425
        %v429 = vadd.s32 %v407, %v425
        %v430 = vadd.s32 %v408, %v425
        %v431 = vadd.s32 %v409, %v425
        %v432 = vadd.s32 %v410, %v425
        %v433 = vadd.s32 %v411, %v425
        %v434 = vadd.s32 %v412, %v425
        %v435 = vadd.s32 %v413, %v425
        %v436 = vadd.s32 %v414, %v425
        %v437 = vadd.s32 %v415, %v425
        %v438 = vadd.s32 %v416, %v425
        %v439 = vadd.s32 %v417, %v425
        %v440 = vadd.s32 %v418, %v425
        %v441 = vadd.s32 %v419, %v425
        %v442 = vadd.s32 %v420, %v425
        %v443 = vadd.s32 %v421, %v425
        %v444 = vadd.s32 %v422, %v425
        %v445 = vadd.s32 %v423, %v425
        %vm446 = vcmp.ge.s32.totalorder %v426, 0
        %vm447 = vcmp.ge.s32.totalorder %v427, 0
        %vm448 = vcmp.ge.s32.totalorder %v428, 0
        %vm449 = vcmp.ge.s32.totalorder %v429, 0
        %vm450 = vcmp.ge.s32.totalorder %v430, 0
        %vm451 = vcmp.ge.s32.totalorder %v431, 0
        %vm452 = vcmp.ge.s32.totalorder %v432, 0
        %vm453 = vcmp.ge.s32.totalorder %v433, 0
        %vm454 = vcmp.ge.s32.totalorder %v434, 0
        %vm455 = vcmp.ge.s32.totalorder %v435, 0
        %vm456 = vcmp.ge.s32.totalorder %v436, 0
        %vm457 = vcmp.ge.s32.totalorder %v437, 0
        %vm458 = vcmp.ge.s32.totalorder %v438, 0
        %vm459 = vcmp.ge.s32.totalorder %v439, 0
        %vm460 = vcmp.ge.s32.totalorder %v440, 0
        %vm461 = vcmp.ge.s32.totalorder %v441, 0
        %vm462 = vcmp.ge.s32.totalorder %v442, 0
        %vm463 = vcmp.ge.s32.totalorder %v443, 0
        %vm464 = vcmp.ge.s32.totalorder %v444, 0
        %vm465 = vcmp.ge.s32.totalorder %v445, 0
        %vm466 = vcmp.lt.s32.totalorder %v426, 256
        %vm467 = vcmp.lt.s32.totalorder %v427, 256
        %vm468 = vcmp.lt.s32.totalorder %v428, 256
        %vm469 = vcmp.lt.s32.totalorder %v429, 256
        %vm470 = vcmp.lt.s32.totalorder %v430, 256
        %vm471 = vcmp.lt.s32.totalorder %v431, 256
        %vm472 = vcmp.lt.s32.totalorder %v432, 256
        %vm473 = vcmp.lt.s32.totalorder %v433, 256
        %vm474 = vcmp.lt.s32.totalorder %v434, 256
        %vm475 = vcmp.lt.s32.totalorder %v435, 256
        %vm476 = vcmp.lt.s32.totalorder %v436, 256
        %vm477 = vcmp.lt.s32.totalorder %v437, 256
        %vm478 = vcmp.lt.s32.totalorder %v438, 256
        %vm479 = vcmp.lt.s32.totalorder %v439, 256
        %vm480 = vcmp.lt.s32.totalorder %v440, 256
        %vm481 = vcmp.lt.s32.totalorder %v441, 256
        %vm482 = vcmp.lt.s32.totalorder %v442, 256
        %vm483 = vcmp.lt.s32.totalorder %v443, 256
        %vm484 = vcmp.lt.s32.totalorder %v444, 256
        %vm485 = vcmp.lt.s32.totalorder %v445, 256
        %vm486 = vmand %vm446, %vm466
        %vm487 = vmand %vm447, %vm467
        %vm488 = vmand %vm448, %vm468
        %vm489 = vmand %vm449, %vm469
        %vm490 = vmand %vm450, %vm470
        %vm491 = vmand %vm451, %vm471
        %vm492 = vmand %vm452, %vm472
        %vm493 = vmand %vm453, %vm473
        %vm494 = vmand %vm454, %vm474
        %vm495 = vmand %vm455, %vm475
        %vm496 = vmand %vm456, %vm476
        %vm497 = vmand %vm457, %vm477
        %vm498 = vmand %vm458, %vm478
        %vm499 = vmand %vm459, %vm479
        %vm500 = vmand %vm460, %vm480
        %vm501 = vmand %vm461, %vm481
        %vm502 = vmand %vm462, %vm482
        %vm503 = vmand %vm463, %vm483
        %vm504 = vmand %vm464, %vm484
        %vm505 = vmand %vm465, %vm485
        %v506 = vsel %vm486, 1, 0
        %v507 = vsel %vm487, 1, 0
        %v508 = vsel %vm488, 1, 0
        %v509 = vsel %vm489, 1, 0
        %v510 = vsel %vm490, 1, 0
        %v511 = vsel %vm491, 1, 0
        %v512 = vsel %vm492, 1, 0
        %v513 = vsel %vm493, 1, 0
        %v514 = vsel %vm494, 1, 0
        %v515 = vsel %vm495, 1, 0
        %v516 = vsel %vm496, 1, 0
        %v517 = vsel %vm497, 1, 0
        %v518 = vsel %vm498, 1, 0
        %v519 = vsel %vm499, 1, 0
        %v520 = vsel %vm500, 1, 0
        %v521 = vsel %vm501, 1, 0
        %v522 = vsel %vm502, 1, 0
        %v523 = vsel %vm503, 1, 0
        %v524 = vsel %vm504, 1, 0
        %v525 = vsel %vm505, 1, 0
        %v526 = vcvt.s32.f32 %v506
        %v527 = vcvt.s32.f32 %v507
        %v528 = vcvt.s32.f32 %v508
        %v529 = vcvt.s32.f32 %v509
        %v530 = vcvt.s32.f32 %v510
        %v531 = vcvt.s32.f32 %v511
        %v532 = vcvt.s32.f32 %v512
        %v533 = vcvt.s32.f32 %v513
        %v534 = vcvt.s32.f32 %v514
        %v535 = vcvt.s32.f32 %v515
        %v536 = vcvt.s32.f32 %v516
        %v537 = vcvt.s32.f32 %v517
        %v538 = vcvt.s32.f32 %v518
        %v539 = vcvt.s32.f32 %v519
        %v540 = vcvt.s32.f32 %v520
        %v541 = vcvt.s32.f32 %v521
        %v542 = vcvt.s32.f32 %v522
        %v543 = vcvt.s32.f32 %v523
        %v544 = vcvt.s32.f32 %v524
        %v545 = vcvt.s32.f32 %v525
        %v546 = vld [vmem:[%s2] sm:$0x3]
        %v567 = vunpack.c.l.b16 %v361
        %v568 = vunpack.c.l.b16 %v362
        %v569 = vunpack.c.l.b16 %v363
        %v570 = vunpack.c.l.b16 %v364
        %v571 = vunpack.c.l.b16 %v365
        %v572 = vunpack.c.l.b16 %v366
        %v573 = vunpack.c.l.b16 %v367
        %v574 = vunpack.c.l.b16 %v368
        %v575 = vunpack.c.l.b16 %v369
        %v576 = vunpack.c.l.b16 %v370
        %v577 = vunpack.c.l.b16 %v371
        %v578 = vunpack.c.l.b16 %v372
        %v579 = vunpack.c.l.b16 %v373
        %v580 = vunpack.c.l.b16 %v374
        %v581 = vunpack.c.l.b16 %v375
        %v582 = vunpack.c.l.b16 %v376
        %v583 = vunpack.c.l.b16 %v377
        %v584 = vunpack.c.l.b16 %v378
        %v585 = vunpack.c.l.b16 %v379
        %v586 = vunpack.c.l.b16 %v380
        %v587 = vpack.c.b16 %v568, %v567
        %v588 = vpack.c.b16 %v570, %v569
        %v589 = vpack.c.b16 %v572, %v571
        %v590 = vpack.c.b16 %v574, %v573
        %v591 = vpack.c.b16 %v576, %v575
        %v592 = vpack.c.b16 %v578, %v577
        %v593 = vpack.c.b16 %v580, %v579
        %v594 = vpack.c.b16 %v582, %v581
        %v595 = vpack.c.b16 %v584, %v583
        %v596 = vpack.c.b16 %v586, %v585
        %vm597 = vcmask 31744
        %v599 = vsel %vm597, %v587, 0
        %v602 = vsel %vm597, %v588, 0
        %v605 = vsel %vm597, %v589, 0
        %v608 = vsel %vm597, %v590, 0
        %v611 = vsel %vm597, %v591, 0
        %v614 = vsel %vm597, %v592, 0
        %v617 = vsel %vm597, %v593, 0
        %v620 = vsel %vm597, %v594, 0
        %v623 = vsel %vm597, %v595, 0
        %v626 = vsel %vm597, %v596, 0
        %vm628 = vcmask 1041408
        %v630 = vsel %vm628, %v546, 0
        %632 = vmatpush.bf16.msra.mxu0 0
        %633 = vmatpush.bf16.msra.mxu0 0
        %634 = vmatpush.bf16.msra.mxu0 0
        %635 = vmatpush.bf16.msra.mxu0 0
        %636 = vmatpush.bf16.msra.mxu0 0
        %637 = vmatpush.bf16.msra.mxu0 0
        %638 = vmatpush.bf16.msra.mxu0 0
        %639 = vmatpush.bf16.msra.mxu0 %v630
        %640 = vmatmul.bf16.gmra.mxu0 %v599
        %v641 = vpop.f32.mrf.mxu0
        %v642 = vadd.f32 0.0, %v641
        %v643 = vpop.f32.mrf.mxu0
        %v644 = vadd.f32 0.0, %v643
        %645 = vmatmul.bf16.gmra.mxu0 %v602
        %v646 = vpop.f32.mrf.mxu0
        %v647 = vadd.f32 0.0, %v646
        %v648 = vpop.f32.mrf.mxu0
        %v649 = vadd.f32 0.0, %v648
        %650 = vmatmul.bf16.gmra.mxu0 %v605
        %v651 = vpop.f32.mrf.mxu0
        %v652 = vadd.f32 0.0, %v651
        %v653 = vpop.f32.mrf.mxu0
        %v654 = vadd.f32 0.0, %v653
        %655 = vmatmul.bf16.gmra.mxu0 %v608
        %v656 = vpop.f32.mrf.mxu0
        %v657 = vadd.f32 0.0, %v656
        %v658 = vpop.f32.mrf.mxu0
        %v659 = vadd.f32 0.0, %v658
        %660 = vmatmul.bf16.gmra.mxu0 %v611
        %v661 = vpop.f32.mrf.mxu0
        %v662 = vadd.f32 0.0, %v661
        %v663 = vpop.f32.mrf.mxu0
        %v664 = vadd.f32 0.0, %v663
        %665 = vmatmul.bf16.gmra.mxu0 %v614
        %v666 = vpop.f32.mrf.mxu0
        %v667 = vadd.f32 0.0, %v666
        %v668 = vpop.f32.mrf.mxu0
        %v669 = vadd.f32 0.0, %v668
        %670 = vmatmul.bf16.gmra.mxu0 %v617
        %v671 = vpop.f32.mrf.mxu0
        %v672 = vadd.f32 0.0, %v671
        %v673 = vpop.f32.mrf.mxu0
        %v674 = vadd.f32 0.0, %v673
        %675 = vmatmul.bf16.gmra.mxu0 %v620
        %v676 = vpop.f32.mrf.mxu0
        %v677 = vadd.f32 0.0, %v676
        %v678 = vpop.f32.mrf.mxu0
        %v679 = vadd.f32 0.0, %v678
        %680 = vmatmul.bf16.gmra.mxu0 %v623
        %v681 = vpop.f32.mrf.mxu0
        %v682 = vadd.f32 0.0, %v681
        %v683 = vpop.f32.mrf.mxu0
        %v684 = vadd.f32 0.0, %v683
        %685 = vmatmul.bf16.gmra.mxu0 %v626
        %v686 = vpop.f32.mrf.mxu0
        %v687 = vadd.f32 0.0, %v686
        %v688 = vpop.f32.mrf.mxu0
        %v689 = vadd.f32 0.0, %v688
        %690 = vdwg.mxu0
        %v691 = vld [vmem:[%s3] sm:$0x77]
        %v692 = vpack.c.bf16 %v644, %v642
        %v693 = vpack.c.bf16 %v649, %v647
        %v694 = vpack.c.bf16 %v654, %v652
        %v695 = vpack.c.bf16 %v659, %v657
        %v696 = vpack.c.bf16 %v664, %v662
        %v697 = vpack.c.bf16 %v669, %v667
        %v698 = vpack.c.bf16 %v674, %v672
        %v699 = vpack.c.bf16 %v679, %v677
        %v700 = vpack.c.bf16 %v684, %v682
        %v701 = vpack.c.bf16 %v689, %v687
        %v702 = vrot.slane %v642, 7
        %v703 = vrot.slane %v644, 7
        %v704 = vrot.slane %v647, 7
        %v705 = vrot.slane %v649, 7
        %v706 = vrot.slane %v652, 7
        %v707 = vrot.slane %v654, 7
        %v708 = vrot.slane %v657, 7
        %v709 = vrot.slane %v659, 7
        %v710 = vrot.slane %v662, 7
        %v711 = vrot.slane %v664, 7
        %v712 = vrot.slane %v667, 7
        %v713 = vrot.slane %v669, 7
        %v714 = vrot.slane %v672, 7
        %v715 = vrot.slane %v674, 7
        %v716 = vrot.slane %v677, 7
        %v717 = vrot.slane %v679, 7
        %v718 = vrot.slane %v682, 7
        %v719 = vrot.slane %v684, 7
        %v720 = vrot.slane %v687, 7
        %v721 = vrot.slane %v689, 7
        %vm722 = vcmp.lt.s32.totalorder %v404, 1
        %v723 = vsel %vm722, %v720, %v721
        %v724 = vsel %vm722, %v719, %v720
        %v725 = vsel %vm722, %v718, %v719
        %v726 = vsel %vm722, %v717, %v718
        %v727 = vsel %vm722, %v716, %v717
        %v728 = vsel %vm722, %v715, %v716
        %v729 = vsel %vm722, %v714, %v715
        %v730 = vsel %vm722, %v713, %v714
        %v731 = vsel %vm722, %v712, %v713
        %v732 = vsel %vm722, %v711, %v712
        %v733 = vsel %vm722, %v710, %v711
        %v734 = vsel %vm722, %v709, %v710
        %v735 = vsel %vm722, %v708, %v709
        %v736 = vsel %vm722, %v707, %v708
        %v737 = vsel %vm722, %v706, %v707
        %v738 = vsel %vm722, %v705, %v706
        %v739 = vsel %vm722, %v704, %v705
        %v740 = vsel %vm722, %v703, %v704
        %v741 = vsel %vm722, %v702, %v703
        %v742 = vsel %vm722, %v721, %v702
        %v743 = vpack.c.bf16 %v741, %v742
        %v744 = vpack.c.bf16 %v739, %v740
        %v745 = vpack.c.bf16 %v737, %v738
        %v746 = vpack.c.bf16 %v735, %v736
        %v747 = vpack.c.bf16 %v733, %v734
        %v748 = vpack.c.bf16 %v731, %v732
        %v749 = vpack.c.bf16 %v729, %v730
        %v750 = vpack.c.bf16 %v727, %v728
        %v751 = vpack.c.bf16 %v725, %v726
        %v752 = vpack.c.bf16 %v723, %v724
        %v753 = vld [vmem:[#allocation2] sm:$0xff]
        %v754 = vld [vmem:[#allocation2 + $0x8] sm:$0xff]
        %v755 = vld [vmem:[#allocation2 + $0x10] sm:$0xff]
        %v756 = vld [vmem:[#allocation2 + $0x18] sm:$0xff]
        %v757 = vld [vmem:[#allocation2 + $0x20] sm:$0xff]
        %v758 = vld [vmem:[#allocation2 + $0x28] sm:$0xff]
        %v759 = vld [vmem:[#allocation2 + $0x30] sm:$0xff]
        %v760 = vld [vmem:[#allocation2 + $0x38] sm:$0xff]
        %v761 = vld [vmem:[#allocation2 + $0x40] sm:$0xff]
        %v762 = vld [vmem:[#allocation2 + $0x48] sm:$0xff]
        %v763 = vld [vmem:[#allocation2 + $0x50] sm:$0xff]
        %v764 = vld [vmem:[#allocation2 + $0x58] sm:$0xff]
        %v765 = vld [vmem:[#allocation2 + $0x60] sm:$0xff]
        %v766 = vld [vmem:[#allocation2 + $0x68] sm:$0xff]
        %v767 = vld [vmem:[#allocation2 + $0x70] sm:$0xff]
        %v768 = vld [vmem:[#allocation2 + $0x78] sm:$0xff]
        %v785 = vunpack.c.l.b16 %v753
        %v786 = vunpack.c.h.b16 %v753
        %v787 = vunpack.c.l.b16 %v754
        %v788 = vunpack.c.h.b16 %v754
        %v789 = vunpack.c.l.b16 %v755
        %v790 = vunpack.c.h.b16 %v755
        %v791 = vunpack.c.l.b16 %v756
        %v792 = vunpack.c.h.b16 %v756
        %v793 = vunpack.c.l.b16 %v757
        %v794 = vunpack.c.h.b16 %v757
        %v795 = vunpack.c.l.b16 %v758
        %v796 = vunpack.c.h.b16 %v758
        %v797 = vunpack.c.l.b16 %v759
        %v798 = vunpack.c.h.b16 %v759
        %v799 = vunpack.c.l.b16 %v760
        %v800 = vunpack.c.h.b16 %v760
        %v801 = vunpack.c.l.b16 %v761
        %v802 = vunpack.c.h.b16 %v761
        %v803 = vunpack.c.l.b16 %v762
        %v804 = vunpack.c.h.b16 %v762
        %v805 = vunpack.c.l.b16 %v763
        %v806 = vunpack.c.h.b16 %v763
        %v807 = vunpack.c.l.b16 %v764
        %v808 = vunpack.c.h.b16 %v764
        %v809 = vunpack.c.l.b16 %v765
        %v810 = vunpack.c.h.b16 %v765
        %v811 = vunpack.c.l.b16 %v766
        %v812 = vunpack.c.h.b16 %v766
        %v813 = vunpack.c.l.b16 %v767
        %v814 = vunpack.c.h.b16 %v767
        %v815 = vunpack.c.l.b16 %v768
        %v816 = vunpack.c.h.b16 %v768
        %v817 = vpack.c.b16 %v787, %v785
        %v818 = vpack.c.b16 %v788, %v786
        %v819 = vpack.c.b16 %v791, %v789
        %v820 = vpack.c.b16 %v792, %v790
        %v821 = vpack.c.b16 %v795, %v793
        %v822 = vpack.c.b16 %v796, %v794
        %v823 = vpack.c.b16 %v799, %v797
        %v824 = vpack.c.b16 %v800, %v798
        %v825 = vpack.c.b16 %v803, %v801
        %v826 = vpack.c.b16 %v804, %v802
        %v827 = vpack.c.b16 %v807, %v805
        %v828 = vpack.c.b16 %v808, %v806
        %v829 = vpack.c.b16 %v811, %v809
        %v830 = vpack.c.b16 %v812, %v810
        %v831 = vpack.c.b16 %v815, %v813
        %v832 = vpack.c.b16 %v816, %v814
        %849 = vmatpush.bf16.msra.mxu0 %v831
        %850 = vmatpush.bf16.msra.mxu0 %v829
        %851 = vmatpush.bf16.msra.mxu0 %v827
        %852 = vmatpush.bf16.msra.mxu0 %v825
        %853 = vmatpush.bf16.msra.mxu0 %v823
        %854 = vmatpush.bf16.msra.mxu0 %v821
        %855 = vmatpush.bf16.msra.mxu0 %v819
        %856 = vmatpush.bf16.msra.mxu0 %v817
        %857 = vmatmul.bf16.gmra.mxu0 %v743
        %v858 = vpop.f32.mrf.mxu0
        %v859 = vadd.f32 0.0, %v858
        %v860 = vpop.f32.mrf.mxu0
        %v861 = vadd.f32 0.0, %v860
        %862 = vmatmul.bf16.gmra.mxu0 %v744
        %v863 = vpop.f32.mrf.mxu0
        %v864 = vadd.f32 0.0, %v863
        %v865 = vpop.f32.mrf.mxu0
        %v866 = vadd.f32 0.0, %v865
        %867 = vmatmul.bf16.gmra.mxu0 %v745
        %v868 = vpop.f32.mrf.mxu0
        %v869 = vadd.f32 0.0, %v868
        %v870 = vpop.f32.mrf.mxu0
        %v871 = vadd.f32 0.0, %v870
        %872 = vmatmul.bf16.gmra.mxu0 %v746
        %v873 = vpop.f32.mrf.mxu0
        %v874 = vadd.f32 0.0, %v873
        %v875 = vpop.f32.mrf.mxu0
        %v876 = vadd.f32 0.0, %v875
        %877 = vmatmul.bf16.gmra.mxu0 %v747
        %v878 = vpop.f32.mrf.mxu0
        %v879 = vadd.f32 0.0, %v878
        %v880 = vpop.f32.mrf.mxu0
        %v881 = vadd.f32 0.0, %v880
        %882 = vmatmul.bf16.gmra.mxu0 %v748
        %v883 = vpop.f32.mrf.mxu0
        %v884 = vadd.f32 0.0, %v883
        %v885 = vpop.f32.mrf.mxu0
        %v886 = vadd.f32 0.0, %v885
        %887 = vmatmul.bf16.gmra.mxu0 %v749
        %v888 = vpop.f32.mrf.mxu0
        %v889 = vadd.f32 0.0, %v888
        %v890 = vpop.f32.mrf.mxu0
        %v891 = vadd.f32 0.0, %v890
        %892 = vmatmul.bf16.gmra.mxu0 %v750
        %v893 = vpop.f32.mrf.mxu0
        %v894 = vadd.f32 0.0, %v893
        %v895 = vpop.f32.mrf.mxu0
        %v896 = vadd.f32 0.0, %v895
        %897 = vmatmul.bf16.gmra.mxu0 %v751
        %v898 = vpop.f32.mrf.mxu0
        %v899 = vadd.f32 0.0, %v898
        %v900 = vpop.f32.mrf.mxu0
        %v901 = vadd.f32 0.0, %v900
        %902 = vmatmul.bf16.gmra.mxu0 %v752
        %v903 = vpop.f32.mrf.mxu0
        %v904 = vadd.f32 0.0, %v903
        %v905 = vpop.f32.mrf.mxu0
        %v906 = vadd.f32 0.0, %v905
        %907 = vdwg.mxu0
        %908 = vmatpush.bf16.msra.mxu0 %v832
        %909 = vmatpush.bf16.msra.mxu0 %v830
        %910 = vmatpush.bf16.msra.mxu0 %v828
        %911 = vmatpush.bf16.msra.mxu0 %v826
        %912 = vmatpush.bf16.msra.mxu0 %v824
        %913 = vmatpush.bf16.msra.mxu0 %v822
        %914 = vmatpush.bf16.msra.mxu0 %v820
        %915 = vmatpush.bf16.msra.mxu0 %v818
        %916 = vmatmul.bf16.gmra.mxu0 %v743
        %v917 = vpop.f32.mrf.mxu0
        %v918 = vadd.f32 0.0, %v917
        %v919 = vpop.f32.mrf.mxu0
        %v920 = vadd.f32 0.0, %v919
        %921 = vmatmul.bf16.gmra.mxu0 %v744
        %v922 = vpop.f32.mrf.mxu0
        %v923 = vadd.f32 0.0, %v922
        %v924 = vpop.f32.mrf.mxu0
        %v925 = vadd.f32 0.0, %v924
        %926 = vmatmul.bf16.gmra.mxu0 %v745
        %v927 = vpop.f32.mrf.mxu0
        %v928 = vadd.f32 0.0, %v927
        %v929 = vpop.f32.mrf.mxu0
        %v930 = vadd.f32 0.0, %v929
        %931 = vmatmul.bf16.gmra.mxu0 %v746
        %v932 = vpop.f32.mrf.mxu0
        %v933 = vadd.f32 0.0, %v932
        %v934 = vpop.f32.mrf.mxu0
        %v935 = vadd.f32 0.0, %v934
        %936 = vmatmul.bf16.gmra.mxu0 %v747
        %v937 = vpop.f32.mrf.mxu0
        %v938 = vadd.f32 0.0, %v937
        %v939 = vpop.f32.mrf.mxu0
        %v940 = vadd.f32 0.0, %v939
        %941 = vmatmul.bf16.gmra.mxu0 %v748
        %v942 = vpop.f32.mrf.mxu0
        %v943 = vadd.f32 0.0, %v942
        %v944 = vpop.f32.mrf.mxu0
        %v945 = vadd.f32 0.0, %v944
        %946 = vmatmul.bf16.gmra.mxu0 %v749
        %v947 = vpop.f32.mrf.mxu0
        %v948 = vadd.f32 0.0, %v947
        %v949 = vpop.f32.mrf.mxu0
        %v950 = vadd.f32 0.0, %v949
        %951 = vmatmul.bf16.gmra.mxu0 %v750
        %v952 = vpop.f32.mrf.mxu0
        %v953 = vadd.f32 0.0, %v952
        %v954 = vpop.f32.mrf.mxu0
        %v955 = vadd.f32 0.0, %v954
        %956 = vmatmul.bf16.gmra.mxu0 %v751
        %v957 = vpop.f32.mrf.mxu0
        %v958 = vadd.f32 0.0, %v957
        %v959 = vpop.f32.mrf.mxu0
        %v960 = vadd.f32 0.0, %v959
        %961 = vmatmul.bf16.gmra.mxu0 %v752
        %v962 = vpop.f32.mrf.mxu0
        %v963 = vadd.f32 0.0, %v962
        %v964 = vpop.f32.mrf.mxu0
        %v965 = vadd.f32 0.0, %v964
        %966 = vdwg.mxu0
        %v987 = vunpack.c.l.b16 %v383
        %v988 = vunpack.c.l.b16 %v384
        %v989 = vunpack.c.l.b16 %v385
        %v990 = vunpack.c.l.b16 %v386
        %v991 = vunpack.c.l.b16 %v387
        %v992 = vunpack.c.l.b16 %v388
        %v993 = vunpack.c.l.b16 %v389
        %v994 = vunpack.c.l.b16 %v390
        %v995 = vunpack.c.l.b16 %v391
        %v996 = vunpack.c.l.b16 %v392
        %v997 = vunpack.c.l.b16 %v393
        %v998 = vunpack.c.l.b16 %v394
        %v999 = vunpack.c.l.b16 %v395
        %v1000 = vunpack.c.l.b16 %v396
        %v1001 = vunpack.c.l.b16 %v397
        %v1002 = vunpack.c.l.b16 %v398
        %v1003 = vunpack.c.l.b16 %v399
        %v1004 = vunpack.c.l.b16 %v400
        %v1005 = vunpack.c.l.b16 %v401
        %v1006 = vunpack.c.l.b16 %v402
        %v1007 = vpack.c.b16 %v988, %v987
        %v1008 = vpack.c.b16 %v990, %v989
        %v1009 = vpack.c.b16 %v992, %v991
        %v1010 = vpack.c.b16 %v994, %v993
        %v1011 = vpack.c.b16 %v996, %v995
        %v1012 = vpack.c.b16 %v998, %v997
        %v1013 = vpack.c.b16 %v1000, %v999
        %v1014 = vpack.c.b16 %v1002, %v1001
        %v1015 = vpack.c.b16 %v1004, %v1003
        %v1016 = vpack.c.b16 %v1006, %v1005
        %v1018 = vunpack.c.l.b16 %v691
        %v1019 = vunpack.c.h.b16 %v691
        %v1020 = vpack.c.b16 %v1018, %v1018
        %v1021 = vpack.c.b16 %v1019, %v1019
        %vm1022 = vcmask 48128
        %v1024 = vsel %vm1022, %v1007, 0
        %v1027 = vsel %vm1022, %v1008, 0
        %v1030 = vsel %vm1022, %v1009, 0
        %v1033 = vsel %vm1022, %v1010, 0
        %v1036 = vsel %vm1022, %v1011, 0
        %v1039 = vsel %vm1022, %v1012, 0
        %v1042 = vsel %vm1022, %v1013, 0
        %v1045 = vsel %vm1022, %v1014, 0
        %v1048 = vsel %vm1022, %v1015, 0
        %v1051 = vsel %vm1022, %v1016, 0
        %vm1053 = vcmask 1042432
        %v1055 = vsel %vm1053, %v1020, 0
        %v1058 = vsel %vm1053, %v1021, 0
        %1060 = vmatpush.bf16.msra.mxu0 0
        %1061 = vmatpush.bf16.msra.mxu0 0
        %1062 = vmatpush.bf16.msra.mxu0 0
        %1063 = vmatpush.bf16.msra.mxu0 0
        %1064 = vmatpush.bf16.msra.mxu0 0
        %1065 = vmatpush.bf16.msra.mxu0 0
        %1066 = vmatpush.bf16.msra.mxu0 0
        %1067 = vmatpush.bf16.msra.mxu0 %v1055
        %1068 = vmatmul.bf16.gmra.mxu0 %v1024
        %v1069 = vpop.f32.mrf.mxu0
        %v1070 = vadd.f32 %v859, %v1069
        %v1071 = vpop.f32.mrf.mxu0
        %v1072 = vadd.f32 %v861, %v1071
        %1073 = vmatmul.bf16.gmra.mxu0 %v1027
        %v1074 = vpop.f32.mrf.mxu0
        %v1075 = vadd.f32 %v864, %v1074
        %v1076 = vpop.f32.mrf.mxu0
        %v1077 = vadd.f32 %v866, %v1076
        %1078 = vmatmul.bf16.gmra.mxu0 %v1030
        %v1079 = vpop.f32.mrf.mxu0
        %v1080 = vadd.f32 %v869, %v1079
        %v1081 = vpop.f32.mrf.mxu0
        %v1082 = vadd.f32 %v871, %v1081
        %1083 = vmatmul.bf16.gmra.mxu0 %v1033
        %v1084 = vpop.f32.mrf.mxu0
        %v1085 = vadd.f32 %v874, %v1084
        %v1086 = vpop.f32.mrf.mxu0
        %v1087 = vadd.f32 %v876, %v1086
        %1088 = vmatmul.bf16.gmra.mxu0 %v1036
        %v1089 = vpop.f32.mrf.mxu0
        %v1090 = vadd.f32 %v879, %v1089
        %v1091 = vpop.f32.mrf.mxu0
        %v1092 = vadd.f32 %v881, %v1091
        %1093 = vmatmul.bf16.gmra.mxu0 %v1039
        %v1094 = vpop.f32.mrf.mxu0
        %v1095 = vadd.f32 %v884, %v1094
        %v1096 = vpop.f32.mrf.mxu0
        %v1097 = vadd.f32 %v886, %v1096
        %1098 = vmatmul.bf16.gmra.mxu0 %v1042
        %v1099 = vpop.f32.mrf.mxu0
        %v1100 = vadd.f32 %v889, %v1099
        %v1101 = vpop.f32.mrf.mxu0
        %v1102 = vadd.f32 %v891, %v1101
        %1103 = vmatmul.bf16.gmra.mxu0 %v1045
        %v1104 = vpop.f32.mrf.mxu0
        %v1105 = vadd.f32 %v894, %v1104
        %v1106 = vpop.f32.mrf.mxu0
        %v1107 = vadd.f32 %v896, %v1106
        %1108 = vmatmul.bf16.gmra.mxu0 %v1048
        %v1109 = vpop.f32.mrf.mxu0
        %v1110 = vadd.f32 %v899, %v1109
        %v1111 = vpop.f32.mrf.mxu0
        %v1112 = vadd.f32 %v901, %v1111
        %1113 = vmatmul.bf16.gmra.mxu0 %v1051
        %v1114 = vpop.f32.mrf.mxu0
        %v1115 = vadd.f32 %v904, %v1114
        %v1116 = vpop.f32.mrf.mxu0
        %v1117 = vadd.f32 %v906, %v1116
        %1118 = vdwg.mxu0
        %1119 = vmatpush.bf16.msra.mxu0 0
        %1120 = vmatpush.bf16.msra.mxu0 0
        %1121 = vmatpush.bf16.msra.mxu0 0
        %1122 = vmatpush.bf16.msra.mxu0 0
        %1123 = vmatpush.bf16.msra.mxu0 0
        %1124 = vmatpush.bf16.msra.mxu0 0
        %1125 = vmatpush.bf16.msra.mxu0 0
        %1126 = vmatpush.bf16.msra.mxu0 %v1058
        %1127 = vmatmul.bf16.gmra.mxu0 %v1024
        %v1128 = vpop.f32.mrf.mxu0
        %v1129 = vadd.f32 %v918, %v1128
        %v1130 = vpop.f32.mrf.mxu0
        %v1131 = vadd.f32 %v920, %v1130
        %1132 = vmatmul.bf16.gmra.mxu0 %v1027
        %v1133 = vpop.f32.mrf.mxu0
        %v1134 = vadd.f32 %v923, %v1133
        %v1135 = vpop.f32.mrf.mxu0
        %v1136 = vadd.f32 %v925, %v1135
        %1137 = vmatmul.bf16.gmra.mxu0 %v1030
        %v1138 = vpop.f32.mrf.mxu0
        %v1139 = vadd.f32 %v928, %v1138
        %v1140 = vpop.f32.mrf.mxu0
        %v1141 = vadd.f32 %v930, %v1140
        %1142 = vmatmul.bf16.gmra.mxu0 %v1033
        %v1143 = vpop.f32.mrf.mxu0
        %v1144 = vadd.f32 %v933, %v1143
        %v1145 = vpop.f32.mrf.mxu0
        %v1146 = vadd.f32 %v935, %v1145
        %1147 = vmatmul.bf16.gmra.mxu0 %v1036
        %v1148 = vpop.f32.mrf.mxu0
        %v1149 = vadd.f32 %v938, %v1148
        %v1150 = vpop.f32.mrf.mxu0
        %v1151 = vadd.f32 %v940, %v1150
        %1152 = vmatmul.bf16.gmra.mxu0 %v1039
        %v1153 = vpop.f32.mrf.mxu0
        %v1154 = vadd.f32 %v943, %v1153
        %v1155 = vpop.f32.mrf.mxu0
        %v1156 = vadd.f32 %v945, %v1155
        %1157 = vmatmul.bf16.gmra.mxu0 %v1042
        %v1158 = vpop.f32.mrf.mxu0
        %v1159 = vadd.f32 %v948, %v1158
        %v1160 = vpop.f32.mrf.mxu0
        %v1161 = vadd.f32 %v950, %v1160
        %1162 = vmatmul.bf16.gmra.mxu0 %v1045
        %v1163 = vpop.f32.mrf.mxu0
        %v1164 = vadd.f32 %v953, %v1163
        %v1165 = vpop.f32.mrf.mxu0
        %v1166 = vadd.f32 %v955, %v1165
        %1167 = vmatmul.bf16.gmra.mxu0 %v1048
        %v1168 = vpop.f32.mrf.mxu0
        %v1169 = vadd.f32 %v958, %v1168
        %v1170 = vpop.f32.mrf.mxu0
        %v1171 = vadd.f32 %v960, %v1170
        %1172 = vmatmul.bf16.gmra.mxu0 %v1051
        %v1173 = vpop.f32.mrf.mxu0
        %v1174 = vadd.f32 %v963, %v1173
        %v1175 = vpop.f32.mrf.mxu0
        %v1176 = vadd.f32 %v965, %v1175
        %1177 = vdwg.mxu0
        %s1178 = scalar_lea.vmem [#allocation2], 128
        %v1179 = vld [vmem:[%s1178] sm:$0xff]
        %v1180 = vld [vmem:[%s1178 + $0x8] sm:$0xff]
        %v1181 = vld [vmem:[%s1178 + $0x10] sm:$0xff]
        %v1182 = vld [vmem:[%s1178 + $0x18] sm:$0xff]
        %v1183 = vld [vmem:[%s1178 + $0x20] sm:$0xff]
        %v1184 = vld [vmem:[%s1178 + $0x28] sm:$0xff]
        %v1185 = vld [vmem:[%s1178 + $0x30] sm:$0xff]
        %v1186 = vld [vmem:[%s1178 + $0x38] sm:$0xff]
        %v1187 = vld [vmem:[%s1178 + $0x40] sm:$0xff]
        %v1188 = vld [vmem:[%s1178 + $0x48] sm:$0xff]
        %v1189 = vld [vmem:[%s1178 + $0x50] sm:$0xff]
        %v1190 = vld [vmem:[%s1178 + $0x58] sm:$0xff]
        %v1191 = vld [vmem:[%s1178 + $0x60] sm:$0xff]
        %v1192 = vld [vmem:[%s1178 + $0x68] sm:$0xff]
        %v1193 = vld [vmem:[%s1178 + $0x70] sm:$0xff]
        %v1194 = vld [vmem:[%s1178 + $0x78] sm:$0xff]
        %v1211 = vunpack.c.l.b16 %v1179
        %v1212 = vunpack.c.h.b16 %v1179
        %v1213 = vunpack.c.l.b16 %v1180
        %v1214 = vunpack.c.h.b16 %v1180
        %v1215 = vunpack.c.l.b16 %v1181
        %v1216 = vunpack.c.h.b16 %v1181
        %v1217 = vunpack.c.l.b16 %v1182
        %v1218 = vunpack.c.h.b16 %v1182
        %v1219 = vunpack.c.l.b16 %v1183
        %v1220 = vunpack.c.h.b16 %v1183
        %v1221 = vunpack.c.l.b16 %v1184
        %v1222 = vunpack.c.h.b16 %v1184
        %v1223 = vunpack.c.l.b16 %v1185
        %v1224 = vunpack.c.h.b16 %v1185
        %v1225 = vunpack.c.l.b16 %v1186
        %v1226 = vunpack.c.h.b16 %v1186
        %v1227 = vunpack.c.l.b16 %v1187
        %v1228 = vunpack.c.h.b16 %v1187
        %v1229 = vunpack.c.l.b16 %v1188
        %v1230 = vunpack.c.h.b16 %v1188
        %v1231 = vunpack.c.l.b16 %v1189
        %v1232 = vunpack.c.h.b16 %v1189
        %v1233 = vunpack.c.l.b16 %v1190
        %v1234 = vunpack.c.h.b16 %v1190
        %v1235 = vunpack.c.l.b16 %v1191
        %v1236 = vunpack.c.h.b16 %v1191
        %v1237 = vunpack.c.l.b16 %v1192
        %v1238 = vunpack.c.h.b16 %v1192
        %v1239 = vunpack.c.l.b16 %v1193
        %v1240 = vunpack.c.h.b16 %v1193
        %v1241 = vunpack.c.l.b16 %v1194
        %v1242 = vunpack.c.h.b16 %v1194
        %v1243 = vpack.c.b16 %v1213, %v1211
        %v1244 = vpack.c.b16 %v1214, %v1212
        %v1245 = vpack.c.b16 %v1217, %v1215
        %v1246 = vpack.c.b16 %v1218, %v1216
        %v1247 = vpack.c.b16 %v1221, %v1219
        %v1248 = vpack.c.b16 %v1222, %v1220
        %v1249 = vpack.c.b16 %v1225, %v1223
        %v1250 = vpack.c.b16 %v1226, %v1224
        %v1251 = vpack.c.b16 %v1229, %v1227
        %v1252 = vpack.c.b16 %v1230, %v1228
        %v1253 = vpack.c.b16 %v1233, %v1231
        %v1254 = vpack.c.b16 %v1234, %v1232
        %v1255 = vpack.c.b16 %v1237, %v1235
        %v1256 = vpack.c.b16 %v1238, %v1236
        %v1257 = vpack.c.b16 %v1241, %v1239
        %v1258 = vpack.c.b16 %v1242, %v1240
        %1275 = vmatpush.bf16.msra.mxu0 %v1257
        %1276 = vmatpush.bf16.msra.mxu0 %v1255
        %1277 = vmatpush.bf16.msra.mxu0 %v1253
        %1278 = vmatpush.bf16.msra.mxu0 %v1251
        %1279 = vmatpush.bf16.msra.mxu0 %v1249
        %1280 = vmatpush.bf16.msra.mxu0 %v1247
        %1281 = vmatpush.bf16.msra.mxu0 %v1245
        %1282 = vmatpush.bf16.msra.mxu0 %v1243
        %1283 = vmatmul.bf16.gmra.mxu0 %v692
        %v1284 = vpop.f32.mrf.mxu0
        %v1285 = vadd.f32 0.0, %v1284
        %v1286 = vpop.f32.mrf.mxu0
        %v1287 = vadd.f32 0.0, %v1286
        %1288 = vmatmul.bf16.gmra.mxu0 %v693
        %v1289 = vpop.f32.mrf.mxu0
        %v1290 = vadd.f32 0.0, %v1289
        %v1291 = vpop.f32.mrf.mxu0
        %v1292 = vadd.f32 0.0, %v1291
        %1293 = vmatmul.bf16.gmra.mxu0 %v694
        %v1294 = vpop.f32.mrf.mxu0
        %v1295 = vadd.f32 0.0, %v1294
        %v1296 = vpop.f32.mrf.mxu0
        %v1297 = vadd.f32 0.0, %v1296
        %1298 = vmatmul.bf16.gmra.mxu0 %v695
        %v1299 = vpop.f32.mrf.mxu0
        %v1300 = vadd.f32 0.0, %v1299
        %v1301 = vpop.f32.mrf.mxu0
        %v1302 = vadd.f32 0.0, %v1301
        %1303 = vmatmul.bf16.gmra.mxu0 %v696
        %v1304 = vpop.f32.mrf.mxu0
        %v1305 = vadd.f32 0.0, %v1304
        %v1306 = vpop.f32.mrf.mxu0
        %v1307 = vadd.f32 0.0, %v1306
        %1308 = vmatmul.bf16.gmra.mxu0 %v697
        %v1309 = vpop.f32.mrf.mxu0
        %v1310 = vadd.f32 0.0, %v1309
        %v1311 = vpop.f32.mrf.mxu0
        %v1312 = vadd.f32 0.0, %v1311
        %1313 = vmatmul.bf16.gmra.mxu0 %v698
        %v1314 = vpop.f32.mrf.mxu0
        %v1315 = vadd.f32 0.0, %v1314
        %v1316 = vpop.f32.mrf.mxu0
        %v1317 = vadd.f32 0.0, %v1316
        %1318 = vmatmul.bf16.gmra.mxu0 %v699
        %v1319 = vpop.f32.mrf.mxu0
        %v1320 = vadd.f32 0.0, %v1319
        %v1321 = vpop.f32.mrf.mxu0
        %v1322 = vadd.f32 0.0, %v1321
        %1323 = vmatmul.bf16.gmra.mxu0 %v700
        %v1324 = vpop.f32.mrf.mxu0
        %v1325 = vadd.f32 0.0, %v1324
        %v1326 = vpop.f32.mrf.mxu0
        %v1327 = vadd.f32 0.0, %v1326
        %1328 = vmatmul.bf16.gmra.mxu0 %v701
        %v1329 = vpop.f32.mrf.mxu0
        %v1330 = vadd.f32 0.0, %v1329
        %v1331 = vpop.f32.mrf.mxu0
        %v1332 = vadd.f32 0.0, %v1331
        %1333 = vdwg.mxu0
        %1334 = vmatpush.bf16.msra.mxu0 %v1258
        %1335 = vmatpush.bf16.msra.mxu0 %v1256
        %1336 = vmatpush.bf16.msra.mxu0 %v1254
        %1337 = vmatpush.bf16.msra.mxu0 %v1252
        %1338 = vmatpush.bf16.msra.mxu0 %v1250
        %1339 = vmatpush.bf16.msra.mxu0 %v1248
        %1340 = vmatpush.bf16.msra.mxu0 %v1246
        %1341 = vmatpush.bf16.msra.mxu0 %v1244
        %1342 = vmatmul.bf16.gmra.mxu0 %v692
        %v1343 = vpop.f32.mrf.mxu0
        %v1344 = vadd.f32 0.0, %v1343
        %v1345 = vpop.f32.mrf.mxu0
        %v1346 = vadd.f32 0.0, %v1345
        %1347 = vmatmul.bf16.gmra.mxu0 %v693
        %v1348 = vpop.f32.mrf.mxu0
        %v1349 = vadd.f32 0.0, %v1348
        %v1350 = vpop.f32.mrf.mxu0
        %v1351 = vadd.f32 0.0, %v1350
        %1352 = vmatmul.bf16.gmra.mxu0 %v694
        %v1353 = vpop.f32.mrf.mxu0
        %v1354 = vadd.f32 0.0, %v1353
        %v1355 = vpop.f32.mrf.mxu0
        %v1356 = vadd.f32 0.0, %v1355
        %1357 = vmatmul.bf16.gmra.mxu0 %v695
        %v1358 = vpop.f32.mrf.mxu0
        %v1359 = vadd.f32 0.0, %v1358
        %v1360 = vpop.f32.mrf.mxu0
        %v1361 = vadd.f32 0.0, %v1360
        %1362 = vmatmul.bf16.gmra.mxu0 %v696
        %v1363 = vpop.f32.mrf.mxu0
        %v1364 = vadd.f32 0.0, %v1363
        %v1365 = vpop.f32.mrf.mxu0
        %v1366 = vadd.f32 0.0, %v1365
        %1367 = vmatmul.bf16.gmra.mxu0 %v697
        %v1368 = vpop.f32.mrf.mxu0
        %v1369 = vadd.f32 0.0, %v1368
        %v1370 = vpop.f32.mrf.mxu0
        %v1371 = vadd.f32 0.0, %v1370
        %1372 = vmatmul.bf16.gmra.mxu0 %v698
        %v1373 = vpop.f32.mrf.mxu0
        %v1374 = vadd.f32 0.0, %v1373
        %v1375 = vpop.f32.mrf.mxu0
        %v1376 = vadd.f32 0.0, %v1375
        %1377 = vmatmul.bf16.gmra.mxu0 %v699
        %v1378 = vpop.f32.mrf.mxu0
        %v1379 = vadd.f32 0.0, %v1378
        %v1380 = vpop.f32.mrf.mxu0
        %v1381 = vadd.f32 0.0, %v1380
        %1382 = vmatmul.bf16.gmra.mxu0 %v700
        %v1383 = vpop.f32.mrf.mxu0
        %v1384 = vadd.f32 0.0, %v1383
        %v1385 = vpop.f32.mrf.mxu0
        %v1386 = vadd.f32 0.0, %v1385
        %1387 = vmatmul.bf16.gmra.mxu0 %v701
        %v1388 = vpop.f32.mrf.mxu0
        %v1389 = vadd.f32 0.0, %v1388
        %v1390 = vpop.f32.mrf.mxu0
        %v1391 = vadd.f32 0.0, %v1390
        %1392 = vdwg.mxu0
        %v1393 = vadd.f32 %v1070, %v1285
        %v1394 = vadd.f32 %v1129, %v1344
        %v1395 = vadd.f32 %v1072, %v1287
        %v1396 = vadd.f32 %v1131, %v1346
        %v1397 = vadd.f32 %v1075, %v1290
        %v1398 = vadd.f32 %v1134, %v1349
        %v1399 = vadd.f32 %v1077, %v1292
        %v1400 = vadd.f32 %v1136, %v1351
        %v1401 = vadd.f32 %v1080, %v1295
        %v1402 = vadd.f32 %v1139, %v1354
        %v1403 = vadd.f32 %v1082, %v1297
        %v1404 = vadd.f32 %v1141, %v1356
        %v1405 = vadd.f32 %v1085, %v1300
        %v1406 = vadd.f32 %v1144, %v1359
        %v1407 = vadd.f32 %v1087, %v1302
        %v1408 = vadd.f32 %v1146, %v1361
        %v1409 = vadd.f32 %v1090, %v1305
        %v1410 = vadd.f32 %v1149, %v1364
        %v1411 = vadd.f32 %v1092, %v1307
        %v1412 = vadd.f32 %v1151, %v1366
        %v1413 = vadd.f32 %v1095, %v1310
        %v1414 = vadd.f32 %v1154, %v1369
        %v1415 = vadd.f32 %v1097, %v1312
        %v1416 = vadd.f32 %v1156, %v1371
        %v1417 = vadd.f32 %v1100, %v1315
        %v1418 = vadd.f32 %v1159, %v1374
        %v1419 = vadd.f32 %v1102, %v1317
        %v1420 = vadd.f32 %v1161, %v1376
        %v1421 = vadd.f32 %v1105, %v1320
        %v1422 = vadd.f32 %v1164, %v1379
        %v1423 = vadd.f32 %v1107, %v1322
        %v1424 = vadd.f32 %v1166, %v1381
        %v1425 = vadd.f32 %v1110, %v1325
        %v1426 = vadd.f32 %v1169, %v1384
        %v1427 = vadd.f32 %v1112, %v1327
        %v1428 = vadd.f32 %v1171, %v1386
        %v1429 = vadd.f32 %v1115, %v1330
        %v1430 = vadd.f32 %v1174, %v1389
        %v1431 = vadd.f32 %v1117, %v1332
        %v1432 = vadd.f32 %v1176, %v1391
        %v1433 = vrot.slane %v642, 1
        %v1434 = vrot.slane %v644, 1
        %v1435 = vrot.slane %v647, 1
        %v1436 = vrot.slane %v649, 1
        %v1437 = vrot.slane %v652, 1
        %v1438 = vrot.slane %v654, 1
        %v1439 = vrot.slane %v657, 1
        %v1440 = vrot.slane %v659, 1
        %v1441 = vrot.slane %v662, 1
        %v1442 = vrot.slane %v664, 1
        %v1443 = vrot.slane %v667, 1
        %v1444 = vrot.slane %v669, 1
        %v1445 = vrot.slane %v672, 1
        %v1446 = vrot.slane %v674, 1
        %v1447 = vrot.slane %v677, 1
        %v1448 = vrot.slane %v679, 1
        %v1449 = vrot.slane %v682, 1
        %v1450 = vrot.slane %v684, 1
        %v1451 = vrot.slane %v687, 1
        %v1452 = vrot.slane %v689, 1
        %vm1453 = vcmp.lt.s32.totalorder %v404, 7
        %v1454 = vsel %vm1453, %v1451, %v1452
        %v1455 = vsel %vm1453, %v1450, %v1451
        %v1456 = vsel %vm1453, %v1449, %v1450
        %v1457 = vsel %vm1453, %v1448, %v1449
        %v1458 = vsel %vm1453, %v1447, %v1448
        %v1459 = vsel %vm1453, %v1446, %v1447
        %v1460 = vsel %vm1453, %v1445, %v1446
        %v1461 = vsel %vm1453, %v1444, %v1445
        %v1462 = vsel %vm1453, %v1443, %v1444
        %v1463 = vsel %vm1453, %v1442, %v1443
        %v1464 = vsel %vm1453, %v1441, %v1442
        %v1465 = vsel %vm1453, %v1440, %v1441
        %v1466 = vsel %vm1453, %v1439, %v1440
        %v1467 = vsel %vm1453, %v1438, %v1439
        %v1468 = vsel %vm1453, %v1437, %v1438
        %v1469 = vsel %vm1453, %v1436, %v1437
        %v1470 = vsel %vm1453, %v1435, %v1436
        %v1471 = vsel %vm1453, %v1434, %v1435
        %v1472 = vsel %vm1453, %v1433, %v1434
        %v1473 = vsel %vm1453, %v1452, %v1433
        %v1474 = vpack.c.bf16 %v1471, %v1472
        %v1475 = vpack.c.bf16 %v1469, %v1470
        %v1476 = vpack.c.bf16 %v1467, %v1468
        %v1477 = vpack.c.bf16 %v1465, %v1466
        %v1478 = vpack.c.bf16 %v1463, %v1464
        %v1479 = vpack.c.bf16 %v1461, %v1462
        %v1480 = vpack.c.bf16 %v1459, %v1460
        %v1481 = vpack.c.bf16 %v1457, %v1458
        %v1482 = vpack.c.bf16 %v1455, %v1456
        %v1483 = vpack.c.bf16 %v1473, %v1454
        %s1484 = scalar_lea.vmem [#allocation2], 256
        %v1485 = vld [vmem:[%s1484] sm:$0xff]
        %v1486 = vld [vmem:[%s1484 + $0x8] sm:$0xff]
        %v1487 = vld [vmem:[%s1484 + $0x10] sm:$0xff]
        %v1488 = vld [vmem:[%s1484 + $0x18] sm:$0xff]
        %v1489 = vld [vmem:[%s1484 + $0x20] sm:$0xff]
        %v1490 = vld [vmem:[%s1484 + $0x28] sm:$0xff]
        %v1491 = vld [vmem:[%s1484 + $0x30] sm:$0xff]
        %v1492 = vld [vmem:[%s1484 + $0x38] sm:$0xff]
        %v1493 = vld [vmem:[%s1484 + $0x40] sm:$0xff]
        %v1494 = vld [vmem:[%s1484 + $0x48] sm:$0xff]
        %v1495 = vld [vmem:[%s1484 + $0x50] sm:$0xff]
        %v1496 = vld [vmem:[%s1484 + $0x58] sm:$0xff]
        %v1497 = vld [vmem:[%s1484 + $0x60] sm:$0xff]
        %v1498 = vld [vmem:[%s1484 + $0x68] sm:$0xff]
        %v1499 = vld [vmem:[%s1484 + $0x70] sm:$0xff]
        %v1500 = vld [vmem:[%s1484 + $0x78] sm:$0xff]
        %v1517 = vunpack.c.l.b16 %v1485
        %v1518 = vunpack.c.h.b16 %v1485
        %v1519 = vunpack.c.l.b16 %v1486
        %v1520 = vunpack.c.h.b16 %v1486
        %v1521 = vunpack.c.l.b16 %v1487
        %v1522 = vunpack.c.h.b16 %v1487
        %v1523 = vunpack.c.l.b16 %v1488
        %v1524 = vunpack.c.h.b16 %v1488
        %v1525 = vunpack.c.l.b16 %v1489
        %v1526 = vunpack.c.h.b16 %v1489
        %v1527 = vunpack.c.l.b16 %v1490
        %v1528 = vunpack.c.h.b16 %v1490
        %v1529 = vunpack.c.l.b16 %v1491
        %v1530 = vunpack.c.h.b16 %v1491
        %v1531 = vunpack.c.l.b16 %v1492
        %v1532 = vunpack.c.h.b16 %v1492
        %v1533 = vunpack.c.l.b16 %v1493
        %v1534 = vunpack.c.h.b16 %v1493
        %v1535 = vunpack.c.l.b16 %v1494
        %v1536 = vunpack.c.h.b16 %v1494
        %v1537 = vunpack.c.l.b16 %v1495
        %v1538 = vunpack.c.h.b16 %v1495
        %v1539 = vunpack.c.l.b16 %v1496
        %v1540 = vunpack.c.h.b16 %v1496
        %v1541 = vunpack.c.l.b16 %v1497
        %v1542 = vunpack.c.h.b16 %v1497
        %v1543 = vunpack.c.l.b16 %v1498
        %v1544 = vunpack.c.h.b16 %v1498
        %v1545 = vunpack.c.l.b16 %v1499
        %v1546 = vunpack.c.h.b16 %v1499
        %v1547 = vunpack.c.l.b16 %v1500
        %v1548 = vunpack.c.h.b16 %v1500
        %v1549 = vpack.c.b16 %v1519, %v1517
        %v1550 = vpack.c.b16 %v1520, %v1518
        %v1551 = vpack.c.b16 %v1523, %v1521
        %v1552 = vpack.c.b16 %v1524, %v1522
        %v1553 = vpack.c.b16 %v1527, %v1525
        %v1554 = vpack.c.b16 %v1528, %v1526
        %v1555 = vpack.c.b16 %v1531, %v1529
        %v1556 = vpack.c.b16 %v1532, %v1530
        %v1557 = vpack.c.b16 %v1535, %v1533
        %v1558 = vpack.c.b16 %v1536, %v1534
        %v1559 = vpack.c.b16 %v1539, %v1537
        %v1560 = vpack.c.b16 %v1540, %v1538
        %v1561 = vpack.c.b16 %v1543, %v1541
        %v1562 = vpack.c.b16 %v1544, %v1542
        %v1563 = vpack.c.b16 %v1547, %v1545
        %v1564 = vpack.c.b16 %v1548, %v1546
        %1581 = vmatpush.bf16.msra.mxu0 %v1563
        %1582 = vmatpush.bf16.msra.mxu0 %v1561
        %1583 = vmatpush.bf16.msra.mxu0 %v1559
        %1584 = vmatpush.bf16.msra.mxu0 %v1557
        %1585 = vmatpush.bf16.msra.mxu0 %v1555
        %1586 = vmatpush.bf16.msra.mxu0 %v1553
        %1587 = vmatpush.bf16.msra.mxu0 %v1551
        %1588 = vmatpush.bf16.msra.mxu0 %v1549
        %1589 = vmatmul.bf16.gmra.mxu0 %v1474
        %v1590 = vpop.f32.mrf.mxu0
        %v1591 = vadd.f32 0.0, %v1590
        %v1592 = vpop.f32.mrf.mxu0
        %v1593 = vadd.f32 0.0, %v1592
        %1594 = vmatmul.bf16.gmra.mxu0 %v1475
        %v1595 = vpop.f32.mrf.mxu0
        %v1596 = vadd.f32 0.0, %v1595
        %v1597 = vpop.f32.mrf.mxu0
        %v1598 = vadd.f32 0.0, %v1597
        %1599 = vmatmul.bf16.gmra.mxu0 %v1476
        %v1600 = vpop.f32.mrf.mxu0
        %v1601 = vadd.f32 0.0, %v1600
        %v1602 = vpop.f32.mrf.mxu0
        %v1603 = vadd.f32 0.0, %v1602
        %1604 = vmatmul.bf16.gmra.mxu0 %v1477
        %v1605 = vpop.f32.mrf.mxu0
        %v1606 = vadd.f32 0.0, %v1605
        %v1607 = vpop.f32.mrf.mxu0
        %v1608 = vadd.f32 0.0, %v1607
        %1609 = vmatmul.bf16.gmra.mxu0 %v1478
        %v1610 = vpop.f32.mrf.mxu0
        %v1611 = vadd.f32 0.0, %v1610
        %v1612 = vpop.f32.mrf.mxu0
        %v1613 = vadd.f32 0.0, %v1612
        %1614 = vmatmul.bf16.gmra.mxu0 %v1479
        %v1615 = vpop.f32.mrf.mxu0
        %v1616 = vadd.f32 0.0, %v1615
        %v1617 = vpop.f32.mrf.mxu0
        %v1618 = vadd.f32 0.0, %v1617
        %1619 = vmatmul.bf16.gmra.mxu0 %v1480
        %v1620 = vpop.f32.mrf.mxu0
        %v1621 = vadd.f32 0.0, %v1620
        %v1622 = vpop.f32.mrf.mxu0
        %v1623 = vadd.f32 0.0, %v1622
        %1624 = vmatmul.bf16.gmra.mxu0 %v1481
        %v1625 = vpop.f32.mrf.mxu0
        %v1626 = vadd.f32 0.0, %v1625
        %v1627 = vpop.f32.mrf.mxu0
        %v1628 = vadd.f32 0.0, %v1627
        %1629 = vmatmul.bf16.gmra.mxu0 %v1482
        %v1630 = vpop.f32.mrf.mxu0
        %v1631 = vadd.f32 0.0, %v1630
        %v1632 = vpop.f32.mrf.mxu0
        %v1633 = vadd.f32 0.0, %v1632
        %1634 = vmatmul.bf16.gmra.mxu0 %v1483
        %v1635 = vpop.f32.mrf.mxu0
        %v1636 = vadd.f32 0.0, %v1635
        %v1637 = vpop.f32.mrf.mxu0
        %v1638 = vadd.f32 0.0, %v1637
        %1639 = vdwg.mxu0
        %1640 = vmatpush.bf16.msra.mxu0 %v1564
        %1641 = vmatpush.bf16.msra.mxu0 %v1562
        %1642 = vmatpush.bf16.msra.mxu0 %v1560
        %1643 = vmatpush.bf16.msra.mxu0 %v1558
        %1644 = vmatpush.bf16.msra.mxu0 %v1556
        %1645 = vmatpush.bf16.msra.mxu0 %v1554
        %1646 = vmatpush.bf16.msra.mxu0 %v1552
        %1647 = vmatpush.bf16.msra.mxu0 %v1550
        %1648 = vmatmul.bf16.gmra.mxu0 %v1474
        %v1649 = vpop.f32.mrf.mxu0
        %v1650 = vadd.f32 0.0, %v1649
        %v1651 = vpop.f32.mrf.mxu0
        %v1652 = vadd.f32 0.0, %v1651
        %1653 = vmatmul.bf16.gmra.mxu0 %v1475
        %v1654 = vpop.f32.mrf.mxu0
        %v1655 = vadd.f32 0.0, %v1654
        %v1656 = vpop.f32.mrf.mxu0
        %v1657 = vadd.f32 0.0, %v1656
        %1658 = vmatmul.bf16.gmra.mxu0 %v1476
        %v1659 = vpop.f32.mrf.mxu0
        %v1660 = vadd.f32 0.0, %v1659
        %v1661 = vpop.f32.mrf.mxu0
        %v1662 = vadd.f32 0.0, %v1661
        %1663 = vmatmul.bf16.gmra.mxu0 %v1477
        %v1664 = vpop.f32.mrf.mxu0
        %v1665 = vadd.f32 0.0, %v1664
        %v1666 = vpop.f32.mrf.mxu0
        %v1667 = vadd.f32 0.0, %v1666
        %1668 = vmatmul.bf16.gmra.mxu0 %v1478
        %v1669 = vpop.f32.mrf.mxu0
        %v1670 = vadd.f32 0.0, %v1669
        %v1671 = vpop.f32.mrf.mxu0
        %v1672 = vadd.f32 0.0, %v1671
        %1673 = vmatmul.bf16.gmra.mxu0 %v1479
        %v1674 = vpop.f32.mrf.mxu0
        %v1675 = vadd.f32 0.0, %v1674
        %v1676 = vpop.f32.mrf.mxu0
        %v1677 = vadd.f32 0.0, %v1676
        %1678 = vmatmul.bf16.gmra.mxu0 %v1480
        %v1679 = vpop.f32.mrf.mxu0
        %v1680 = vadd.f32 0.0, %v1679
        %v1681 = vpop.f32.mrf.mxu0
        %v1682 = vadd.f32 0.0, %v1681
        %1683 = vmatmul.bf16.gmra.mxu0 %v1481
        %v1684 = vpop.f32.mrf.mxu0
        %v1685 = vadd.f32 0.0, %v1684
        %v1686 = vpop.f32.mrf.mxu0
        %v1687 = vadd.f32 0.0, %v1686
        %1688 = vmatmul.bf16.gmra.mxu0 %v1482
        %v1689 = vpop.f32.mrf.mxu0
        %v1690 = vadd.f32 0.0, %v1689
        %v1691 = vpop.f32.mrf.mxu0
        %v1692 = vadd.f32 0.0, %v1691
        %1693 = vmatmul.bf16.gmra.mxu0 %v1483
        %v1694 = vpop.f32.mrf.mxu0
        %v1695 = vadd.f32 0.0, %v1694
        %v1696 = vpop.f32.mrf.mxu0
        %v1697 = vadd.f32 0.0, %v1696
        %1698 = vdwg.mxu0
        %v1699 = vadd.f32 %v1393, %v1591
        %v1700 = vadd.f32 %v1394, %v1650
        %v1701 = vadd.f32 %v1395, %v1593
        %v1702 = vadd.f32 %v1396, %v1652
        %v1703 = vadd.f32 %v1397, %v1596
        %v1704 = vadd.f32 %v1398, %v1655
        %v1705 = vadd.f32 %v1399, %v1598
        %v1706 = vadd.f32 %v1400, %v1657
        %v1707 = vadd.f32 %v1401, %v1601
        %v1708 = vadd.f32 %v1402, %v1660
        %v1709 = vadd.f32 %v1403, %v1603
        %v1710 = vadd.f32 %v1404, %v1662
        %v1711 = vadd.f32 %v1405, %v1606
        %v1712 = vadd.f32 %v1406, %v1665
        %v1713 = vadd.f32 %v1407, %v1608
        %v1714 = vadd.f32 %v1408, %v1667
        %v1715 = vadd.f32 %v1409, %v1611
        %v1716 = vadd.f32 %v1410, %v1670
        %v1717 = vadd.f32 %v1411, %v1613
        %v1718 = vadd.f32 %v1412, %v1672
        %v1719 = vadd.f32 %v1413, %v1616
        %v1720 = vadd.f32 %v1414, %v1675
        %v1721 = vadd.f32 %v1415, %v1618
        %v1722 = vadd.f32 %v1416, %v1677
        %v1723 = vadd.f32 %v1417, %v1621
        %v1724 = vadd.f32 %v1418, %v1680
        %v1725 = vadd.f32 %v1419, %v1623
        %v1726 = vadd.f32 %v1420, %v1682
        %v1727 = vadd.f32 %v1421, %v1626
        %v1728 = vadd.f32 %v1422, %v1685
        %v1729 = vadd.f32 %v1423, %v1628
        %v1730 = vadd.f32 %v1424, %v1687
        %v1731 = vadd.f32 %v1425, %v1631
        %v1732 = vadd.f32 %v1426, %v1690
        %v1733 = vadd.f32 %v1427, %v1633
        %v1734 = vadd.f32 %v1428, %v1692
        %v1735 = vadd.f32 %v1429, %v1636
        %v1736 = vadd.f32 %v1430, %v1695
        %v1737 = vadd.f32 %v1431, %v1638
        %v1738 = vadd.f32 %v1432, %v1697
        %v1739 = vtanh.pop %v1699
        %v1740 = vtanh.pop %v1701
        %v1741 = vtanh.pop %v1703
        %v1742 = vtanh.pop %v1705
        %v1743 = vtanh.pop %v1707
        %v1744 = vtanh.pop %v1709
        %v1745 = vtanh.pop %v1711
        %v1746 = vtanh.pop %v1713
        %v1747 = vtanh.pop %v1715
        %v1748 = vtanh.pop %v1717
        %v1749 = vtanh.pop %v1719
        %v1750 = vtanh.pop %v1721
        %v1751 = vtanh.pop %v1723
        %v1752 = vtanh.pop %v1725
        %v1753 = vtanh.pop %v1727
        %v1754 = vtanh.pop %v1729
        %v1755 = vtanh.pop %v1731
        %v1756 = vtanh.pop %v1733
        %v1757 = vtanh.pop %v1735
        %v1758 = vtanh.pop %v1737
        %v1759 = vsub.f32 0.0, %v1700
        %v1760 = vsub.f32 0.0, %v1702
        %v1761 = vsub.f32 0.0, %v1704
        %v1762 = vsub.f32 0.0, %v1706
        %v1763 = vsub.f32 0.0, %v1708
        %v1764 = vsub.f32 0.0, %v1710
        %v1765 = vsub.f32 0.0, %v1712
        %v1766 = vsub.f32 0.0, %v1714
        %v1767 = vsub.f32 0.0, %v1716
        %v1768 = vsub.f32 0.0, %v1718
        %v1769 = vsub.f32 0.0, %v1720
        %v1770 = vsub.f32 0.0, %v1722
        %v1771 = vsub.f32 0.0, %v1724
        %v1772 = vsub.f32 0.0, %v1726
        %v1773 = vsub.f32 0.0, %v1728
        %v1774 = vsub.f32 0.0, %v1730
        %v1775 = vsub.f32 0.0, %v1732
        %v1776 = vsub.f32 0.0, %v1734
        %v1777 = vsub.f32 0.0, %v1736
        %v1778 = vsub.f32 0.0, %v1738
        %v1779 = vmul.f32 %v1759, 1.442695
        %v1780 = vpow.pop %v1779
        %v1781 = vmul.f32 %v1760, 1.442695
        %v1782 = vpow.pop %v1781
        %v1783 = vmul.f32 %v1761, 1.442695
        %v1784 = vpow.pop %v1783
        %v1785 = vmul.f32 %v1762, 1.442695
        %v1786 = vpow.pop %v1785
        %v1787 = vmul.f32 %v1763, 1.442695
        %v1788 = vpow.pop %v1787
        %v1789 = vmul.f32 %v1764, 1.442695
        %v1790 = vpow.pop %v1789
        %v1791 = vmul.f32 %v1765, 1.442695
        %v1792 = vpow.pop %v1791
        %v1793 = vmul.f32 %v1766, 1.442695
        %v1794 = vpow.pop %v1793
        %v1795 = vmul.f32 %v1767, 1.442695
        %v1796 = vpow.pop %v1795
        %v1797 = vmul.f32 %v1768, 1.442695
        %v1798 = vpow.pop %v1797
        %v1799 = vmul.f32 %v1769, 1.442695
        %v1800 = vpow.pop %v1799
        %v1801 = vmul.f32 %v1770, 1.442695
        %v1802 = vpow.pop %v1801
        %v1803 = vmul.f32 %v1771, 1.442695
        %v1804 = vpow.pop %v1803
        %v1805 = vmul.f32 %v1772, 1.442695
        %v1806 = vpow.pop %v1805
        %v1807 = vmul.f32 %v1773, 1.442695
        %v1808 = vpow.pop %v1807
        %v1809 = vmul.f32 %v1774, 1.442695
        %v1810 = vpow.pop %v1809
        %v1811 = vmul.f32 %v1775, 1.442695
        %v1812 = vpow.pop %v1811
        %v1813 = vmul.f32 %v1776, 1.442695
        %v1814 = vpow.pop %v1813
        %v1815 = vmul.f32 %v1777, 1.442695
        %v1816 = vpow.pop %v1815
        %v1817 = vmul.f32 %v1778, 1.442695
        %v1818 = vpow.pop %v1817
        %v1819 = vadd.f32 %v1780, 1.0
        %v1820 = vadd.f32 %v1782, 1.0
        %v1821 = vadd.f32 %v1784, 1.0
        %v1822 = vadd.f32 %v1786, 1.0
        %v1823 = vadd.f32 %v1788, 1.0
        %v1824 = vadd.f32 %v1790, 1.0
        %v1825 = vadd.f32 %v1792, 1.0
        %v1826 = vadd.f32 %v1794, 1.0
        %v1827 = vadd.f32 %v1796, 1.0
        %v1828 = vadd.f32 %v1798, 1.0
        %v1829 = vadd.f32 %v1800, 1.0
        %v1830 = vadd.f32 %v1802, 1.0
        %v1831 = vadd.f32 %v1804, 1.0
        %v1832 = vadd.f32 %v1806, 1.0
        %v1833 = vadd.f32 %v1808, 1.0
        %v1834 = vadd.f32 %v1810, 1.0
        %v1835 = vadd.f32 %v1812, 1.0
        %v1836 = vadd.f32 %v1814, 1.0
        %v1837 = vadd.f32 %v1816, 1.0
        %v1838 = vadd.f32 %v1818, 1.0
        %v1839 = vrcp.pop %v1819
        %v1840 = vrcp.pop %v1820
        %v1841 = vrcp.pop %v1821
        %v1842 = vrcp.pop %v1822
        %v1843 = vrcp.pop %v1823
        %v1844 = vrcp.pop %v1824
        %v1845 = vrcp.pop %v1825
        %v1846 = vrcp.pop %v1826
        %v1847 = vrcp.pop %v1827
        %v1848 = vrcp.pop %v1828
        %v1849 = vrcp.pop %v1829
        %v1850 = vrcp.pop %v1830
        %v1851 = vrcp.pop %v1831
        %v1852 = vrcp.pop %v1832
        %v1853 = vrcp.pop %v1833
        %v1854 = vrcp.pop %v1834
        %v1855 = vrcp.pop %v1835
        %v1856 = vrcp.pop %v1836
        %v1857 = vrcp.pop %v1837
        %v1858 = vrcp.pop %v1838
        %v1859 = vmul.f32 %v1739, %v1839
        %v1860 = vmul.f32 %v1740, %v1840
        %v1861 = vmul.f32 %v1741, %v1841
        %v1862 = vmul.f32 %v1742, %v1842
        %v1863 = vmul.f32 %v1743, %v1843
        %v1864 = vmul.f32 %v1744, %v1844
        %v1865 = vmul.f32 %v1745, %v1845
        %v1866 = vmul.f32 %v1746, %v1846
        %v1867 = vmul.f32 %v1747, %v1847
        %v1868 = vmul.f32 %v1748, %v1848
        %v1869 = vmul.f32 %v1749, %v1849
        %v1870 = vmul.f32 %v1750, %v1850
        %v1871 = vmul.f32 %v1751, %v1851
        %v1872 = vmul.f32 %v1752, %v1852
        %v1873 = vmul.f32 %v1753, %v1853
        %v1874 = vmul.f32 %v1754, %v1854
        %v1875 = vmul.f32 %v1755, %v1855
        %v1876 = vmul.f32 %v1756, %v1856
        %v1877 = vmul.f32 %v1757, %v1857
        %v1878 = vmul.f32 %v1758, %v1858
        %v1879 = vmul.f32 %v1859, %v526
        %v1880 = vmul.f32 %v1860, %v527
        %v1881 = vmul.f32 %v1861, %v528
        %v1882 = vmul.f32 %v1862, %v529
        %v1883 = vmul.f32 %v1863, %v530
        %v1884 = vmul.f32 %v1864, %v531
        %v1885 = vmul.f32 %v1865, %v532
        %v1886 = vmul.f32 %v1866, %v533
        %v1887 = vmul.f32 %v1867, %v534
        %v1888 = vmul.f32 %v1868, %v535
        %v1889 = vmul.f32 %v1869, %v536
        %v1890 = vmul.f32 %v1870, %v537
        %v1891 = vmul.f32 %v1871, %v538
        %v1892 = vmul.f32 %v1872, %v539
        %v1893 = vmul.f32 %v1873, %v540
        %v1894 = vmul.f32 %v1874, %v541
        %v1895 = vmul.f32 %v1875, %v542
        %v1896 = vmul.f32 %v1876, %v543
        %v1897 = vmul.f32 %v1877, %v544
        %v1898 = vmul.f32 %v1878, %v545
        %v1899 = vpack.c.bf16 %v1880, %v1879
        %v1900 = vpack.c.bf16 %v1882, %v1881
        %v1901 = vpack.c.bf16 %v1884, %v1883
        %v1902 = vpack.c.bf16 %v1886, %v1885
        %v1903 = vpack.c.bf16 %v1888, %v1887
        %v1904 = vpack.c.bf16 %v1890, %v1889
        %v1905 = vpack.c.bf16 %v1892, %v1891
        %v1906 = vpack.c.bf16 %v1894, %v1893
        %v1907 = vpack.c.bf16 %v1896, %v1895
        %v1908 = vpack.c.bf16 %v1898, %v1897
        %v1909 = vld [vmem:[%s5] sm:$0xff]
        %v1910 = vld [vmem:[%s5 + $0x8] sm:$0xff]
        %v1911 = vld [vmem:[%s5 + $0x10] sm:$0xff]
        %v1912 = vld [vmem:[%s5 + $0x18] sm:$0xff]
        %v1913 = vld [vmem:[%s5 + $0x20] sm:$0xff]
        %v1914 = vld [vmem:[%s5 + $0x28] sm:$0xff]
        %v1915 = vld [vmem:[%s5 + $0x30] sm:$0xff]
        %v1916 = vld [vmem:[%s5 + $0x38] sm:$0xff]
        %v1917 = vld [vmem:[%s5 + $0x40] sm:$0xff]
        %v1918 = vld [vmem:[%s5 + $0x48] sm:$0xff]
        %v1919 = vld [vmem:[%s5 + $0x50] sm:$0xff]
        %v1920 = vld [vmem:[%s5 + $0x58] sm:$0xff]
        %v1921 = vld [vmem:[%s5 + $0x60] sm:$0xff]
        %v1922 = vld [vmem:[%s5 + $0x68] sm:$0xff]
        %v1923 = vld [vmem:[%s5 + $0x70] sm:$0xff]
        %v1924 = vld [vmem:[%s5 + $0x78] sm:$0xff]
        %v1941 = vunpack.c.l.b16 %v1909
        %v1942 = vunpack.c.h.b16 %v1909
        %v1943 = vunpack.c.l.b16 %v1910
        %v1944 = vunpack.c.h.b16 %v1910
        %v1945 = vunpack.c.l.b16 %v1911
        %v1946 = vunpack.c.h.b16 %v1911
        %v1947 = vunpack.c.l.b16 %v1912
        %v1948 = vunpack.c.h.b16 %v1912
        %v1949 = vunpack.c.l.b16 %v1913
        %v1950 = vunpack.c.h.b16 %v1913
        %v1951 = vunpack.c.l.b16 %v1914
        %v1952 = vunpack.c.h.b16 %v1914
        %v1953 = vunpack.c.l.b16 %v1915
        %v1954 = vunpack.c.h.b16 %v1915
        %v1955 = vunpack.c.l.b16 %v1916
        %v1956 = vunpack.c.h.b16 %v1916
        %v1957 = vunpack.c.l.b16 %v1917
        %v1958 = vunpack.c.h.b16 %v1917
        %v1959 = vunpack.c.l.b16 %v1918
        %v1960 = vunpack.c.h.b16 %v1918
        %v1961 = vunpack.c.l.b16 %v1919
        %v1962 = vunpack.c.h.b16 %v1919
        %v1963 = vunpack.c.l.b16 %v1920
        %v1964 = vunpack.c.h.b16 %v1920
        %v1965 = vunpack.c.l.b16 %v1921
        %v1966 = vunpack.c.h.b16 %v1921
        %v1967 = vunpack.c.l.b16 %v1922
        %v1968 = vunpack.c.h.b16 %v1922
        %v1969 = vunpack.c.l.b16 %v1923
        %v1970 = vunpack.c.h.b16 %v1923
        %v1971 = vunpack.c.l.b16 %v1924
        %v1972 = vunpack.c.h.b16 %v1924
        %v1973 = vpack.c.b16 %v1943, %v1941
        %v1974 = vpack.c.b16 %v1944, %v1942
        %v1975 = vpack.c.b16 %v1947, %v1945
        %v1976 = vpack.c.b16 %v1948, %v1946
        %v1977 = vpack.c.b16 %v1951, %v1949
        %v1978 = vpack.c.b16 %v1952, %v1950
        %v1979 = vpack.c.b16 %v1955, %v1953
        %v1980 = vpack.c.b16 %v1956, %v1954
        %v1981 = vpack.c.b16 %v1959, %v1957
        %v1982 = vpack.c.b16 %v1960, %v1958
        %v1983 = vpack.c.b16 %v1963, %v1961
        %v1984 = vpack.c.b16 %v1964, %v1962
        %v1985 = vpack.c.b16 %v1967, %v1965
        %v1986 = vpack.c.b16 %v1968, %v1966
        %v1987 = vpack.c.b16 %v1971, %v1969
        %v1988 = vpack.c.b16 %v1972, %v1970
        %2005 = vmatpush.bf16.msra.mxu0 %v1987
        %2006 = vmatpush.bf16.msra.mxu0 %v1985
        %2007 = vmatpush.bf16.msra.mxu0 %v1983
        %2008 = vmatpush.bf16.msra.mxu0 %v1981
        %2009 = vmatpush.bf16.msra.mxu0 %v1979
        %2010 = vmatpush.bf16.msra.mxu0 %v1977
        %2011 = vmatpush.bf16.msra.mxu0 %v1975
        %2012 = vmatpush.bf16.msra.mxu0 %v1973
        %2013 = vmatmul.bf16.gmra.mxu0 %v1899
        %v2014 = vpop.f32.mrf.mxu0
        %v2015 = vadd.f32 0.0, %v2014
        %v2016 = vpop.f32.mrf.mxu0
        %v2017 = vadd.f32 0.0, %v2016
        %2018 = vmatmul.bf16.gmra.mxu0 %v1900
        %v2019 = vpop.f32.mrf.mxu0
        %v2020 = vadd.f32 0.0, %v2019
        %v2021 = vpop.f32.mrf.mxu0
        %v2022 = vadd.f32 0.0, %v2021
        %2023 = vmatmul.bf16.gmra.mxu0 %v1901
        %v2024 = vpop.f32.mrf.mxu0
        %v2025 = vadd.f32 0.0, %v2024
        %v2026 = vpop.f32.mrf.mxu0
        %v2027 = vadd.f32 0.0, %v2026
        %2028 = vmatmul.bf16.gmra.mxu0 %v1902
        %v2029 = vpop.f32.mrf.mxu0
        %v2030 = vadd.f32 0.0, %v2029
        %v2031 = vpop.f32.mrf.mxu0
        %v2032 = vadd.f32 0.0, %v2031
        %2033 = vmatmul.bf16.gmra.mxu0 %v1903
        %v2034 = vpop.f32.mrf.mxu0
        %v2035 = vadd.f32 0.0, %v2034
        %v2036 = vpop.f32.mrf.mxu0
        %v2037 = vadd.f32 0.0, %v2036
        %2038 = vmatmul.bf16.gmra.mxu0 %v1904
        %v2039 = vpop.f32.mrf.mxu0
        %v2040 = vadd.f32 0.0, %v2039
        %v2041 = vpop.f32.mrf.mxu0
        %v2042 = vadd.f32 0.0, %v2041
        %2043 = vmatmul.bf16.gmra.mxu0 %v1905
        %v2044 = vpop.f32.mrf.mxu0
        %v2045 = vadd.f32 0.0, %v2044
        %v2046 = vpop.f32.mrf.mxu0
        %v2047 = vadd.f32 0.0, %v2046
        %2048 = vmatmul.bf16.gmra.mxu0 %v1906
        %v2049 = vpop.f32.mrf.mxu0
        %v2050 = vadd.f32 0.0, %v2049
        %v2051 = vpop.f32.mrf.mxu0
        %v2052 = vadd.f32 0.0, %v2051
        %2053 = vmatmul.bf16.gmra.mxu0 %v1907
        %v2054 = vpop.f32.mrf.mxu0
        %v2055 = vadd.f32 0.0, %v2054
        %v2056 = vpop.f32.mrf.mxu0
        %v2057 = vadd.f32 0.0, %v2056
        %2058 = vmatmul.bf16.gmra.mxu0 %v1908
        %v2059 = vpop.f32.mrf.mxu0
        %v2060 = vadd.f32 0.0, %v2059
        %v2061 = vpop.f32.mrf.mxu0
        %v2062 = vadd.f32 0.0, %v2061
        %2063 = vdwg.mxu0
        %2064 = vmatpush.bf16.msra.mxu0 %v1988
        %2065 = vmatpush.bf16.msra.mxu0 %v1986
        %2066 = vmatpush.bf16.msra.mxu0 %v1984
        %2067 = vmatpush.bf16.msra.mxu0 %v1982
        %2068 = vmatpush.bf16.msra.mxu0 %v1980
        %2069 = vmatpush.bf16.msra.mxu0 %v1978
        %2070 = vmatpush.bf16.msra.mxu0 %v1976
        %2071 = vmatpush.bf16.msra.mxu0 %v1974
        %2072 = vmatmul.bf16.gmra.mxu0 %v1899
        %v2073 = vpop.f32.mrf.mxu0
        %v2074 = vpop.f32.mrf.mxu0
        %2075 = vmatmul.bf16.gmra.mxu0 %v1900
        %v2076 = vpop.f32.mrf.mxu0
        %v2077 = vadd.f32 0.0, %v2076
        %v2078 = vpop.f32.mrf.mxu0
        %v2079 = vadd.f32 0.0, %v2078
        %2080 = vmatmul.bf16.gmra.mxu0 %v1901
        %v2081 = vpop.f32.mrf.mxu0
        %v2082 = vadd.f32 0.0, %v2081
        %v2083 = vpop.f32.mrf.mxu0
        %v2084 = vadd.f32 0.0, %v2083
        %2085 = vmatmul.bf16.gmra.mxu0 %v1902
        %v2086 = vpop.f32.mrf.mxu0
        %v2087 = vadd.f32 0.0, %v2086
        %v2088 = vpop.f32.mrf.mxu0
        %v2089 = vadd.f32 0.0, %v2088
        %2090 = vmatmul.bf16.gmra.mxu0 %v1903
        %v2091 = vpop.f32.mrf.mxu0
        %v2092 = vadd.f32 0.0, %v2091
        %v2093 = vpop.f32.mrf.mxu0
        %v2094 = vadd.f32 0.0, %v2093
        %2095 = vmatmul.bf16.gmra.mxu0 %v1904
        %v2096 = vpop.f32.mrf.mxu0
        %v2097 = vadd.f32 0.0, %v2096
        %v2098 = vpop.f32.mrf.mxu0
        %v2099 = vadd.f32 0.0, %v2098
        %2100 = vmatmul.bf16.gmra.mxu0 %v1905
        %v2101 = vpop.f32.mrf.mxu0
        %v2102 = vadd.f32 0.0, %v2101
        %v2103 = vpop.f32.mrf.mxu0
        %v2104 = vadd.f32 0.0, %v2103
        %2105 = vmatmul.bf16.gmra.mxu0 %v1906
        %v2106 = vpop.f32.mrf.mxu0
        %v2107 = vadd.f32 0.0, %v2106
        %v2108 = vpop.f32.mrf.mxu0
        %v2109 = vadd.f32 0.0, %v2108
        %2110 = vmatmul.bf16.gmra.mxu0 %v1907
        %v2111 = vpop.f32.mrf.mxu0
        %v2112 = vadd.f32 0.0, %v2111
        %v2113 = vpop.f32.mrf.mxu0
        %v2114 = vadd.f32 0.0, %v2113
        %2115 = vmatmul.bf16.gmra.mxu0 %v1908
        %v2116 = vpop.f32.mrf.mxu0
        %v2117 = vpop.f32.mrf.mxu0
        %2118 = vdwg.mxu0
        %v2119 = vadd.f32 %v642, %v2015
        %v2120 = vadd.f32 %v644, %v2017
        %v2121 = vadd.f32 %v647, %v2020
        %v2122 = vadd.f32 %v649, %v2022
        %v2123 = vadd.f32 %v652, %v2025
        %v2124 = vadd.f32 %v654, %v2027
        %v2125 = vadd.f32 %v657, %v2030
        %v2126 = vadd.f32 %v659, %v2032
        %v2127 = vadd.f32 %v662, %v2035
        %v2128 = vadd.f32 %v664, %v2037
        %v2129 = vadd.f32 %v667, %v2040
        %v2130 = vadd.f32 %v669, %v2042
        %v2131 = vadd.f32 %v672, %v2045
        %v2132 = vadd.f32 %v674, %v2047
        %v2133 = vadd.f32 %v677, %v2050
        %v2134 = vadd.f32 %v679, %v2052
        %v2135 = vadd.f32 %v682, %v2055
        %v2136 = vadd.f32 %v684, %v2057
        %v2137 = vadd.f32 %v687, %v2060
        %v2138 = vadd.f32 %v689, %v2062
        %v2139 = vadd.f32 %v2077, 0.0
        %v2140 = vadd.f32 %v2079, 0.0
        %v2141 = vadd.f32 %v2082, 0.0
        %v2142 = vadd.f32 %v2084, 0.0
        %v2143 = vadd.f32 %v2087, 0.0
        %v2144 = vadd.f32 %v2089, 0.0
        %v2145 = vadd.f32 %v2092, 0.0
        %v2146 = vadd.f32 %v2094, 0.0
        %v2147 = vadd.f32 %v2097, 0.0
        %v2148 = vadd.f32 %v2099, 0.0
        %v2149 = vadd.f32 %v2102, 0.0
        %v2150 = vadd.f32 %v2104, 0.0
        %v2151 = vadd.f32 %v2107, 0.0
        %v2152 = vadd.f32 %v2109, 0.0
        %v2153 = vadd.f32 %v2112, 0.0
        %v2154 = vadd.f32 %v2114, 0.0
        %s2155 = scalar_lea.vmem %s3, 8
        %v2156 = vld [vmem:[%s2155] sm:$0x77]
        %v2157 = vpack.c.bf16 %v2120, %v2119
        %v2158 = vpack.c.bf16 %v2122, %v2121
        %v2159 = vpack.c.bf16 %v2124, %v2123
        %v2160 = vpack.c.bf16 %v2126, %v2125
        %v2161 = vpack.c.bf16 %v2128, %v2127
        %v2162 = vpack.c.bf16 %v2130, %v2129
        %v2163 = vpack.c.bf16 %v2132, %v2131
        %v2164 = vpack.c.bf16 %v2134, %v2133
        %v2165 = vpack.c.bf16 %v2136, %v2135
        %v2166 = vpack.c.bf16 %v2138, %v2137
        %v2167 = vrot.slane %v2119, 6
        %v2168 = vrot.slane %v2120, 6
        %v2169 = vrot.slane %v2121, 6
        %v2170 = vrot.slane %v2122, 6
        %v2171 = vrot.slane %v2123, 6
        %v2172 = vrot.slane %v2124, 6
        %v2173 = vrot.slane %v2125, 6
        %v2174 = vrot.slane %v2126, 6
        %v2175 = vrot.slane %v2127, 6
        %v2176 = vrot.slane %v2128, 6
        %v2177 = vrot.slane %v2129, 6
        %v2178 = vrot.slane %v2130, 6
        %v2179 = vrot.slane %v2131, 6
        %v2180 = vrot.slane %v2132, 6
        %v2181 = vrot.slane %v2133, 6
        %v2182 = vrot.slane %v2134, 6
        %v2183 = vrot.slane %v2135, 6
        %v2184 = vrot.slane %v2136, 6
        %v2185 = vrot.slane %v2137, 6
        %v2186 = vrot.slane %v2138, 6
        %vm2187 = vcmp.lt.s32.totalorder %v404, 2
        %v2188 = vsel %vm2187, %v2185, %v2186
        %v2189 = vsel %vm2187, %v2184, %v2185
        %v2190 = vsel %vm2187, %v2183, %v2184
        %v2191 = vsel %vm2187, %v2182, %v2183
        %v2192 = vsel %vm2187, %v2181, %v2182
        %v2193 = vsel %vm2187, %v2180, %v2181
        %v2194 = vsel %vm2187, %v2179, %v2180
        %v2195 = vsel %vm2187, %v2178, %v2179
        %v2196 = vsel %vm2187, %v2177, %v2178
        %v2197 = vsel %vm2187, %v2176, %v2177
        %v2198 = vsel %vm2187, %v2175, %v2176
        %v2199 = vsel %vm2187, %v2174, %v2175
        %v2200 = vsel %vm2187, %v2173, %v2174
        %v2201 = vsel %vm2187, %v2172, %v2173
        %v2202 = vsel %vm2187, %v2171, %v2172
        %v2203 = vsel %vm2187, %v2170, %v2171
        %v2204 = vsel %vm2187, %v2169, %v2170
        %v2205 = vsel %vm2187, %v2168, %v2169
        %v2206 = vsel %vm2187, %v2167, %v2168
        %v2207 = vsel %vm2187, %v2186, %v2167
        %v2208 = vpack.c.bf16 %v2206, %v2207
        %v2209 = vpack.c.bf16 %v2204, %v2205
        %v2210 = vpack.c.bf16 %v2202, %v2203
        %v2211 = vpack.c.bf16 %v2200, %v2201
        %v2212 = vpack.c.bf16 %v2198, %v2199
        %v2213 = vpack.c.bf16 %v2196, %v2197
        %v2214 = vpack.c.bf16 %v2194, %v2195
        %v2215 = vpack.c.bf16 %v2192, %v2193
        %v2216 = vpack.c.bf16 %v2190, %v2191
        %v2217 = vpack.c.bf16 %v2188, %v2189
        %s2218 = scalar_lea.vmem [#allocation2], 384
        %v2219 = vld [vmem:[%s2218] sm:$0xff]
        %v2220 = vld [vmem:[%s2218 + $0x8] sm:$0xff]
        %v2221 = vld [vmem:[%s2218 + $0x10] sm:$0xff]
        %v2222 = vld [vmem:[%s2218 + $0x18] sm:$0xff]
        %v2223 = vld [vmem:[%s2218 + $0x20] sm:$0xff]
        %v2224 = vld [vmem:[%s2218 + $0x28] sm:$0xff]
        %v2225 = vld [vmem:[%s2218 + $0x30] sm:$0xff]
        %v2226 = vld [vmem:[%s2218 + $0x38] sm:$0xff]
        %v2227 = vld [vmem:[%s2218 + $0x40] sm:$0xff]
        %v2228 = vld [vmem:[%s2218 + $0x48] sm:$0xff]
        %v2229 = vld [vmem:[%s2218 + $0x50] sm:$0xff]
        %v2230 = vld [vmem:[%s2218 + $0x58] sm:$0xff]
        %v2231 = vld [vmem:[%s2218 + $0x60] sm:$0xff]
        %v2232 = vld [vmem:[%s2218 + $0x68] sm:$0xff]
        %v2233 = vld [vmem:[%s2218 + $0x70] sm:$0xff]
        %v2234 = vld [vmem:[%s2218 + $0x78] sm:$0xff]
        %v2251 = vunpack.c.l.b16 %v2219
        %v2252 = vunpack.c.h.b16 %v2219
        %v2253 = vunpack.c.l.b16 %v2220
        %v2254 = vunpack.c.h.b16 %v2220
        %v2255 = vunpack.c.l.b16 %v2221
        %v2256 = vunpack.c.h.b16 %v2221
        %v2257 = vunpack.c.l.b16 %v2222
        %v2258 = vunpack.c.h.b16 %v2222
        %v2259 = vunpack.c.l.b16 %v2223
        %v2260 = vunpack.c.h.b16 %v2223
        %v2261 = vunpack.c.l.b16 %v2224
        %v2262 = vunpack.c.h.b16 %v2224
        %v2263 = vunpack.c.l.b16 %v2225
        %v2264 = vunpack.c.h.b16 %v2225
        %v2265 = vunpack.c.l.b16 %v2226
        %v2266 = vunpack.c.h.b16 %v2226
        %v2267 = vunpack.c.l.b16 %v2227
        %v2268 = vunpack.c.h.b16 %v2227
        %v2269 = vunpack.c.l.b16 %v2228
        %v2270 = vunpack.c.h.b16 %v2228
        %v2271 = vunpack.c.l.b16 %v2229
        %v2272 = vunpack.c.h.b16 %v2229
        %v2273 = vunpack.c.l.b16 %v2230
        %v2274 = vunpack.c.h.b16 %v2230
        %v2275 = vunpack.c.l.b16 %v2231
        %v2276 = vunpack.c.h.b16 %v2231
        %v2277 = vunpack.c.l.b16 %v2232
        %v2278 = vunpack.c.h.b16 %v2232
        %v2279 = vunpack.c.l.b16 %v2233
        %v2280 = vunpack.c.h.b16 %v2233
        %v2281 = vunpack.c.l.b16 %v2234
        %v2282 = vunpack.c.h.b16 %v2234
        %v2283 = vpack.c.b16 %v2253, %v2251
        %v2284 = vpack.c.b16 %v2254, %v2252
        %v2285 = vpack.c.b16 %v2257, %v2255
        %v2286 = vpack.c.b16 %v2258, %v2256
        %v2287 = vpack.c.b16 %v2261, %v2259
        %v2288 = vpack.c.b16 %v2262, %v2260
        %v2289 = vpack.c.b16 %v2265, %v2263
        %v2290 = vpack.c.b16 %v2266, %v2264
        %v2291 = vpack.c.b16 %v2269, %v2267
        %v2292 = vpack.c.b16 %v2270, %v2268
        %v2293 = vpack.c.b16 %v2273, %v2271
        %v2294 = vpack.c.b16 %v2274, %v2272
        %v2295 = vpack.c.b16 %v2277, %v2275
        %v2296 = vpack.c.b16 %v2278, %v2276
        %v2297 = vpack.c.b16 %v2281, %v2279
        %v2298 = vpack.c.b16 %v2282, %v2280
        %2315 = vmatpush.bf16.msra.mxu0 %v2297
        %2316 = vmatpush.bf16.msra.mxu0 %v2295
        %2317 = vmatpush.bf16.msra.mxu0 %v2293
        %2318 = vmatpush.bf16.msra.mxu0 %v2291
        %2319 = vmatpush.bf16.msra.mxu0 %v2289
        %2320 = vmatpush.bf16.msra.mxu0 %v2287
        %2321 = vmatpush.bf16.msra.mxu0 %v2285
        %2322 = vmatpush.bf16.msra.mxu0 %v2283
        %2323 = vmatmul.bf16.gmra.mxu0 %v2208
        %v2324 = vpop.f32.mrf.mxu0
        %v2325 = vadd.f32 0.0, %v2324
        %v2326 = vpop.f32.mrf.mxu0
        %v2327 = vadd.f32 0.0, %v2326
        %2328 = vmatmul.bf16.gmra.mxu0 %v2209
        %v2329 = vpop.f32.mrf.mxu0
        %v2330 = vadd.f32 0.0, %v2329
        %v2331 = vpop.f32.mrf.mxu0
        %v2332 = vadd.f32 0.0, %v2331
        %2333 = vmatmul.bf16.gmra.mxu0 %v2210
        %v2334 = vpop.f32.mrf.mxu0
        %v2335 = vadd.f32 0.0, %v2334
        %v2336 = vpop.f32.mrf.mxu0
        %v2337 = vadd.f32 0.0, %v2336
        %2338 = vmatmul.bf16.gmra.mxu0 %v2211
        %v2339 = vpop.f32.mrf.mxu0
        %v2340 = vadd.f32 0.0, %v2339
        %v2341 = vpop.f32.mrf.mxu0
        %v2342 = vadd.f32 0.0, %v2341
        %2343 = vmatmul.bf16.gmra.mxu0 %v2212
        %v2344 = vpop.f32.mrf.mxu0
        %v2345 = vadd.f32 0.0, %v2344
        %v2346 = vpop.f32.mrf.mxu0
        %v2347 = vadd.f32 0.0, %v2346
        %2348 = vmatmul.bf16.gmra.mxu0 %v2213
        %v2349 = vpop.f32.mrf.mxu0
        %v2350 = vadd.f32 0.0, %v2349
        %v2351 = vpop.f32.mrf.mxu0
        %v2352 = vadd.f32 0.0, %v2351
        %2353 = vmatmul.bf16.gmra.mxu0 %v2214
        %v2354 = vpop.f32.mrf.mxu0
        %v2355 = vadd.f32 0.0, %v2354
        %v2356 = vpop.f32.mrf.mxu0
        %v2357 = vadd.f32 0.0, %v2356
        %2358 = vmatmul.bf16.gmra.mxu0 %v2215
        %v2359 = vpop.f32.mrf.mxu0
        %v2360 = vadd.f32 0.0, %v2359
        %v2361 = vpop.f32.mrf.mxu0
        %v2362 = vadd.f32 0.0, %v2361
        %2363 = vmatmul.bf16.gmra.mxu0 %v2216
        %v2364 = vpop.f32.mrf.mxu0
        %v2365 = vadd.f32 0.0, %v2364
        %v2366 = vpop.f32.mrf.mxu0
        %v2367 = vadd.f32 0.0, %v2366
        %2368 = vmatmul.bf16.gmra.mxu0 %v2217
        %v2369 = vpop.f32.mrf.mxu0
        %v2370 = vadd.f32 0.0, %v2369
        %v2371 = vpop.f32.mrf.mxu0
        %v2372 = vadd.f32 0.0, %v2371
        %2373 = vdwg.mxu0
        %2374 = vmatpush.bf16.msra.mxu0 %v2298
        %2375 = vmatpush.bf16.msra.mxu0 %v2296
        %2376 = vmatpush.bf16.msra.mxu0 %v2294
        %2377 = vmatpush.bf16.msra.mxu0 %v2292
        %2378 = vmatpush.bf16.msra.mxu0 %v2290
        %2379 = vmatpush.bf16.msra.mxu0 %v2288
        %2380 = vmatpush.bf16.msra.mxu0 %v2286
        %2381 = vmatpush.bf16.msra.mxu0 %v2284
        %2382 = vmatmul.bf16.gmra.mxu0 %v2208
        %v2383 = vpop.f32.mrf.mxu0
        %v2384 = vadd.f32 0.0, %v2383
        %v2385 = vpop.f32.mrf.mxu0
        %v2386 = vadd.f32 0.0, %v2385
        %2387 = vmatmul.bf16.gmra.mxu0 %v2209
        %v2388 = vpop.f32.mrf.mxu0
        %v2389 = vadd.f32 0.0, %v2388
        %v2390 = vpop.f32.mrf.mxu0
        %v2391 = vadd.f32 0.0, %v2390
        %2392 = vmatmul.bf16.gmra.mxu0 %v2210
        %v2393 = vpop.f32.mrf.mxu0
        %v2394 = vadd.f32 0.0, %v2393
        %v2395 = vpop.f32.mrf.mxu0
        %v2396 = vadd.f32 0.0, %v2395
        %2397 = vmatmul.bf16.gmra.mxu0 %v2211
        %v2398 = vpop.f32.mrf.mxu0
        %v2399 = vadd.f32 0.0, %v2398
        %v2400 = vpop.f32.mrf.mxu0
        %v2401 = vadd.f32 0.0, %v2400
        %2402 = vmatmul.bf16.gmra.mxu0 %v2212
        %v2403 = vpop.f32.mrf.mxu0
        %v2404 = vadd.f32 0.0, %v2403
        %v2405 = vpop.f32.mrf.mxu0
        %v2406 = vadd.f32 0.0, %v2405
        %2407 = vmatmul.bf16.gmra.mxu0 %v2213
        %v2408 = vpop.f32.mrf.mxu0
        %v2409 = vadd.f32 0.0, %v2408
        %v2410 = vpop.f32.mrf.mxu0
        %v2411 = vadd.f32 0.0, %v2410
        %2412 = vmatmul.bf16.gmra.mxu0 %v2214
        %v2413 = vpop.f32.mrf.mxu0
        %v2414 = vadd.f32 0.0, %v2413
        %v2415 = vpop.f32.mrf.mxu0
        %v2416 = vadd.f32 0.0, %v2415
        %2417 = vmatmul.bf16.gmra.mxu0 %v2215
        %v2418 = vpop.f32.mrf.mxu0
        %v2419 = vadd.f32 0.0, %v2418
        %v2420 = vpop.f32.mrf.mxu0
        %v2421 = vadd.f32 0.0, %v2420
        %2422 = vmatmul.bf16.gmra.mxu0 %v2216
        %v2423 = vpop.f32.mrf.mxu0
        %v2424 = vadd.f32 0.0, %v2423
        %v2425 = vpop.f32.mrf.mxu0
        %v2426 = vadd.f32 0.0, %v2425
        %2427 = vmatmul.bf16.gmra.mxu0 %v2217
        %v2428 = vpop.f32.mrf.mxu0
        %v2429 = vadd.f32 0.0, %v2428
        %v2430 = vpop.f32.mrf.mxu0
        %v2431 = vadd.f32 0.0, %v2430
        %2432 = vdwg.mxu0
        %v2434 = vunpack.c.l.b16 %v2156
        %v2435 = vunpack.c.h.b16 %v2156
        %v2436 = vpack.c.b16 %v2434, %v2434
        %v2437 = vpack.c.b16 %v2435, %v2435
        %v2439 = vsel %vm1053, %v2436, 0
        %v2442 = vsel %vm1053, %v2437, 0
        %2444 = vmatpush.bf16.msra.mxu0 0
        %2445 = vmatpush.bf16.msra.mxu0 0
        %2446 = vmatpush.bf16.msra.mxu0 0
        %2447 = vmatpush.bf16.msra.mxu0 0
        %2448 = vmatpush.bf16.msra.mxu0 0
        %2449 = vmatpush.bf16.msra.mxu0 0
        %2450 = vmatpush.bf16.msra.mxu0 0
        %2451 = vmatpush.bf16.msra.mxu0 %v2439
        %2452 = vmatmul.bf16.gmra.mxu0 %v1024
        %v2453 = vpop.f32.mrf.mxu0
        %v2454 = vadd.f32 %v2325, %v2453
        %v2455 = vpop.f32.mrf.mxu0
        %v2456 = vadd.f32 %v2327, %v2455
        %2457 = vmatmul.bf16.gmra.mxu0 %v1027
        %v2458 = vpop.f32.mrf.mxu0
        %v2459 = vadd.f32 %v2330, %v2458
        %v2460 = vpop.f32.mrf.mxu0
        %v2461 = vadd.f32 %v2332, %v2460
        %2462 = vmatmul.bf16.gmra.mxu0 %v1030
        %v2463 = vpop.f32.mrf.mxu0
        %v2464 = vadd.f32 %v2335, %v2463
        %v2465 = vpop.f32.mrf.mxu0
        %v2466 = vadd.f32 %v2337, %v2465
        %2467 = vmatmul.bf16.gmra.mxu0 %v1033
        %v2468 = vpop.f32.mrf.mxu0
        %v2469 = vadd.f32 %v2340, %v2468
        %v2470 = vpop.f32.mrf.mxu0
        %v2471 = vadd.f32 %v2342, %v2470
        %2472 = vmatmul.bf16.gmra.mxu0 %v1036
        %v2473 = vpop.f32.mrf.mxu0
        %v2474 = vadd.f32 %v2345, %v2473
        %v2475 = vpop.f32.mrf.mxu0
        %v2476 = vadd.f32 %v2347, %v2475
        %2477 = vmatmul.bf16.gmra.mxu0 %v1039
        %v2478 = vpop.f32.mrf.mxu0
        %v2479 = vadd.f32 %v2350, %v2478
        %v2480 = vpop.f32.mrf.mxu0
        %v2481 = vadd.f32 %v2352, %v2480
        %2482 = vmatmul.bf16.gmra.mxu0 %v1042
        %v2483 = vpop.f32.mrf.mxu0
        %v2484 = vadd.f32 %v2355, %v2483
        %v2485 = vpop.f32.mrf.mxu0
        %v2486 = vadd.f32 %v2357, %v2485
        %2487 = vmatmul.bf16.gmra.mxu0 %v1045
        %v2488 = vpop.f32.mrf.mxu0
        %v2489 = vadd.f32 %v2360, %v2488
        %v2490 = vpop.f32.mrf.mxu0
        %v2491 = vadd.f32 %v2362, %v2490
        %2492 = vmatmul.bf16.gmra.mxu0 %v1048
        %v2493 = vpop.f32.mrf.mxu0
        %v2494 = vadd.f32 %v2365, %v2493
        %v2495 = vpop.f32.mrf.mxu0
        %v2496 = vadd.f32 %v2367, %v2495
        %2497 = vmatmul.bf16.gmra.mxu0 %v1051
        %v2498 = vpop.f32.mrf.mxu0
        %v2499 = vadd.f32 %v2370, %v2498
        %v2500 = vpop.f32.mrf.mxu0
        %v2501 = vadd.f32 %v2372, %v2500
        %2502 = vdwg.mxu0
        %2503 = vmatpush.bf16.msra.mxu0 0
        %2504 = vmatpush.bf16.msra.mxu0 0
        %2505 = vmatpush.bf16.msra.mxu0 0
        %2506 = vmatpush.bf16.msra.mxu0 0
        %2507 = vmatpush.bf16.msra.mxu0 0
        %2508 = vmatpush.bf16.msra.mxu0 0
        %2509 = vmatpush.bf16.msra.mxu0 0
        %2510 = vmatpush.bf16.msra.mxu0 %v2442
        %2511 = vmatmul.bf16.gmra.mxu0 %v1024
        %v2512 = vpop.f32.mrf.mxu0
        %v2513 = vadd.f32 %v2384, %v2512
        %v2514 = vpop.f32.mrf.mxu0
        %v2515 = vadd.f32 %v2386, %v2514
        %2516 = vmatmul.bf16.gmra.mxu0 %v1027
        %v2517 = vpop.f32.mrf.mxu0
        %v2518 = vadd.f32 %v2389, %v2517
        %v2519 = vpop.f32.mrf.mxu0
        %v2520 = vadd.f32 %v2391, %v2519
        %2521 = vmatmul.bf16.gmra.mxu0 %v1030
        %v2522 = vpop.f32.mrf.mxu0
        %v2523 = vadd.f32 %v2394, %v2522
        %v2524 = vpop.f32.mrf.mxu0
        %v2525 = vadd.f32 %v2396, %v2524
        %2526 = vmatmul.bf16.gmra.mxu0 %v1033
        %v2527 = vpop.f32.mrf.mxu0
        %v2528 = vadd.f32 %v2399, %v2527
        %v2529 = vpop.f32.mrf.mxu0
        %v2530 = vadd.f32 %v2401, %v2529
        %2531 = vmatmul.bf16.gmra.mxu0 %v1036
        %v2532 = vpop.f32.mrf.mxu0
        %v2533 = vadd.f32 %v2404, %v2532
        %v2534 = vpop.f32.mrf.mxu0
        %v2535 = vadd.f32 %v2406, %v2534
        %2536 = vmatmul.bf16.gmra.mxu0 %v1039
        %v2537 = vpop.f32.mrf.mxu0
        %v2538 = vadd.f32 %v2409, %v2537
        %v2539 = vpop.f32.mrf.mxu0
        %v2540 = vadd.f32 %v2411, %v2539
        %2541 = vmatmul.bf16.gmra.mxu0 %v1042
        %v2542 = vpop.f32.mrf.mxu0
        %v2543 = vadd.f32 %v2414, %v2542
        %v2544 = vpop.f32.mrf.mxu0
        %v2545 = vadd.f32 %v2416, %v2544
        %2546 = vmatmul.bf16.gmra.mxu0 %v1045
        %v2547 = vpop.f32.mrf.mxu0
        %v2548 = vadd.f32 %v2419, %v2547
        %v2549 = vpop.f32.mrf.mxu0
        %v2550 = vadd.f32 %v2421, %v2549
        %2551 = vmatmul.bf16.gmra.mxu0 %v1048
        %v2552 = vpop.f32.mrf.mxu0
        %v2553 = vadd.f32 %v2424, %v2552
        %v2554 = vpop.f32.mrf.mxu0
        %v2555 = vadd.f32 %v2426, %v2554
        %2556 = vmatmul.bf16.gmra.mxu0 %v1051
        %v2557 = vpop.f32.mrf.mxu0
        %v2558 = vadd.f32 %v2429, %v2557
        %v2559 = vpop.f32.mrf.mxu0
        %v2560 = vadd.f32 %v2431, %v2559
        %2561 = vdwg.mxu0
        %s2562 = scalar_lea.vmem [#allocation2], 512
        %v2563 = vld [vmem:[%s2562] sm:$0xff]
        %v2564 = vld [vmem:[%s2562 + $0x8] sm:$0xff]
        %v2565 = vld [vmem:[%s2562 + $0x10] sm:$0xff]
        %v2566 = vld [vmem:[%s2562 + $0x18] sm:$0xff]
        %v2567 = vld [vmem:[%s2562 + $0x20] sm:$0xff]
        %v2568 = vld [vmem:[%s2562 + $0x28] sm:$0xff]
        %v2569 = vld [vmem:[%s2562 + $0x30] sm:$0xff]
        %v2570 = vld [vmem:[%s2562 + $0x38] sm:$0xff]
        %v2571 = vld [vmem:[%s2562 + $0x40] sm:$0xff]
        %v2572 = vld [vmem:[%s2562 + $0x48] sm:$0xff]
        %v2573 = vld [vmem:[%s2562 + $0x50] sm:$0xff]
        %v2574 = vld [vmem:[%s2562 + $0x58] sm:$0xff]
        %v2575 = vld [vmem:[%s2562 + $0x60] sm:$0xff]
        %v2576 = vld [vmem:[%s2562 + $0x68] sm:$0xff]
        %v2577 = vld [vmem:[%s2562 + $0x70] sm:$0xff]
        %v2578 = vld [vmem:[%s2562 + $0x78] sm:$0xff]
        %v2595 = vunpack.c.l.b16 %v2563
        %v2596 = vunpack.c.h.b16 %v2563
        %v2597 = vunpack.c.l.b16 %v2564
        %v2598 = vunpack.c.h.b16 %v2564
        %v2599 = vunpack.c.l.b16 %v2565
        %v2600 = vunpack.c.h.b16 %v2565
        %v2601 = vunpack.c.l.b16 %v2566
        %v2602 = vunpack.c.h.b16 %v2566
        %v2603 = vunpack.c.l.b16 %v2567
        %v2604 = vunpack.c.h.b16 %v2567
        %v2605 = vunpack.c.l.b16 %v2568
        %v2606 = vunpack.c.h.b16 %v2568
        %v2607 = vunpack.c.l.b16 %v2569
        %v2608 = vunpack.c.h.b16 %v2569
        %v2609 = vunpack.c.l.b16 %v2570
        %v2610 = vunpack.c.h.b16 %v2570
        %v2611 = vunpack.c.l.b16 %v2571
        %v2612 = vunpack.c.h.b16 %v2571
        %v2613 = vunpack.c.l.b16 %v2572
        %v2614 = vunpack.c.h.b16 %v2572
        %v2615 = vunpack.c.l.b16 %v2573
        %v2616 = vunpack.c.h.b16 %v2573
        %v2617 = vunpack.c.l.b16 %v2574
        %v2618 = vunpack.c.h.b16 %v2574
        %v2619 = vunpack.c.l.b16 %v2575
        %v2620 = vunpack.c.h.b16 %v2575
        %v2621 = vunpack.c.l.b16 %v2576
        %v2622 = vunpack.c.h.b16 %v2576
        %v2623 = vunpack.c.l.b16 %v2577
        %v2624 = vunpack.c.h.b16 %v2577
        %v2625 = vunpack.c.l.b16 %v2578
        %v2626 = vunpack.c.h.b16 %v2578
        %v2627 = vpack.c.b16 %v2597, %v2595
        %v2628 = vpack.c.b16 %v2598, %v2596
        %v2629 = vpack.c.b16 %v2601, %v2599
        %v2630 = vpack.c.b16 %v2602, %v2600
        %v2631 = vpack.c.b16 %v2605, %v2603
        %v2632 = vpack.c.b16 %v2606, %v2604
        %v2633 = vpack.c.b16 %v2609, %v2607
        %v2634 = vpack.c.b16 %v2610, %v2608
        %v2635 = vpack.c.b16 %v2613, %v2611
        %v2636 = vpack.c.b16 %v2614, %v2612
        %v2637 = vpack.c.b16 %v2617, %v2615
        %v2638 = vpack.c.b16 %v2618, %v2616
        %v2639 = vpack.c.b16 %v2621, %v2619
        %v2640 = vpack.c.b16 %v2622, %v2620
        %v2641 = vpack.c.b16 %v2625, %v2623
        %v2642 = vpack.c.b16 %v2626, %v2624
        %2659 = vmatpush.bf16.msra.mxu0 %v2641
        %2660 = vmatpush.bf16.msra.mxu0 %v2639
        %2661 = vmatpush.bf16.msra.mxu0 %v2637
        %2662 = vmatpush.bf16.msra.mxu0 %v2635
        %2663 = vmatpush.bf16.msra.mxu0 %v2633
        %2664 = vmatpush.bf16.msra.mxu0 %v2631
        %2665 = vmatpush.bf16.msra.mxu0 %v2629
        %2666 = vmatpush.bf16.msra.mxu0 %v2627
        %2667 = vmatmul.bf16.gmra.mxu0 %v2157
        %v2668 = vpop.f32.mrf.mxu0
        %v2669 = vadd.f32 0.0, %v2668
        %v2670 = vpop.f32.mrf.mxu0
        %v2671 = vadd.f32 0.0, %v2670
        %2672 = vmatmul.bf16.gmra.mxu0 %v2158
        %v2673 = vpop.f32.mrf.mxu0
        %v2674 = vadd.f32 0.0, %v2673
        %v2675 = vpop.f32.mrf.mxu0
        %v2676 = vadd.f32 0.0, %v2675
        %2677 = vmatmul.bf16.gmra.mxu0 %v2159
        %v2678 = vpop.f32.mrf.mxu0
        %v2679 = vadd.f32 0.0, %v2678
        %v2680 = vpop.f32.mrf.mxu0
        %v2681 = vadd.f32 0.0, %v2680
        %2682 = vmatmul.bf16.gmra.mxu0 %v2160
        %v2683 = vpop.f32.mrf.mxu0
        %v2684 = vadd.f32 0.0, %v2683
        %v2685 = vpop.f32.mrf.mxu0
        %v2686 = vadd.f32 0.0, %v2685
        %2687 = vmatmul.bf16.gmra.mxu0 %v2161
        %v2688 = vpop.f32.mrf.mxu0
        %v2689 = vadd.f32 0.0, %v2688
        %v2690 = vpop.f32.mrf.mxu0
        %v2691 = vadd.f32 0.0, %v2690
        %2692 = vmatmul.bf16.gmra.mxu0 %v2162
        %v2693 = vpop.f32.mrf.mxu0
        %v2694 = vadd.f32 0.0, %v2693
        %v2695 = vpop.f32.mrf.mxu0
        %v2696 = vadd.f32 0.0, %v2695
        %2697 = vmatmul.bf16.gmra.mxu0 %v2163
        %v2698 = vpop.f32.mrf.mxu0
        %v2699 = vadd.f32 0.0, %v2698
        %v2700 = vpop.f32.mrf.mxu0
        %v2701 = vadd.f32 0.0, %v2700
        %2702 = vmatmul.bf16.gmra.mxu0 %v2164
        %v2703 = vpop.f32.mrf.mxu0
        %v2704 = vadd.f32 0.0, %v2703
        %v2705 = vpop.f32.mrf.mxu0
        %v2706 = vadd.f32 0.0, %v2705
        %2707 = vmatmul.bf16.gmra.mxu0 %v2165
        %v2708 = vpop.f32.mrf.mxu0
        %v2709 = vadd.f32 0.0, %v2708
        %v2710 = vpop.f32.mrf.mxu0
        %v2711 = vadd.f32 0.0, %v2710
        %2712 = vmatmul.bf16.gmra.mxu0 %v2166
        %v2713 = vpop.f32.mrf.mxu0
        %v2714 = vadd.f32 0.0, %v2713
        %v2715 = vpop.f32.mrf.mxu0
        %v2716 = vadd.f32 0.0, %v2715
        %2717 = vdwg.mxu0
        %2718 = vmatpush.bf16.msra.mxu0 %v2642
        %2719 = vmatpush.bf16.msra.mxu0 %v2640
        %2720 = vmatpush.bf16.msra.mxu0 %v2638
        %2721 = vmatpush.bf16.msra.mxu0 %v2636
        %2722 = vmatpush.bf16.msra.mxu0 %v2634
        %2723 = vmatpush.bf16.msra.mxu0 %v2632
        %2724 = vmatpush.bf16.msra.mxu0 %v2630
        %2725 = vmatpush.bf16.msra.mxu0 %v2628
        %2726 = vmatmul.bf16.gmra.mxu0 %v2157
        %v2727 = vpop.f32.mrf.mxu0
        %v2728 = vadd.f32 0.0, %v2727
        %v2729 = vpop.f32.mrf.mxu0
        %v2730 = vadd.f32 0.0, %v2729
        %2731 = vmatmul.bf16.gmra.mxu0 %v2158
        %v2732 = vpop.f32.mrf.mxu0
        %v2733 = vadd.f32 0.0, %v2732
        %v2734 = vpop.f32.mrf.mxu0
        %v2735 = vadd.f32 0.0, %v2734
        %2736 = vmatmul.bf16.gmra.mxu0 %v2159
        %v2737 = vpop.f32.mrf.mxu0
        %v2738 = vadd.f32 0.0, %v2737
        %v2739 = vpop.f32.mrf.mxu0
        %v2740 = vadd.f32 0.0, %v2739
        %2741 = vmatmul.bf16.gmra.mxu0 %v2160
        %v2742 = vpop.f32.mrf.mxu0
        %v2743 = vadd.f32 0.0, %v2742
        %v2744 = vpop.f32.mrf.mxu0
        %v2745 = vadd.f32 0.0, %v2744
        %2746 = vmatmul.bf16.gmra.mxu0 %v2161
        %v2747 = vpop.f32.mrf.mxu0
        %v2748 = vadd.f32 0.0, %v2747
        %v2749 = vpop.f32.mrf.mxu0
        %v2750 = vadd.f32 0.0, %v2749
        %2751 = vmatmul.bf16.gmra.mxu0 %v2162
        %v2752 = vpop.f32.mrf.mxu0
        %v2753 = vadd.f32 0.0, %v2752
        %v2754 = vpop.f32.mrf.mxu0
        %v2755 = vadd.f32 0.0, %v2754
        %2756 = vmatmul.bf16.gmra.mxu0 %v2163
        %v2757 = vpop.f32.mrf.mxu0
        %v2758 = vadd.f32 0.0, %v2757
        %v2759 = vpop.f32.mrf.mxu0
        %v2760 = vadd.f32 0.0, %v2759
        %2761 = vmatmul.bf16.gmra.mxu0 %v2164
        %v2762 = vpop.f32.mrf.mxu0
        %v2763 = vadd.f32 0.0, %v2762
        %v2764 = vpop.f32.mrf.mxu0
        %v2765 = vadd.f32 0.0, %v2764
        %2766 = vmatmul.bf16.gmra.mxu0 %v2165
        %v2767 = vpop.f32.mrf.mxu0
        %v2768 = vadd.f32 0.0, %v2767
        %v2769 = vpop.f32.mrf.mxu0
        %v2770 = vadd.f32 0.0, %v2769
        %2771 = vmatmul.bf16.gmra.mxu0 %v2166
        %v2772 = vpop.f32.mrf.mxu0
        %v2773 = vadd.f32 0.0, %v2772
        %v2774 = vpop.f32.mrf.mxu0
        %v2775 = vadd.f32 0.0, %v2774
        %2776 = vdwg.mxu0
        %v2777 = vadd.f32 %v2454, %v2669
        %v2778 = vadd.f32 %v2513, %v2728
        %v2779 = vadd.f32 %v2456, %v2671
        %v2780 = vadd.f32 %v2515, %v2730
        %v2781 = vadd.f32 %v2459, %v2674
        %v2782 = vadd.f32 %v2518, %v2733
        %v2783 = vadd.f32 %v2461, %v2676
        %v2784 = vadd.f32 %v2520, %v2735
        %v2785 = vadd.f32 %v2464, %v2679
        %v2786 = vadd.f32 %v2523, %v2738
        %v2787 = vadd.f32 %v2466, %v2681
        %v2788 = vadd.f32 %v2525, %v2740
        %v2789 = vadd.f32 %v2469, %v2684
        %v2790 = vadd.f32 %v2528, %v2743
        %v2791 = vadd.f32 %v2471, %v2686
        %v2792 = vadd.f32 %v2530, %v2745
        %v2793 = vadd.f32 %v2474, %v2689
        %v2794 = vadd.f32 %v2533, %v2748
        %v2795 = vadd.f32 %v2476, %v2691
        %v2796 = vadd.f32 %v2535, %v2750
        %v2797 = vadd.f32 %v2479, %v2694
        %v2798 = vadd.f32 %v2538, %v2753
        %v2799 = vadd.f32 %v2481, %v2696
        %v2800 = vadd.f32 %v2540, %v2755
        %v2801 = vadd.f32 %v2484, %v2699
        %v2802 = vadd.f32 %v2543, %v2758
        %v2803 = vadd.f32 %v2486, %v2701
        %v2804 = vadd.f32 %v2545, %v2760
        %v2805 = vadd.f32 %v2489, %v2704
        %v2806 = vadd.f32 %v2548, %v2763
        %v2807 = vadd.f32 %v2491, %v2706
        %v2808 = vadd.f32 %v2550, %v2765
        %v2809 = vadd.f32 %v2494, %v2709
        %v2810 = vadd.f32 %v2553, %v2768
        %v2811 = vadd.f32 %v2496, %v2711
        %v2812 = vadd.f32 %v2555, %v2770
        %v2813 = vadd.f32 %v2499, %v2714
        %v2814 = vadd.f32 %v2558, %v2773
        %v2815 = vadd.f32 %v2501, %v2716
        %v2816 = vadd.f32 %v2560, %v2775
        %v2817 = vrot.slane %v2119, 2
        %v2818 = vrot.slane %v2120, 2
        %v2819 = vrot.slane %v2121, 2
        %v2820 = vrot.slane %v2122, 2
        %v2821 = vrot.slane %v2123, 2
        %v2822 = vrot.slane %v2124, 2
        %v2823 = vrot.slane %v2125, 2
        %v2824 = vrot.slane %v2126, 2
        %v2825 = vrot.slane %v2127, 2
        %v2826 = vrot.slane %v2128, 2
        %v2827 = vrot.slane %v2129, 2
        %v2828 = vrot.slane %v2130, 2
        %v2829 = vrot.slane %v2131, 2
        %v2830 = vrot.slane %v2132, 2
        %v2831 = vrot.slane %v2133, 2
        %v2832 = vrot.slane %v2134, 2
        %v2833 = vrot.slane %v2135, 2
        %v2834 = vrot.slane %v2136, 2
        %v2835 = vrot.slane %v2137, 2
        %v2836 = vrot.slane %v2138, 2
        %vm2837 = vcmp.lt.s32.totalorder %v404, 6
        %v2838 = vsel %vm2837, %v2835, %v2836
        %v2839 = vsel %vm2837, %v2834, %v2835
        %v2840 = vsel %vm2837, %v2833, %v2834
        %v2841 = vsel %vm2837, %v2832, %v2833
        %v2842 = vsel %vm2837, %v2831, %v2832
        %v2843 = vsel %vm2837, %v2830, %v2831
        %v2844 = vsel %vm2837, %v2829, %v2830
        %v2845 = vsel %vm2837, %v2828, %v2829
        %v2846 = vsel %vm2837, %v2827, %v2828
        %v2847 = vsel %vm2837, %v2826, %v2827
        %v2848 = vsel %vm2837, %v2825, %v2826
        %v2849 = vsel %vm2837, %v2824, %v2825
        %v2850 = vsel %vm2837, %v2823, %v2824
        %v2851 = vsel %vm2837, %v2822, %v2823
        %v2852 = vsel %vm2837, %v2821, %v2822
        %v2853 = vsel %vm2837, %v2820, %v2821
        %v2854 = vsel %vm2837, %v2819, %v2820
        %v2855 = vsel %vm2837, %v2818, %v2819
        %v2856 = vsel %vm2837, %v2817, %v2818
        %v2857 = vsel %vm2837, %v2836, %v2817
        %v2858 = vpack.c.bf16 %v2855, %v2856
        %v2859 = vpack.c.bf16 %v2853, %v2854
        %v2860 = vpack.c.bf16 %v2851, %v2852
        %v2861 = vpack.c.bf16 %v2849, %v2850
        %v2862 = vpack.c.bf16 %v2847, %v2848
        %v2863 = vpack.c.bf16 %v2845, %v2846
        %v2864 = vpack.c.bf16 %v2843, %v2844
        %v2865 = vpack.c.bf16 %v2841, %v2842
        %v2866 = vpack.c.bf16 %v2839, %v2840
        %v2867 = vpack.c.bf16 %v2857, %v2838
        %s2868 = scalar_lea.vmem [#allocation2], 640
        %v2869 = vld [vmem:[%s2868] sm:$0xff]
        %v2870 = vld [vmem:[%s2868 + $0x8] sm:$0xff]
        %v2871 = vld [vmem:[%s2868 + $0x10] sm:$0xff]
        %v2872 = vld [vmem:[%s2868 + $0x18] sm:$0xff]
        %v2873 = vld [vmem:[%s2868 + $0x20] sm:$0xff]
        %v2874 = vld [vmem:[%s2868 + $0x28] sm:$0xff]
        %v2875 = vld [vmem:[%s2868 + $0x30] sm:$0xff]
        %v2876 = vld [vmem:[%s2868 + $0x38] sm:$0xff]
        %v2877 = vld [vmem:[%s2868 + $0x40] sm:$0xff]
        %v2878 = vld [vmem:[%s2868 + $0x48] sm:$0xff]
        %v2879 = vld [vmem:[%s2868 + $0x50] sm:$0xff]
        %v2880 = vld [vmem:[%s2868 + $0x58] sm:$0xff]
        %v2881 = vld [vmem:[%s2868 + $0x60] sm:$0xff]
        %v2882 = vld [vmem:[%s2868 + $0x68] sm:$0xff]
        %v2883 = vld [vmem:[%s2868 + $0x70] sm:$0xff]
        %v2884 = vld [vmem:[%s2868 + $0x78] sm:$0xff]
        %v2901 = vunpack.c.l.b16 %v2869
        %v2902 = vunpack.c.h.b16 %v2869
        %v2903 = vunpack.c.l.b16 %v2870
        %v2904 = vunpack.c.h.b16 %v2870
        %v2905 = vunpack.c.l.b16 %v2871
        %v2906 = vunpack.c.h.b16 %v2871
        %v2907 = vunpack.c.l.b16 %v2872
        %v2908 = vunpack.c.h.b16 %v2872
        %v2909 = vunpack.c.l.b16 %v2873
        %v2910 = vunpack.c.h.b16 %v2873
        %v2911 = vunpack.c.l.b16 %v2874
        %v2912 = vunpack.c.h.b16 %v2874
        %v2913 = vunpack.c.l.b16 %v2875
        %v2914 = vunpack.c.h.b16 %v2875
        %v2915 = vunpack.c.l.b16 %v2876
        %v2916 = vunpack.c.h.b16 %v2876
        %v2917 = vunpack.c.l.b16 %v2877
        %v2918 = vunpack.c.h.b16 %v2877
        %v2919 = vunpack.c.l.b16 %v2878
        %v2920 = vunpack.c.h.b16 %v2878
        %v2921 = vunpack.c.l.b16 %v2879
        %v2922 = vunpack.c.h.b16 %v2879
        %v2923 = vunpack.c.l.b16 %v2880
        %v2924 = vunpack.c.h.b16 %v2880
        %v2925 = vunpack.c.l.b16 %v2881
        %v2926 = vunpack.c.h.b16 %v2881
        %v2927 = vunpack.c.l.b16 %v2882
        %v2928 = vunpack.c.h.b16 %v2882
        %v2929 = vunpack.c.l.b16 %v2883
        %v2930 = vunpack.c.h.b16 %v2883
        %v2931 = vunpack.c.l.b16 %v2884
        %v2932 = vunpack.c.h.b16 %v2884
        %v2933 = vpack.c.b16 %v2903, %v2901
        %v2934 = vpack.c.b16 %v2904, %v2902
        %v2935 = vpack.c.b16 %v2907, %v2905
        %v2936 = vpack.c.b16 %v2908, %v2906
        %v2937 = vpack.c.b16 %v2911, %v2909
        %v2938 = vpack.c.b16 %v2912, %v2910
        %v2939 = vpack.c.b16 %v2915, %v2913
        %v2940 = vpack.c.b16 %v2916, %v2914
        %v2941 = vpack.c.b16 %v2919, %v2917
        %v2942 = vpack.c.b16 %v2920, %v2918
        %v2943 = vpack.c.b16 %v2923, %v2921
        %v2944 = vpack.c.b16 %v2924, %v2922
        %v2945 = vpack.c.b16 %v2927, %v2925
        %v2946 = vpack.c.b16 %v2928, %v2926
        %v2947 = vpack.c.b16 %v2931, %v2929
        %v2948 = vpack.c.b16 %v2932, %v2930
        %2965 = vmatpush.bf16.msra.mxu0 %v2947
        %2966 = vmatpush.bf16.msra.mxu0 %v2945
        %2967 = vmatpush.bf16.msra.mxu0 %v2943
        %2968 = vmatpush.bf16.msra.mxu0 %v2941
        %2969 = vmatpush.bf16.msra.mxu0 %v2939
        %2970 = vmatpush.bf16.msra.mxu0 %v2937
        %2971 = vmatpush.bf16.msra.mxu0 %v2935
        %2972 = vmatpush.bf16.msra.mxu0 %v2933
        %2973 = vmatmul.bf16.gmra.mxu0 %v2858
        %v2974 = vpop.f32.mrf.mxu0
        %v2975 = vadd.f32 0.0, %v2974
        %v2976 = vpop.f32.mrf.mxu0
        %v2977 = vadd.f32 0.0, %v2976
        %2978 = vmatmul.bf16.gmra.mxu0 %v2859
        %v2979 = vpop.f32.mrf.mxu0
        %v2980 = vadd.f32 0.0, %v2979
        %v2981 = vpop.f32.mrf.mxu0
        %v2982 = vadd.f32 0.0, %v2981
        %2983 = vmatmul.bf16.gmra.mxu0 %v2860
        %v2984 = vpop.f32.mrf.mxu0
        %v2985 = vadd.f32 0.0, %v2984
        %v2986 = vpop.f32.mrf.mxu0
        %v2987 = vadd.f32 0.0, %v2986
        %2988 = vmatmul.bf16.gmra.mxu0 %v2861
        %v2989 = vpop.f32.mrf.mxu0
        %v2990 = vadd.f32 0.0, %v2989
        %v2991 = vpop.f32.mrf.mxu0
        %v2992 = vadd.f32 0.0, %v2991
        %2993 = vmatmul.bf16.gmra.mxu0 %v2862
        %v2994 = vpop.f32.mrf.mxu0
        %v2995 = vadd.f32 0.0, %v2994
        %v2996 = vpop.f32.mrf.mxu0
        %v2997 = vadd.f32 0.0, %v2996
        %2998 = vmatmul.bf16.gmra.mxu0 %v2863
        %v2999 = vpop.f32.mrf.mxu0
        %v3000 = vadd.f32 0.0, %v2999
        %v3001 = vpop.f32.mrf.mxu0
        %v3002 = vadd.f32 0.0, %v3001
        %3003 = vmatmul.bf16.gmra.mxu0 %v2864
        %v3004 = vpop.f32.mrf.mxu0
        %v3005 = vadd.f32 0.0, %v3004
        %v3006 = vpop.f32.mrf.mxu0
        %v3007 = vadd.f32 0.0, %v3006
        %3008 = vmatmul.bf16.gmra.mxu0 %v2865
        %v3009 = vpop.f32.mrf.mxu0
        %v3010 = vadd.f32 0.0, %v3009
        %v3011 = vpop.f32.mrf.mxu0
        %v3012 = vadd.f32 0.0, %v3011
        %3013 = vmatmul.bf16.gmra.mxu0 %v2866
        %v3014 = vpop.f32.mrf.mxu0
        %v3015 = vadd.f32 0.0, %v3014
        %v3016 = vpop.f32.mrf.mxu0
        %v3017 = vadd.f32 0.0, %v3016
        %3018 = vmatmul.bf16.gmra.mxu0 %v2867
        %v3019 = vpop.f32.mrf.mxu0
        %v3020 = vadd.f32 0.0, %v3019
        %v3021 = vpop.f32.mrf.mxu0
        %v3022 = vadd.f32 0.0, %v3021
        %3023 = vdwg.mxu0
        %3024 = vmatpush.bf16.msra.mxu0 %v2948
        %3025 = vmatpush.bf16.msra.mxu0 %v2946
        %3026 = vmatpush.bf16.msra.mxu0 %v2944
        %3027 = vmatpush.bf16.msra.mxu0 %v2942
        %3028 = vmatpush.bf16.msra.mxu0 %v2940
        %3029 = vmatpush.bf16.msra.mxu0 %v2938
        %3030 = vmatpush.bf16.msra.mxu0 %v2936
        %3031 = vmatpush.bf16.msra.mxu0 %v2934
        %3032 = vmatmul.bf16.gmra.mxu0 %v2858
        %v3033 = vpop.f32.mrf.mxu0
        %v3034 = vadd.f32 0.0, %v3033
        %v3035 = vpop.f32.mrf.mxu0
        %v3036 = vadd.f32 0.0, %v3035
        %3037 = vmatmul.bf16.gmra.mxu0 %v2859
        %v3038 = vpop.f32.mrf.mxu0
        %v3039 = vadd.f32 0.0, %v3038
        %v3040 = vpop.f32.mrf.mxu0
        %v3041 = vadd.f32 0.0, %v3040
        %3042 = vmatmul.bf16.gmra.mxu0 %v2860
        %v3043 = vpop.f32.mrf.mxu0
        %v3044 = vadd.f32 0.0, %v3043
        %v3045 = vpop.f32.mrf.mxu0
        %v3046 = vadd.f32 0.0, %v3045
        %3047 = vmatmul.bf16.gmra.mxu0 %v2861
        %v3048 = vpop.f32.mrf.mxu0
        %v3049 = vadd.f32 0.0, %v3048
        %v3050 = vpop.f32.mrf.mxu0
        %v3051 = vadd.f32 0.0, %v3050
        %3052 = vmatmul.bf16.gmra.mxu0 %v2862
        %v3053 = vpop.f32.mrf.mxu0
        %v3054 = vadd.f32 0.0, %v3053
        %v3055 = vpop.f32.mrf.mxu0
        %v3056 = vadd.f32 0.0, %v3055
        %3057 = vmatmul.bf16.gmra.mxu0 %v2863
        %v3058 = vpop.f32.mrf.mxu0
        %v3059 = vadd.f32 0.0, %v3058
        %v3060 = vpop.f32.mrf.mxu0
        %v3061 = vadd.f32 0.0, %v3060
        %3062 = vmatmul.bf16.gmra.mxu0 %v2864
        %v3063 = vpop.f32.mrf.mxu0
        %v3064 = vadd.f32 0.0, %v3063
        %v3065 = vpop.f32.mrf.mxu0
        %v3066 = vadd.f32 0.0, %v3065
        %3067 = vmatmul.bf16.gmra.mxu0 %v2865
        %v3068 = vpop.f32.mrf.mxu0
        %v3069 = vadd.f32 0.0, %v3068
        %v3070 = vpop.f32.mrf.mxu0
        %v3071 = vadd.f32 0.0, %v3070
        %3072 = vmatmul.bf16.gmra.mxu0 %v2866
        %v3073 = vpop.f32.mrf.mxu0
        %v3074 = vadd.f32 0.0, %v3073
        %v3075 = vpop.f32.mrf.mxu0
        %v3076 = vadd.f32 0.0, %v3075
        %3077 = vmatmul.bf16.gmra.mxu0 %v2867
        %v3078 = vpop.f32.mrf.mxu0
        %v3079 = vadd.f32 0.0, %v3078
        %v3080 = vpop.f32.mrf.mxu0
        %v3081 = vadd.f32 0.0, %v3080
        %3082 = vdwg.mxu0
        %v3083 = vadd.f32 %v2777, %v2975
        %v3084 = vadd.f32 %v2778, %v3034
        %v3085 = vadd.f32 %v2779, %v2977
        %v3086 = vadd.f32 %v2780, %v3036
        %v3087 = vadd.f32 %v2781, %v2980
        %v3088 = vadd.f32 %v2782, %v3039
        %v3089 = vadd.f32 %v2783, %v2982
        %v3090 = vadd.f32 %v2784, %v3041
        %v3091 = vadd.f32 %v2785, %v2985
        %v3092 = vadd.f32 %v2786, %v3044
        %v3093 = vadd.f32 %v2787, %v2987
        %v3094 = vadd.f32 %v2788, %v3046
        %v3095 = vadd.f32 %v2789, %v2990
        %v3096 = vadd.f32 %v2790, %v3049
        %v3097 = vadd.f32 %v2791, %v2992
        %v3098 = vadd.f32 %v2792, %v3051
        %v3099 = vadd.f32 %v2793, %v2995
        %v3100 = vadd.f32 %v2794, %v3054
        %v3101 = vadd.f32 %v2795, %v2997
        %v3102 = vadd.f32 %v2796, %v3056
        %v3103 = vadd.f32 %v2797, %v3000
        %v3104 = vadd.f32 %v2798, %v3059
        %v3105 = vadd.f32 %v2799, %v3002
        %v3106 = vadd.f32 %v2800, %v3061
        %v3107 = vadd.f32 %v2801, %v3005
        %v3108 = vadd.f32 %v2802, %v3064
        %v3109 = vadd.f32 %v2803, %v3007
        %v3110 = vadd.f32 %v2804, %v3066
        %v3111 = vadd.f32 %v2805, %v3010
        %v3112 = vadd.f32 %v2806, %v3069
        %v3113 = vadd.f32 %v2807, %v3012
        %v3114 = vadd.f32 %v2808, %v3071
        %v3115 = vadd.f32 %v2809, %v3015
        %v3116 = vadd.f32 %v2810, %v3074
        %v3117 = vadd.f32 %v2811, %v3017
        %v3118 = vadd.f32 %v2812, %v3076
        %v3119 = vadd.f32 %v2813, %v3020
        %v3120 = vadd.f32 %v2814, %v3079
        %v3121 = vadd.f32 %v2815, %v3022
        %v3122 = vadd.f32 %v2816, %v3081
        %v3123 = vtanh.pop %v3083
        %v3124 = vtanh.pop %v3085
        %v3125 = vtanh.pop %v3087
        %v3126 = vtanh.pop %v3089
        %v3127 = vtanh.pop %v3091
        %v3128 = vtanh.pop %v3093
        %v3129 = vtanh.pop %v3095
        %v3130 = vtanh.pop %v3097
        %v3131 = vtanh.pop %v3099
        %v3132 = vtanh.pop %v3101
        %v3133 = vtanh.pop %v3103
        %v3134 = vtanh.pop %v3105
        %v3135 = vtanh.pop %v3107
        %v3136 = vtanh.pop %v3109
        %v3137 = vtanh.pop %v3111
        %v3138 = vtanh.pop %v3113
        %v3139 = vtanh.pop %v3115
        %v3140 = vtanh.pop %v3117
        %v3141 = vtanh.pop %v3119
        %v3142 = vtanh.pop %v3121
        %v3143 = vsub.f32 0.0, %v3084
        %v3144 = vsub.f32 0.0, %v3086
        %v3145 = vsub.f32 0.0, %v3088
        %v3146 = vsub.f32 0.0, %v3090
        %v3147 = vsub.f32 0.0, %v3092
        %v3148 = vsub.f32 0.0, %v3094
        %v3149 = vsub.f32 0.0, %v3096
        %v3150 = vsub.f32 0.0, %v3098
        %v3151 = vsub.f32 0.0, %v3100
        %v3152 = vsub.f32 0.0, %v3102
        %v3153 = vsub.f32 0.0, %v3104
        %v3154 = vsub.f32 0.0, %v3106
        %v3155 = vsub.f32 0.0, %v3108
        %v3156 = vsub.f32 0.0, %v3110
        %v3157 = vsub.f32 0.0, %v3112
        %v3158 = vsub.f32 0.0, %v3114
        %v3159 = vsub.f32 0.0, %v3116
        %v3160 = vsub.f32 0.0, %v3118
        %v3161 = vsub.f32 0.0, %v3120
        %v3162 = vsub.f32 0.0, %v3122
        %v3163 = vmul.f32 %v3143, 1.442695
        %v3164 = vpow.pop %v3163
        %v3165 = vmul.f32 %v3144, 1.442695
        %v3166 = vpow.pop %v3165
        %v3167 = vmul.f32 %v3145, 1.442695
        %v3168 = vpow.pop %v3167
        %v3169 = vmul.f32 %v3146, 1.442695
        %v3170 = vpow.pop %v3169
        %v3171 = vmul.f32 %v3147, 1.442695
        %v3172 = vpow.pop %v3171
        %v3173 = vmul.f32 %v3148, 1.442695
        %v3174 = vpow.pop %v3173
        %v3175 = vmul.f32 %v3149, 1.442695
        %v3176 = vpow.pop %v3175
        %v3177 = vmul.f32 %v3150, 1.442695
        %v3178 = vpow.pop %v3177
        %v3179 = vmul.f32 %v3151, 1.442695
        %v3180 = vpow.pop %v3179
        %v3181 = vmul.f32 %v3152, 1.442695
        %v3182 = vpow.pop %v3181
        %v3183 = vmul.f32 %v3153, 1.442695
        %v3184 = vpow.pop %v3183
        %v3185 = vmul.f32 %v3154, 1.442695
        %v3186 = vpow.pop %v3185
        %v3187 = vmul.f32 %v3155, 1.442695
        %v3188 = vpow.pop %v3187
        %v3189 = vmul.f32 %v3156, 1.442695
        %v3190 = vpow.pop %v3189
        %v3191 = vmul.f32 %v3157, 1.442695
        %v3192 = vpow.pop %v3191
        %v3193 = vmul.f32 %v3158, 1.442695
        %v3194 = vpow.pop %v3193
        %v3195 = vmul.f32 %v3159, 1.442695
        %v3196 = vpow.pop %v3195
        %v3197 = vmul.f32 %v3160, 1.442695
        %v3198 = vpow.pop %v3197
        %v3199 = vmul.f32 %v3161, 1.442695
        %v3200 = vpow.pop %v3199
        %v3201 = vmul.f32 %v3162, 1.442695
        %v3202 = vpow.pop %v3201
        %v3203 = vadd.f32 %v3164, 1.0
        %v3204 = vadd.f32 %v3166, 1.0
        %v3205 = vadd.f32 %v3168, 1.0
        %v3206 = vadd.f32 %v3170, 1.0
        %v3207 = vadd.f32 %v3172, 1.0
        %v3208 = vadd.f32 %v3174, 1.0
        %v3209 = vadd.f32 %v3176, 1.0
        %v3210 = vadd.f32 %v3178, 1.0
        %v3211 = vadd.f32 %v3180, 1.0
        %v3212 = vadd.f32 %v3182, 1.0
        %v3213 = vadd.f32 %v3184, 1.0
        %v3214 = vadd.f32 %v3186, 1.0
        %v3215 = vadd.f32 %v3188, 1.0
        %v3216 = vadd.f32 %v3190, 1.0
        %v3217 = vadd.f32 %v3192, 1.0
        %v3218 = vadd.f32 %v3194, 1.0
        %v3219 = vadd.f32 %v3196, 1.0
        %v3220 = vadd.f32 %v3198, 1.0
        %v3221 = vadd.f32 %v3200, 1.0
        %v3222 = vadd.f32 %v3202, 1.0
        %v3223 = vrcp.pop %v3203
        %v3224 = vrcp.pop %v3204
        %v3225 = vrcp.pop %v3205
        %v3226 = vrcp.pop %v3206
        %v3227 = vrcp.pop %v3207
        %v3228 = vrcp.pop %v3208
        %v3229 = vrcp.pop %v3209
        %v3230 = vrcp.pop %v3210
        %v3231 = vrcp.pop %v3211
        %v3232 = vrcp.pop %v3212
        %v3233 = vrcp.pop %v3213
        %v3234 = vrcp.pop %v3214
        %v3235 = vrcp.pop %v3215
        %v3236 = vrcp.pop %v3216
        %v3237 = vrcp.pop %v3217
        %v3238 = vrcp.pop %v3218
        %v3239 = vrcp.pop %v3219
        %v3240 = vrcp.pop %v3220
        %v3241 = vrcp.pop %v3221
        %v3242 = vrcp.pop %v3222
        %v3243 = vmul.f32 %v3123, %v3223
        %v3244 = vmul.f32 %v3124, %v3224
        %v3245 = vmul.f32 %v3125, %v3225
        %v3246 = vmul.f32 %v3126, %v3226
        %v3247 = vmul.f32 %v3127, %v3227
        %v3248 = vmul.f32 %v3128, %v3228
        %v3249 = vmul.f32 %v3129, %v3229
        %v3250 = vmul.f32 %v3130, %v3230
        %v3251 = vmul.f32 %v3131, %v3231
        %v3252 = vmul.f32 %v3132, %v3232
        %v3253 = vmul.f32 %v3133, %v3233
        %v3254 = vmul.f32 %v3134, %v3234
        %v3255 = vmul.f32 %v3135, %v3235
        %v3256 = vmul.f32 %v3136, %v3236
        %v3257 = vmul.f32 %v3137, %v3237
        %v3258 = vmul.f32 %v3138, %v3238
        %v3259 = vmul.f32 %v3139, %v3239
        %v3260 = vmul.f32 %v3140, %v3240
        %v3261 = vmul.f32 %v3141, %v3241
        %v3262 = vmul.f32 %v3142, %v3242
        %v3263 = vmul.f32 %v3243, %v526
        %v3264 = vmul.f32 %v3244, %v527
        %v3265 = vmul.f32 %v3245, %v528
        %v3266 = vmul.f32 %v3246, %v529
        %v3267 = vmul.f32 %v3247, %v530
        %v3268 = vmul.f32 %v3248, %v531
        %v3269 = vmul.f32 %v3249, %v532
        %v3270 = vmul.f32 %v3250, %v533
        %v3271 = vmul.f32 %v3251, %v534
        %v3272 = vmul.f32 %v3252, %v535
        %v3273 = vmul.f32 %v3253, %v536
        %v3274 = vmul.f32 %v3254, %v537
        %v3275 = vmul.f32 %v3255, %v538
        %v3276 = vmul.f32 %v3256, %v539
        %v3277 = vmul.f32 %v3257, %v540
        %v3278 = vmul.f32 %v3258, %v541
        %v3279 = vmul.f32 %v3259, %v542
        %v3280 = vmul.f32 %v3260, %v543
        %v3281 = vmul.f32 %v3261, %v544
        %v3282 = vmul.f32 %v3262, %v545
        %v3283 = vpack.c.bf16 %v3264, %v3263
        %v3284 = vpack.c.bf16 %v3266, %v3265
        %v3285 = vpack.c.bf16 %v3268, %v3267
        %v3286 = vpack.c.bf16 %v3270, %v3269
        %v3287 = vpack.c.bf16 %v3272, %v3271
        %v3288 = vpack.c.bf16 %v3274, %v3273
        %v3289 = vpack.c.bf16 %v3276, %v3275
        %v3290 = vpack.c.bf16 %v3278, %v3277
        %v3291 = vpack.c.bf16 %v3280, %v3279
        %v3292 = vpack.c.bf16 %v3282, %v3281
        %s3293 = scalar_lea.vmem %s5, 128
        %v3294 = vld [vmem:[%s3293] sm:$0xff]
        %v3295 = vld [vmem:[%s3293 + $0x8] sm:$0xff]
        %v3296 = vld [vmem:[%s3293 + $0x10] sm:$0xff]
        %v3297 = vld [vmem:[%s3293 + $0x18] sm:$0xff]
        %v3298 = vld [vmem:[%s3293 + $0x20] sm:$0xff]
        %v3299 = vld [vmem:[%s3293 + $0x28] sm:$0xff]
        %v3300 = vld [vmem:[%s3293 + $0x30] sm:$0xff]
        %v3301 = vld [vmem:[%s3293 + $0x38] sm:$0xff]
        %v3302 = vld [vmem:[%s3293 + $0x40] sm:$0xff]
        %v3303 = vld [vmem:[%s3293 + $0x48] sm:$0xff]
        %v3304 = vld [vmem:[%s3293 + $0x50] sm:$0xff]
        %v3305 = vld [vmem:[%s3293 + $0x58] sm:$0xff]
        %v3306 = vld [vmem:[%s3293 + $0x60] sm:$0xff]
        %v3307 = vld [vmem:[%s3293 + $0x68] sm:$0xff]
        %v3308 = vld [vmem:[%s3293 + $0x70] sm:$0xff]
        %v3309 = vld [vmem:[%s3293 + $0x78] sm:$0xff]
        %v3326 = vunpack.c.l.b16 %v3294
        %v3327 = vunpack.c.h.b16 %v3294
        %v3328 = vunpack.c.l.b16 %v3295
        %v3329 = vunpack.c.h.b16 %v3295
        %v3330 = vunpack.c.l.b16 %v3296
        %v3331 = vunpack.c.h.b16 %v3296
        %v3332 = vunpack.c.l.b16 %v3297
        %v3333 = vunpack.c.h.b16 %v3297
        %v3334 = vunpack.c.l.b16 %v3298
        %v3335 = vunpack.c.h.b16 %v3298
        %v3336 = vunpack.c.l.b16 %v3299
        %v3337 = vunpack.c.h.b16 %v3299
        %v3338 = vunpack.c.l.b16 %v3300
        %v3339 = vunpack.c.h.b16 %v3300
        %v3340 = vunpack.c.l.b16 %v3301
        %v3341 = vunpack.c.h.b16 %v3301
        %v3342 = vunpack.c.l.b16 %v3302
        %v3343 = vunpack.c.h.b16 %v3302
        %v3344 = vunpack.c.l.b16 %v3303
        %v3345 = vunpack.c.h.b16 %v3303
        %v3346 = vunpack.c.l.b16 %v3304
        %v3347 = vunpack.c.h.b16 %v3304
        %v3348 = vunpack.c.l.b16 %v3305
        %v3349 = vunpack.c.h.b16 %v3305
        %v3350 = vunpack.c.l.b16 %v3306
        %v3351 = vunpack.c.h.b16 %v3306
        %v3352 = vunpack.c.l.b16 %v3307
        %v3353 = vunpack.c.h.b16 %v3307
        %v3354 = vunpack.c.l.b16 %v3308
        %v3355 = vunpack.c.h.b16 %v3308
        %v3356 = vunpack.c.l.b16 %v3309
        %v3357 = vunpack.c.h.b16 %v3309
        %v3358 = vpack.c.b16 %v3328, %v3326
        %v3359 = vpack.c.b16 %v3329, %v3327
        %v3360 = vpack.c.b16 %v3332, %v3330
        %v3361 = vpack.c.b16 %v3333, %v3331
        %v3362 = vpack.c.b16 %v3336, %v3334
        %v3363 = vpack.c.b16 %v3337, %v3335
        %v3364 = vpack.c.b16 %v3340, %v3338
        %v3365 = vpack.c.b16 %v3341, %v3339
        %v3366 = vpack.c.b16 %v3344, %v3342
        %v3367 = vpack.c.b16 %v3345, %v3343
        %v3368 = vpack.c.b16 %v3348, %v3346
        %v3369 = vpack.c.b16 %v3349, %v3347
        %v3370 = vpack.c.b16 %v3352, %v3350
        %v3371 = vpack.c.b16 %v3353, %v3351
        %v3372 = vpack.c.b16 %v3356, %v3354
        %v3373 = vpack.c.b16 %v3357, %v3355
        %3390 = vmatpush.bf16.msra.mxu0 %v3372
        %3391 = vmatpush.bf16.msra.mxu0 %v3370
        %3392 = vmatpush.bf16.msra.mxu0 %v3368
        %3393 = vmatpush.bf16.msra.mxu0 %v3366
        %3394 = vmatpush.bf16.msra.mxu0 %v3364
        %3395 = vmatpush.bf16.msra.mxu0 %v3362
        %3396 = vmatpush.bf16.msra.mxu0 %v3360
        %3397 = vmatpush.bf16.msra.mxu0 %v3358
        %3398 = vmatmul.bf16.gmra.mxu0 %v3283
        %v3399 = vpop.f32.mrf.mxu0
        %v3400 = vadd.f32 0.0, %v3399
        %v3401 = vpop.f32.mrf.mxu0
        %v3402 = vadd.f32 0.0, %v3401
        %3403 = vmatmul.bf16.gmra.mxu0 %v3284
        %v3404 = vpop.f32.mrf.mxu0
        %v3405 = vadd.f32 0.0, %v3404
        %v3406 = vpop.f32.mrf.mxu0
        %v3407 = vadd.f32 0.0, %v3406
        %3408 = vmatmul.bf16.gmra.mxu0 %v3285
        %v3409 = vpop.f32.mrf.mxu0
        %v3410 = vadd.f32 0.0, %v3409
        %v3411 = vpop.f32.mrf.mxu0
        %v3412 = vadd.f32 0.0, %v3411
        %3413 = vmatmul.bf16.gmra.mxu0 %v3286
        %v3414 = vpop.f32.mrf.mxu0
        %v3415 = vadd.f32 0.0, %v3414
        %v3416 = vpop.f32.mrf.mxu0
        %v3417 = vadd.f32 0.0, %v3416
        %3418 = vmatmul.bf16.gmra.mxu0 %v3287
        %v3419 = vpop.f32.mrf.mxu0
        %v3420 = vadd.f32 0.0, %v3419
        %v3421 = vpop.f32.mrf.mxu0
        %v3422 = vadd.f32 0.0, %v3421
        %3423 = vmatmul.bf16.gmra.mxu0 %v3288
        %v3424 = vpop.f32.mrf.mxu0
        %v3425 = vadd.f32 0.0, %v3424
        %v3426 = vpop.f32.mrf.mxu0
        %v3427 = vadd.f32 0.0, %v3426
        %3428 = vmatmul.bf16.gmra.mxu0 %v3289
        %v3429 = vpop.f32.mrf.mxu0
        %v3430 = vadd.f32 0.0, %v3429
        %v3431 = vpop.f32.mrf.mxu0
        %v3432 = vadd.f32 0.0, %v3431
        %3433 = vmatmul.bf16.gmra.mxu0 %v3290
        %v3434 = vpop.f32.mrf.mxu0
        %v3435 = vadd.f32 0.0, %v3434
        %v3436 = vpop.f32.mrf.mxu0
        %v3437 = vadd.f32 0.0, %v3436
        %3438 = vmatmul.bf16.gmra.mxu0 %v3291
        %v3439 = vpop.f32.mrf.mxu0
        %v3440 = vadd.f32 0.0, %v3439
        %v3441 = vpop.f32.mrf.mxu0
        %v3442 = vadd.f32 0.0, %v3441
        %3443 = vmatmul.bf16.gmra.mxu0 %v3292
        %v3444 = vpop.f32.mrf.mxu0
        %v3445 = vadd.f32 0.0, %v3444
        %v3446 = vpop.f32.mrf.mxu0
        %v3447 = vadd.f32 0.0, %v3446
        %3448 = vdwg.mxu0
        %3449 = vmatpush.bf16.msra.mxu0 %v3373
        %3450 = vmatpush.bf16.msra.mxu0 %v3371
        %3451 = vmatpush.bf16.msra.mxu0 %v3369
        %3452 = vmatpush.bf16.msra.mxu0 %v3367
        %3453 = vmatpush.bf16.msra.mxu0 %v3365
        %3454 = vmatpush.bf16.msra.mxu0 %v3363
        %3455 = vmatpush.bf16.msra.mxu0 %v3361
        %3456 = vmatpush.bf16.msra.mxu0 %v3359
        %3457 = vmatmul.bf16.gmra.mxu0 %v3283
        %v3458 = vpop.f32.mrf.mxu0
        %v3459 = vpop.f32.mrf.mxu0
        %3460 = vmatmul.bf16.gmra.mxu0 %v3284
        %v3461 = vpop.f32.mrf.mxu0
        %v3462 = vadd.f32 0.0, %v3461
        %v3463 = vpop.f32.mrf.mxu0
        %v3464 = vadd.f32 0.0, %v3463
        %3465 = vmatmul.bf16.gmra.mxu0 %v3285
        %v3466 = vpop.f32.mrf.mxu0
        %v3467 = vadd.f32 0.0, %v3466
        %v3468 = vpop.f32.mrf.mxu0
        %v3469 = vadd.f32 0.0, %v3468
        %3470 = vmatmul.bf16.gmra.mxu0 %v3286
        %v3471 = vpop.f32.mrf.mxu0
        %v3472 = vadd.f32 0.0, %v3471
        %v3473 = vpop.f32.mrf.mxu0
        %v3474 = vadd.f32 0.0, %v3473
        %3475 = vmatmul.bf16.gmra.mxu0 %v3287
        %v3476 = vpop.f32.mrf.mxu0
        %v3477 = vadd.f32 0.0, %v3476
        %v3478 = vpop.f32.mrf.mxu0
        %v3479 = vadd.f32 0.0, %v3478
        %3480 = vmatmul.bf16.gmra.mxu0 %v3288
        %v3481 = vpop.f32.mrf.mxu0
        %v3482 = vadd.f32 0.0, %v3481
        %v3483 = vpop.f32.mrf.mxu0
        %v3484 = vadd.f32 0.0, %v3483
        %3485 = vmatmul.bf16.gmra.mxu0 %v3289
        %v3486 = vpop.f32.mrf.mxu0
        %v3487 = vadd.f32 0.0, %v3486
        %v3488 = vpop.f32.mrf.mxu0
        %v3489 = vadd.f32 0.0, %v3488
        %3490 = vmatmul.bf16.gmra.mxu0 %v3290
        %v3491 = vpop.f32.mrf.mxu0
        %v3492 = vadd.f32 0.0, %v3491
        %v3493 = vpop.f32.mrf.mxu0
        %v3494 = vadd.f32 0.0, %v3493
        %3495 = vmatmul.bf16.gmra.mxu0 %v3291
        %v3496 = vpop.f32.mrf.mxu0
        %v3497 = vadd.f32 0.0, %v3496
        %v3498 = vpop.f32.mrf.mxu0
        %v3499 = vadd.f32 0.0, %v3498
        %3500 = vmatmul.bf16.gmra.mxu0 %v3292
        %v3501 = vpop.f32.mrf.mxu0
        %v3502 = vpop.f32.mrf.mxu0
        %3503 = vdwg.mxu0
        %v3504 = vadd.f32 %v2119, %v3400
        %v3505 = vadd.f32 %v2120, %v3402
        %v3506 = vadd.f32 %v2121, %v3405
        %v3507 = vadd.f32 %v2122, %v3407
        %v3508 = vadd.f32 %v2123, %v3410
        %v3509 = vadd.f32 %v2124, %v3412
        %v3510 = vadd.f32 %v2125, %v3415
        %v3511 = vadd.f32 %v2126, %v3417
        %v3512 = vadd.f32 %v2127, %v3420
        %v3513 = vadd.f32 %v2128, %v3422
        %v3514 = vadd.f32 %v2129, %v3425
        %v3515 = vadd.f32 %v2130, %v3427
        %v3516 = vadd.f32 %v2131, %v3430
        %v3517 = vadd.f32 %v2132, %v3432
        %v3518 = vadd.f32 %v2133, %v3435
        %v3519 = vadd.f32 %v2134, %v3437
        %v3520 = vadd.f32 %v2135, %v3440
        %v3521 = vadd.f32 %v2136, %v3442
        %v3522 = vadd.f32 %v2137, %v3445
        %v3523 = vadd.f32 %v2138, %v3447
        %v3524 = vadd.f32 %v2139, %v3462
        %v3525 = vadd.f32 %v2140, %v3464
        %v3526 = vadd.f32 %v2141, %v3467
        %v3527 = vadd.f32 %v2142, %v3469
        %v3528 = vadd.f32 %v2143, %v3472
        %v3529 = vadd.f32 %v2144, %v3474
        %v3530 = vadd.f32 %v2145, %v3477
        %v3531 = vadd.f32 %v2146, %v3479
        %v3532 = vadd.f32 %v2147, %v3482
        %v3533 = vadd.f32 %v2148, %v3484
        %v3534 = vadd.f32 %v2149, %v3487
        %v3535 = vadd.f32 %v2150, %v3489
        %v3536 = vadd.f32 %v2151, %v3492
        %v3537 = vadd.f32 %v2152, %v3494
        %v3538 = vadd.f32 %v2153, %v3497
        %v3539 = vadd.f32 %v2154, %v3499
        %s3540 = scalar_lea.vmem %s3, 16
        %v3541 = vld [vmem:[%s3540] sm:$0x77]
        %v3542 = vpack.c.bf16 %v3505, %v3504
        %v3543 = vpack.c.bf16 %v3507, %v3506
        %v3544 = vpack.c.bf16 %v3509, %v3508
        %v3545 = vpack.c.bf16 %v3511, %v3510
        %v3546 = vpack.c.bf16 %v3513, %v3512
        %v3547 = vpack.c.bf16 %v3515, %v3514
        %v3548 = vpack.c.bf16 %v3517, %v3516
        %v3549 = vpack.c.bf16 %v3519, %v3518
        %v3550 = vpack.c.bf16 %v3521, %v3520
        %v3551 = vpack.c.bf16 %v3523, %v3522
        %v3552 = vrot.slane %v3504, 4
        %v3553 = vrot.slane %v3505, 4
        %v3554 = vrot.slane %v3506, 4
        %v3555 = vrot.slane %v3507, 4
        %v3556 = vrot.slane %v3508, 4
        %v3557 = vrot.slane %v3509, 4
        %v3558 = vrot.slane %v3510, 4
        %v3559 = vrot.slane %v3511, 4
        %v3560 = vrot.slane %v3512, 4
        %v3561 = vrot.slane %v3513, 4
        %v3562 = vrot.slane %v3514, 4
        %v3563 = vrot.slane %v3515, 4
        %v3564 = vrot.slane %v3516, 4
        %v3565 = vrot.slane %v3517, 4
        %v3566 = vrot.slane %v3518, 4
        %v3567 = vrot.slane %v3519, 4
        %v3568 = vrot.slane %v3520, 4
        %v3569 = vrot.slane %v3521, 4
        %v3570 = vrot.slane %v3522, 4
        %v3571 = vrot.slane %v3523, 4
        %vm3572 = vcmp.lt.s32.totalorder %v404, 4
        %v3573 = vsel %vm3572, %v3570, %v3571
        %v3574 = vsel %vm3572, %v3569, %v3570
        %v3575 = vsel %vm3572, %v3568, %v3569
        %v3576 = vsel %vm3572, %v3567, %v3568
        %v3577 = vsel %vm3572, %v3566, %v3567
        %v3578 = vsel %vm3572, %v3565, %v3566
        %v3579 = vsel %vm3572, %v3564, %v3565
        %v3580 = vsel %vm3572, %v3563, %v3564
        %v3581 = vsel %vm3572, %v3562, %v3563
        %v3582 = vsel %vm3572, %v3561, %v3562
        %v3583 = vsel %vm3572, %v3560, %v3561
        %v3584 = vsel %vm3572, %v3559, %v3560
        %v3585 = vsel %vm3572, %v3558, %v3559
        %v3586 = vsel %vm3572, %v3557, %v3558
        %v3587 = vsel %vm3572, %v3556, %v3557
        %v3588 = vsel %vm3572, %v3555, %v3556
        %v3589 = vsel %vm3572, %v3554, %v3555
        %v3590 = vsel %vm3572, %v3553, %v3554
        %v3591 = vsel %vm3572, %v3552, %v3553
        %v3592 = vsel %vm3572, %v3571, %v3552
        %v3593 = vpack.c.bf16 %v3591, %v3592
        %v3594 = vpack.c.bf16 %v3589, %v3590
        %v3595 = vpack.c.bf16 %v3587, %v3588
        %v3596 = vpack.c.bf16 %v3585, %v3586
        %v3597 = vpack.c.bf16 %v3583, %v3584
        %v3598 = vpack.c.bf16 %v3581, %v3582
        %v3599 = vpack.c.bf16 %v3579, %v3580
        %v3600 = vpack.c.bf16 %v3577, %v3578
        %v3601 = vpack.c.bf16 %v3575, %v3576
        %v3602 = vpack.c.bf16 %v3573, %v3574
        %s3603 = scalar_lea.vmem [#allocation2], 768
        %v3604 = vld [vmem:[%s3603] sm:$0xff]
        %v3605 = vld [vmem:[%s3603 + $0x8] sm:$0xff]
        %v3606 = vld [vmem:[%s3603 + $0x10] sm:$0xff]
        %v3607 = vld [vmem:[%s3603 + $0x18] sm:$0xff]
        %v3608 = vld [vmem:[%s3603 + $0x20] sm:$0xff]
        %v3609 = vld [vmem:[%s3603 + $0x28] sm:$0xff]
        %v3610 = vld [vmem:[%s3603 + $0x30] sm:$0xff]
        %v3611 = vld [vmem:[%s3603 + $0x38] sm:$0xff]
        %v3612 = vld [vmem:[%s3603 + $0x40] sm:$0xff]
        %v3613 = vld [vmem:[%s3603 + $0x48] sm:$0xff]
        %v3614 = vld [vmem:[%s3603 + $0x50] sm:$0xff]
        %v3615 = vld [vmem:[%s3603 + $0x58] sm:$0xff]
        %v3616 = vld [vmem:[%s3603 + $0x60] sm:$0xff]
        %v3617 = vld [vmem:[%s3603 + $0x68] sm:$0xff]
        %v3618 = vld [vmem:[%s3603 + $0x70] sm:$0xff]
        %v3619 = vld [vmem:[%s3603 + $0x78] sm:$0xff]
        %v3636 = vunpack.c.l.b16 %v3604
        %v3637 = vunpack.c.h.b16 %v3604
        %v3638 = vunpack.c.l.b16 %v3605
        %v3639 = vunpack.c.h.b16 %v3605
        %v3640 = vunpack.c.l.b16 %v3606
        %v3641 = vunpack.c.h.b16 %v3606
        %v3642 = vunpack.c.l.b16 %v3607
        %v3643 = vunpack.c.h.b16 %v3607
        %v3644 = vunpack.c.l.b16 %v3608
        %v3645 = vunpack.c.h.b16 %v3608
        %v3646 = vunpack.c.l.b16 %v3609
        %v3647 = vunpack.c.h.b16 %v3609
        %v3648 = vunpack.c.l.b16 %v3610
        %v3649 = vunpack.c.h.b16 %v3610
        %v3650 = vunpack.c.l.b16 %v3611
        %v3651 = vunpack.c.h.b16 %v3611
        %v3652 = vunpack.c.l.b16 %v3612
        %v3653 = vunpack.c.h.b16 %v3612
        %v3654 = vunpack.c.l.b16 %v3613
        %v3655 = vunpack.c.h.b16 %v3613
        %v3656 = vunpack.c.l.b16 %v3614
        %v3657 = vunpack.c.h.b16 %v3614
        %v3658 = vunpack.c.l.b16 %v3615
        %v3659 = vunpack.c.h.b16 %v3615
        %v3660 = vunpack.c.l.b16 %v3616
        %v3661 = vunpack.c.h.b16 %v3616
        %v3662 = vunpack.c.l.b16 %v3617
        %v3663 = vunpack.c.h.b16 %v3617
        %v3664 = vunpack.c.l.b16 %v3618
        %v3665 = vunpack.c.h.b16 %v3618
        %v3666 = vunpack.c.l.b16 %v3619
        %v3667 = vunpack.c.h.b16 %v3619
        %v3668 = vpack.c.b16 %v3638, %v3636
        %v3669 = vpack.c.b16 %v3639, %v3637
        %v3670 = vpack.c.b16 %v3642, %v3640
        %v3671 = vpack.c.b16 %v3643, %v3641
        %v3672 = vpack.c.b16 %v3646, %v3644
        %v3673 = vpack.c.b16 %v3647, %v3645
        %v3674 = vpack.c.b16 %v3650, %v3648
        %v3675 = vpack.c.b16 %v3651, %v3649
        %v3676 = vpack.c.b16 %v3654, %v3652
        %v3677 = vpack.c.b16 %v3655, %v3653
        %v3678 = vpack.c.b16 %v3658, %v3656
        %v3679 = vpack.c.b16 %v3659, %v3657
        %v3680 = vpack.c.b16 %v3662, %v3660
        %v3681 = vpack.c.b16 %v3663, %v3661
        %v3682 = vpack.c.b16 %v3666, %v3664
        %v3683 = vpack.c.b16 %v3667, %v3665
        %3700 = vmatpush.bf16.msra.mxu0 %v3682
        %3701 = vmatpush.bf16.msra.mxu0 %v3680
        %3702 = vmatpush.bf16.msra.mxu0 %v3678
        %3703 = vmatpush.bf16.msra.mxu0 %v3676
        %3704 = vmatpush.bf16.msra.mxu0 %v3674
        %3705 = vmatpush.bf16.msra.mxu0 %v3672
        %3706 = vmatpush.bf16.msra.mxu0 %v3670
        %3707 = vmatpush.bf16.msra.mxu0 %v3668
        %3708 = vmatmul.bf16.gmra.mxu0 %v3593
        %v3709 = vpop.f32.mrf.mxu0
        %v3710 = vadd.f32 0.0, %v3709
        %v3711 = vpop.f32.mrf.mxu0
        %v3712 = vadd.f32 0.0, %v3711
        %3713 = vmatmul.bf16.gmra.mxu0 %v3594
        %v3714 = vpop.f32.mrf.mxu0
        %v3715 = vadd.f32 0.0, %v3714
        %v3716 = vpop.f32.mrf.mxu0
        %v3717 = vadd.f32 0.0, %v3716
        %3718 = vmatmul.bf16.gmra.mxu0 %v3595
        %v3719 = vpop.f32.mrf.mxu0
        %v3720 = vadd.f32 0.0, %v3719
        %v3721 = vpop.f32.mrf.mxu0
        %v3722 = vadd.f32 0.0, %v3721
        %3723 = vmatmul.bf16.gmra.mxu0 %v3596
        %v3724 = vpop.f32.mrf.mxu0
        %v3725 = vadd.f32 0.0, %v3724
        %v3726 = vpop.f32.mrf.mxu0
        %v3727 = vadd.f32 0.0, %v3726
        %3728 = vmatmul.bf16.gmra.mxu0 %v3597
        %v3729 = vpop.f32.mrf.mxu0
        %v3730 = vadd.f32 0.0, %v3729
        %v3731 = vpop.f32.mrf.mxu0
        %v3732 = vadd.f32 0.0, %v3731
        %3733 = vmatmul.bf16.gmra.mxu0 %v3598
        %v3734 = vpop.f32.mrf.mxu0
        %v3735 = vadd.f32 0.0, %v3734
        %v3736 = vpop.f32.mrf.mxu0
        %v3737 = vadd.f32 0.0, %v3736
        %3738 = vmatmul.bf16.gmra.mxu0 %v3599
        %v3739 = vpop.f32.mrf.mxu0
        %v3740 = vadd.f32 0.0, %v3739
        %v3741 = vpop.f32.mrf.mxu0
        %v3742 = vadd.f32 0.0, %v3741
        %3743 = vmatmul.bf16.gmra.mxu0 %v3600
        %v3744 = vpop.f32.mrf.mxu0
        %v3745 = vadd.f32 0.0, %v3744
        %v3746 = vpop.f32.mrf.mxu0
        %v3747 = vadd.f32 0.0, %v3746
        %3748 = vmatmul.bf16.gmra.mxu0 %v3601
        %v3749 = vpop.f32.mrf.mxu0
        %v3750 = vadd.f32 0.0, %v3749
        %v3751 = vpop.f32.mrf.mxu0
        %v3752 = vadd.f32 0.0, %v3751
        %3753 = vmatmul.bf16.gmra.mxu0 %v3602
        %v3754 = vpop.f32.mrf.mxu0
        %v3755 = vadd.f32 0.0, %v3754
        %v3756 = vpop.f32.mrf.mxu0
        %v3757 = vadd.f32 0.0, %v3756
        %3758 = vdwg.mxu0
        %3759 = vmatpush.bf16.msra.mxu0 %v3683
        %3760 = vmatpush.bf16.msra.mxu0 %v3681
        %3761 = vmatpush.bf16.msra.mxu0 %v3679
        %3762 = vmatpush.bf16.msra.mxu0 %v3677
        %3763 = vmatpush.bf16.msra.mxu0 %v3675
        %3764 = vmatpush.bf16.msra.mxu0 %v3673
        %3765 = vmatpush.bf16.msra.mxu0 %v3671
        %3766 = vmatpush.bf16.msra.mxu0 %v3669
        %3767 = vmatmul.bf16.gmra.mxu0 %v3593
        %v3768 = vpop.f32.mrf.mxu0
        %v3769 = vadd.f32 0.0, %v3768
        %v3770 = vpop.f32.mrf.mxu0
        %v3771 = vadd.f32 0.0, %v3770
        %3772 = vmatmul.bf16.gmra.mxu0 %v3594
        %v3773 = vpop.f32.mrf.mxu0
        %v3774 = vadd.f32 0.0, %v3773
        %v3775 = vpop.f32.mrf.mxu0
        %v3776 = vadd.f32 0.0, %v3775
        %3777 = vmatmul.bf16.gmra.mxu0 %v3595
        %v3778 = vpop.f32.mrf.mxu0
        %v3779 = vadd.f32 0.0, %v3778
        %v3780 = vpop.f32.mrf.mxu0
        %v3781 = vadd.f32 0.0, %v3780
        %3782 = vmatmul.bf16.gmra.mxu0 %v3596
        %v3783 = vpop.f32.mrf.mxu0
        %v3784 = vadd.f32 0.0, %v3783
        %v3785 = vpop.f32.mrf.mxu0
        %v3786 = vadd.f32 0.0, %v3785
        %3787 = vmatmul.bf16.gmra.mxu0 %v3597
        %v3788 = vpop.f32.mrf.mxu0
        %v3789 = vadd.f32 0.0, %v3788
        %v3790 = vpop.f32.mrf.mxu0
        %v3791 = vadd.f32 0.0, %v3790
        %3792 = vmatmul.bf16.gmra.mxu0 %v3598
        %v3793 = vpop.f32.mrf.mxu0
        %v3794 = vadd.f32 0.0, %v3793
        %v3795 = vpop.f32.mrf.mxu0
        %v3796 = vadd.f32 0.0, %v3795
        %3797 = vmatmul.bf16.gmra.mxu0 %v3599
        %v3798 = vpop.f32.mrf.mxu0
        %v3799 = vadd.f32 0.0, %v3798
        %v3800 = vpop.f32.mrf.mxu0
        %v3801 = vadd.f32 0.0, %v3800
        %3802 = vmatmul.bf16.gmra.mxu0 %v3600
        %v3803 = vpop.f32.mrf.mxu0
        %v3804 = vadd.f32 0.0, %v3803
        %v3805 = vpop.f32.mrf.mxu0
        %v3806 = vadd.f32 0.0, %v3805
        %3807 = vmatmul.bf16.gmra.mxu0 %v3601
        %v3808 = vpop.f32.mrf.mxu0
        %v3809 = vadd.f32 0.0, %v3808
        %v3810 = vpop.f32.mrf.mxu0
        %v3811 = vadd.f32 0.0, %v3810
        %3812 = vmatmul.bf16.gmra.mxu0 %v3602
        %v3813 = vpop.f32.mrf.mxu0
        %v3814 = vadd.f32 0.0, %v3813
        %v3815 = vpop.f32.mrf.mxu0
        %v3816 = vadd.f32 0.0, %v3815
        %3817 = vdwg.mxu0
        %v3819 = vunpack.c.l.b16 %v3541
        %v3820 = vunpack.c.h.b16 %v3541
        %v3821 = vpack.c.b16 %v3819, %v3819
        %v3822 = vpack.c.b16 %v3820, %v3820
        %v3824 = vsel %vm1053, %v3821, 0
        %v3827 = vsel %vm1053, %v3822, 0
        %3829 = vmatpush.bf16.msra.mxu0 0
        %3830 = vmatpush.bf16.msra.mxu0 0
        %3831 = vmatpush.bf16.msra.mxu0 0
        %3832 = vmatpush.bf16.msra.mxu0 0
        %3833 = vmatpush.bf16.msra.mxu0 0
        %3834 = vmatpush.bf16.msra.mxu0 0
        %3835 = vmatpush.bf16.msra.mxu0 0
        %3836 = vmatpush.bf16.msra.mxu0 %v3824
        %3837 = vmatmul.bf16.gmra.mxu0 %v1024
        %v3838 = vpop.f32.mrf.mxu0
        %v3839 = vadd.f32 %v3710, %v3838
        %v3840 = vpop.f32.mrf.mxu0
        %v3841 = vadd.f32 %v3712, %v3840
        %3842 = vmatmul.bf16.gmra.mxu0 %v1027
        %v3843 = vpop.f32.mrf.mxu0
        %v3844 = vadd.f32 %v3715, %v3843
        %v3845 = vpop.f32.mrf.mxu0
        %v3846 = vadd.f32 %v3717, %v3845
        %3847 = vmatmul.bf16.gmra.mxu0 %v1030
        %v3848 = vpop.f32.mrf.mxu0
        %v3849 = vadd.f32 %v3720, %v3848
        %v3850 = vpop.f32.mrf.mxu0
        %v3851 = vadd.f32 %v3722, %v3850
        %3852 = vmatmul.bf16.gmra.mxu0 %v1033
        %v3853 = vpop.f32.mrf.mxu0
        %v3854 = vadd.f32 %v3725, %v3853
        %v3855 = vpop.f32.mrf.mxu0
        %v3856 = vadd.f32 %v3727, %v3855
        %3857 = vmatmul.bf16.gmra.mxu0 %v1036
        %v3858 = vpop.f32.mrf.mxu0
        %v3859 = vadd.f32 %v3730, %v3858
        %v3860 = vpop.f32.mrf.mxu0
        %v3861 = vadd.f32 %v3732, %v3860
        %3862 = vmatmul.bf16.gmra.mxu0 %v1039
        %v3863 = vpop.f32.mrf.mxu0
        %v3864 = vadd.f32 %v3735, %v3863
        %v3865 = vpop.f32.mrf.mxu0
        %v3866 = vadd.f32 %v3737, %v3865
        %3867 = vmatmul.bf16.gmra.mxu0 %v1042
        %v3868 = vpop.f32.mrf.mxu0
        %v3869 = vadd.f32 %v3740, %v3868
        %v3870 = vpop.f32.mrf.mxu0
        %v3871 = vadd.f32 %v3742, %v3870
        %3872 = vmatmul.bf16.gmra.mxu0 %v1045
        %v3873 = vpop.f32.mrf.mxu0
        %v3874 = vadd.f32 %v3745, %v3873
        %v3875 = vpop.f32.mrf.mxu0
        %v3876 = vadd.f32 %v3747, %v3875
        %3877 = vmatmul.bf16.gmra.mxu0 %v1048
        %v3878 = vpop.f32.mrf.mxu0
        %v3879 = vadd.f32 %v3750, %v3878
        %v3880 = vpop.f32.mrf.mxu0
        %v3881 = vadd.f32 %v3752, %v3880
        %3882 = vmatmul.bf16.gmra.mxu0 %v1051
        %v3883 = vpop.f32.mrf.mxu0
        %v3884 = vadd.f32 %v3755, %v3883
        %v3885 = vpop.f32.mrf.mxu0
        %v3886 = vadd.f32 %v3757, %v3885
        %3887 = vdwg.mxu0
        %3888 = vmatpush.bf16.msra.mxu0 0
        %3889 = vmatpush.bf16.msra.mxu0 0
        %3890 = vmatpush.bf16.msra.mxu0 0
        %3891 = vmatpush.bf16.msra.mxu0 0
        %3892 = vmatpush.bf16.msra.mxu0 0
        %3893 = vmatpush.bf16.msra.mxu0 0
        %3894 = vmatpush.bf16.msra.mxu0 0
        %3895 = vmatpush.bf16.msra.mxu0 %v3827
        %3896 = vmatmul.bf16.gmra.mxu0 %v1024
        %v3897 = vpop.f32.mrf.mxu0
        %v3898 = vadd.f32 %v3769, %v3897
        %v3899 = vpop.f32.mrf.mxu0
        %v3900 = vadd.f32 %v3771, %v3899
        %3901 = vmatmul.bf16.gmra.mxu0 %v1027
        %v3902 = vpop.f32.mrf.mxu0
        %v3903 = vadd.f32 %v3774, %v3902
        %v3904 = vpop.f32.mrf.mxu0
        %v3905 = vadd.f32 %v3776, %v3904
        %3906 = vmatmul.bf16.gmra.mxu0 %v1030
        %v3907 = vpop.f32.mrf.mxu0
        %v3908 = vadd.f32 %v3779, %v3907
        %v3909 = vpop.f32.mrf.mxu0
        %v3910 = vadd.f32 %v3781, %v3909
        %3911 = vmatmul.bf16.gmra.mxu0 %v1033
        %v3912 = vpop.f32.mrf.mxu0
        %v3913 = vadd.f32 %v3784, %v3912
        %v3914 = vpop.f32.mrf.mxu0
        %v3915 = vadd.f32 %v3786, %v3914
        %3916 = vmatmul.bf16.gmra.mxu0 %v1036
        %v3917 = vpop.f32.mrf.mxu0
        %v3918 = vadd.f32 %v3789, %v3917
        %v3919 = vpop.f32.mrf.mxu0
        %v3920 = vadd.f32 %v3791, %v3919
        %3921 = vmatmul.bf16.gmra.mxu0 %v1039
        %v3922 = vpop.f32.mrf.mxu0
        %v3923 = vadd.f32 %v3794, %v3922
        %v3924 = vpop.f32.mrf.mxu0
        %v3925 = vadd.f32 %v3796, %v3924
        %3926 = vmatmul.bf16.gmra.mxu0 %v1042
        %v3927 = vpop.f32.mrf.mxu0
        %v3928 = vadd.f32 %v3799, %v3927
        %v3929 = vpop.f32.mrf.mxu0
        %v3930 = vadd.f32 %v3801, %v3929
        %3931 = vmatmul.bf16.gmra.mxu0 %v1045
        %v3932 = vpop.f32.mrf.mxu0
        %v3933 = vadd.f32 %v3804, %v3932
        %v3934 = vpop.f32.mrf.mxu0
        %v3935 = vadd.f32 %v3806, %v3934
        %3936 = vmatmul.bf16.gmra.mxu0 %v1048
        %v3937 = vpop.f32.mrf.mxu0
        %v3938 = vadd.f32 %v3809, %v3937
        %v3939 = vpop.f32.mrf.mxu0
        %v3940 = vadd.f32 %v3811, %v3939
        %3941 = vmatmul.bf16.gmra.mxu0 %v1051
        %v3942 = vpop.f32.mrf.mxu0
        %v3943 = vadd.f32 %v3814, %v3942
        %v3944 = vpop.f32.mrf.mxu0
        %v3945 = vadd.f32 %v3816, %v3944
        %3946 = vdwg.mxu0
        %s3947 = scalar_lea.vmem [#allocation2], 896
        %v3948 = vld [vmem:[%s3947] sm:$0xff]
        %v3949 = vld [vmem:[%s3947 + $0x8] sm:$0xff]
        %v3950 = vld [vmem:[%s3947 + $0x10] sm:$0xff]
        %v3951 = vld [vmem:[%s3947 + $0x18] sm:$0xff]
        %v3952 = vld [vmem:[%s3947 + $0x20] sm:$0xff]
        %v3953 = vld [vmem:[%s3947 + $0x28] sm:$0xff]
        %v3954 = vld [vmem:[%s3947 + $0x30] sm:$0xff]
        %v3955 = vld [vmem:[%s3947 + $0x38] sm:$0xff]
        %v3956 = vld [vmem:[%s3947 + $0x40] sm:$0xff]
        %v3957 = vld [vmem:[%s3947 + $0x48] sm:$0xff]
        %v3958 = vld [vmem:[%s3947 + $0x50] sm:$0xff]
        %v3959 = vld [vmem:[%s3947 + $0x58] sm:$0xff]
        %v3960 = vld [vmem:[%s3947 + $0x60] sm:$0xff]
        %v3961 = vld [vmem:[%s3947 + $0x68] sm:$0xff]
        %v3962 = vld [vmem:[%s3947 + $0x70] sm:$0xff]
        %v3963 = vld [vmem:[%s3947 + $0x78] sm:$0xff]
        %v3980 = vunpack.c.l.b16 %v3948
        %v3981 = vunpack.c.h.b16 %v3948
        %v3982 = vunpack.c.l.b16 %v3949
        %v3983 = vunpack.c.h.b16 %v3949
        %v3984 = vunpack.c.l.b16 %v3950
        %v3985 = vunpack.c.h.b16 %v3950
        %v3986 = vunpack.c.l.b16 %v3951
        %v3987 = vunpack.c.h.b16 %v3951
        %v3988 = vunpack.c.l.b16 %v3952
        %v3989 = vunpack.c.h.b16 %v3952
        %v3990 = vunpack.c.l.b16 %v3953
        %v3991 = vunpack.c.h.b16 %v3953
        %v3992 = vunpack.c.l.b16 %v3954
        %v3993 = vunpack.c.h.b16 %v3954
        %v3994 = vunpack.c.l.b16 %v3955
        %v3995 = vunpack.c.h.b16 %v3955
        %v3996 = vunpack.c.l.b16 %v3956
        %v3997 = vunpack.c.h.b16 %v3956
        %v3998 = vunpack.c.l.b16 %v3957
        %v3999 = vunpack.c.h.b16 %v3957
        %v4000 = vunpack.c.l.b16 %v3958
        %v4001 = vunpack.c.h.b16 %v3958
        %v4002 = vunpack.c.l.b16 %v3959
        %v4003 = vunpack.c.h.b16 %v3959
        %v4004 = vunpack.c.l.b16 %v3960
        %v4005 = vunpack.c.h.b16 %v3960
        %v4006 = vunpack.c.l.b16 %v3961
        %v4007 = vunpack.c.h.b16 %v3961
        %v4008 = vunpack.c.l.b16 %v3962
        %v4009 = vunpack.c.h.b16 %v3962
        %v4010 = vunpack.c.l.b16 %v3963
        %v4011 = vunpack.c.h.b16 %v3963
        %v4012 = vpack.c.b16 %v3982, %v3980
        %v4013 = vpack.c.b16 %v3983, %v3981
        %v4014 = vpack.c.b16 %v3986, %v3984
        %v4015 = vpack.c.b16 %v3987, %v3985
        %v4016 = vpack.c.b16 %v3990, %v3988
        %v4017 = vpack.c.b16 %v3991, %v3989
        %v4018 = vpack.c.b16 %v3994, %v3992
        %v4019 = vpack.c.b16 %v3995, %v3993
        %v4020 = vpack.c.b16 %v3998, %v3996
        %v4021 = vpack.c.b16 %v3999, %v3997
        %v4022 = vpack.c.b16 %v4002, %v4000
        %v4023 = vpack.c.b16 %v4003, %v4001
        %v4024 = vpack.c.b16 %v4006, %v4004
        %v4025 = vpack.c.b16 %v4007, %v4005
        %v4026 = vpack.c.b16 %v4010, %v4008
        %v4027 = vpack.c.b16 %v4011, %v4009
        %4044 = vmatpush.bf16.msra.mxu0 %v4026
        %4045 = vmatpush.bf16.msra.mxu0 %v4024
        %4046 = vmatpush.bf16.msra.mxu0 %v4022
        %4047 = vmatpush.bf16.msra.mxu0 %v4020
        %4048 = vmatpush.bf16.msra.mxu0 %v4018
        %4049 = vmatpush.bf16.msra.mxu0 %v4016
        %4050 = vmatpush.bf16.msra.mxu0 %v4014
        %4051 = vmatpush.bf16.msra.mxu0 %v4012
        %4052 = vmatmul.bf16.gmra.mxu0 %v3542
        %v4053 = vpop.f32.mrf.mxu0
        %v4054 = vadd.f32 0.0, %v4053
        %v4055 = vpop.f32.mrf.mxu0
        %v4056 = vadd.f32 0.0, %v4055
        %4057 = vmatmul.bf16.gmra.mxu0 %v3543
        %v4058 = vpop.f32.mrf.mxu0
        %v4059 = vadd.f32 0.0, %v4058
        %v4060 = vpop.f32.mrf.mxu0
        %v4061 = vadd.f32 0.0, %v4060
        %4062 = vmatmul.bf16.gmra.mxu0 %v3544
        %v4063 = vpop.f32.mrf.mxu0
        %v4064 = vadd.f32 0.0, %v4063
        %v4065 = vpop.f32.mrf.mxu0
        %v4066 = vadd.f32 0.0, %v4065
        %4067 = vmatmul.bf16.gmra.mxu0 %v3545
        %v4068 = vpop.f32.mrf.mxu0
        %v4069 = vadd.f32 0.0, %v4068
        %v4070 = vpop.f32.mrf.mxu0
        %v4071 = vadd.f32 0.0, %v4070
        %4072 = vmatmul.bf16.gmra.mxu0 %v3546
        %v4073 = vpop.f32.mrf.mxu0
        %v4074 = vadd.f32 0.0, %v4073
        %v4075 = vpop.f32.mrf.mxu0
        %v4076 = vadd.f32 0.0, %v4075
        %4077 = vmatmul.bf16.gmra.mxu0 %v3547
        %v4078 = vpop.f32.mrf.mxu0
        %v4079 = vadd.f32 0.0, %v4078
        %v4080 = vpop.f32.mrf.mxu0
        %v4081 = vadd.f32 0.0, %v4080
        %4082 = vmatmul.bf16.gmra.mxu0 %v3548
        %v4083 = vpop.f32.mrf.mxu0
        %v4084 = vadd.f32 0.0, %v4083
        %v4085 = vpop.f32.mrf.mxu0
        %v4086 = vadd.f32 0.0, %v4085
        %4087 = vmatmul.bf16.gmra.mxu0 %v3549
        %v4088 = vpop.f32.mrf.mxu0
        %v4089 = vadd.f32 0.0, %v4088
        %v4090 = vpop.f32.mrf.mxu0
        %v4091 = vadd.f32 0.0, %v4090
        %4092 = vmatmul.bf16.gmra.mxu0 %v3550
        %v4093 = vpop.f32.mrf.mxu0
        %v4094 = vadd.f32 0.0, %v4093
        %v4095 = vpop.f32.mrf.mxu0
        %v4096 = vadd.f32 0.0, %v4095
        %4097 = vmatmul.bf16.gmra.mxu0 %v3551
        %v4098 = vpop.f32.mrf.mxu0
        %v4099 = vadd.f32 0.0, %v4098
        %v4100 = vpop.f32.mrf.mxu0
        %v4101 = vadd.f32 0.0, %v4100
        %4102 = vdwg.mxu0
        %4103 = vmatpush.bf16.msra.mxu0 %v4027
        %4104 = vmatpush.bf16.msra.mxu0 %v4025
        %4105 = vmatpush.bf16.msra.mxu0 %v4023
        %4106 = vmatpush.bf16.msra.mxu0 %v4021
        %4107 = vmatpush.bf16.msra.mxu0 %v4019
        %4108 = vmatpush.bf16.msra.mxu0 %v4017
        %4109 = vmatpush.bf16.msra.mxu0 %v4015
        %4110 = vmatpush.bf16.msra.mxu0 %v4013
        %4111 = vmatmul.bf16.gmra.mxu0 %v3542
        %v4112 = vpop.f32.mrf.mxu0
        %v4113 = vadd.f32 0.0, %v4112
        %v4114 = vpop.f32.mrf.mxu0
        %v4115 = vadd.f32 0.0, %v4114
        %4116 = vmatmul.bf16.gmra.mxu0 %v3543
        %v4117 = vpop.f32.mrf.mxu0
        %v4118 = vadd.f32 0.0, %v4117
        %v4119 = vpop.f32.mrf.mxu0
        %v4120 = vadd.f32 0.0, %v4119
        %4121 = vmatmul.bf16.gmra.mxu0 %v3544
        %v4122 = vpop.f32.mrf.mxu0
        %v4123 = vadd.f32 0.0, %v4122
        %v4124 = vpop.f32.mrf.mxu0
        %v4125 = vadd.f32 0.0, %v4124
        %4126 = vmatmul.bf16.gmra.mxu0 %v3545
        %v4127 = vpop.f32.mrf.mxu0
        %v4128 = vadd.f32 0.0, %v4127
        %v4129 = vpop.f32.mrf.mxu0
        %v4130 = vadd.f32 0.0, %v4129
        %4131 = vmatmul.bf16.gmra.mxu0 %v3546
        %v4132 = vpop.f32.mrf.mxu0
        %v4133 = vadd.f32 0.0, %v4132
        %v4134 = vpop.f32.mrf.mxu0
        %v4135 = vadd.f32 0.0, %v4134
        %4136 = vmatmul.bf16.gmra.mxu0 %v3547
        %v4137 = vpop.f32.mrf.mxu0
        %v4138 = vadd.f32 0.0, %v4137
        %v4139 = vpop.f32.mrf.mxu0
        %v4140 = vadd.f32 0.0, %v4139
        %4141 = vmatmul.bf16.gmra.mxu0 %v3548
        %v4142 = vpop.f32.mrf.mxu0
        %v4143 = vadd.f32 0.0, %v4142
        %v4144 = vpop.f32.mrf.mxu0
        %v4145 = vadd.f32 0.0, %v4144
        %4146 = vmatmul.bf16.gmra.mxu0 %v3549
        %v4147 = vpop.f32.mrf.mxu0
        %v4148 = vadd.f32 0.0, %v4147
        %v4149 = vpop.f32.mrf.mxu0
        %v4150 = vadd.f32 0.0, %v4149
        %4151 = vmatmul.bf16.gmra.mxu0 %v3550
        %v4152 = vpop.f32.mrf.mxu0
        %v4153 = vadd.f32 0.0, %v4152
        %v4154 = vpop.f32.mrf.mxu0
        %v4155 = vadd.f32 0.0, %v4154
        %4156 = vmatmul.bf16.gmra.mxu0 %v3551
        %v4157 = vpop.f32.mrf.mxu0
        %v4158 = vadd.f32 0.0, %v4157
        %v4159 = vpop.f32.mrf.mxu0
        %v4160 = vadd.f32 0.0, %v4159
        %4161 = vdwg.mxu0
        %v4162 = vadd.f32 %v3839, %v4054
        %v4163 = vadd.f32 %v3898, %v4113
        %v4164 = vadd.f32 %v3841, %v4056
        %v4165 = vadd.f32 %v3900, %v4115
        %v4166 = vadd.f32 %v3844, %v4059
        %v4167 = vadd.f32 %v3903, %v4118
        %v4168 = vadd.f32 %v3846, %v4061
        %v4169 = vadd.f32 %v3905, %v4120
        %v4170 = vadd.f32 %v3849, %v4064
        %v4171 = vadd.f32 %v3908, %v4123
        %v4172 = vadd.f32 %v3851, %v4066
        %v4173 = vadd.f32 %v3910, %v4125
        %v4174 = vadd.f32 %v3854, %v4069
        %v4175 = vadd.f32 %v3913, %v4128
        %v4176 = vadd.f32 %v3856, %v4071
        %v4177 = vadd.f32 %v3915, %v4130
        %v4178 = vadd.f32 %v3859, %v4074
        %v4179 = vadd.f32 %v3918, %v4133
        %v4180 = vadd.f32 %v3861, %v4076
        %v4181 = vadd.f32 %v3920, %v4135
        %v4182 = vadd.f32 %v3864, %v4079
        %v4183 = vadd.f32 %v3923, %v4138
        %v4184 = vadd.f32 %v3866, %v4081
        %v4185 = vadd.f32 %v3925, %v4140
        %v4186 = vadd.f32 %v3869, %v4084
        %v4187 = vadd.f32 %v3928, %v4143
        %v4188 = vadd.f32 %v3871, %v4086
        %v4189 = vadd.f32 %v3930, %v4145
        %v4190 = vadd.f32 %v3874, %v4089
        %v4191 = vadd.f32 %v3933, %v4148
        %v4192 = vadd.f32 %v3876, %v4091
        %v4193 = vadd.f32 %v3935, %v4150
        %v4194 = vadd.f32 %v3879, %v4094
        %v4195 = vadd.f32 %v3938, %v4153
        %v4196 = vadd.f32 %v3881, %v4096
        %v4197 = vadd.f32 %v3940, %v4155
        %v4198 = vadd.f32 %v3884, %v4099
        %v4199 = vadd.f32 %v3943, %v4158
        %v4200 = vadd.f32 %v3886, %v4101
        %v4201 = vadd.f32 %v3945, %v4160
        %v4202 = vpack.c.bf16 %v3590, %v3591
        %v4203 = vpack.c.bf16 %v3588, %v3589
        %v4204 = vpack.c.bf16 %v3586, %v3587
        %v4205 = vpack.c.bf16 %v3584, %v3585
        %v4206 = vpack.c.bf16 %v3582, %v3583
        %v4207 = vpack.c.bf16 %v3580, %v3581
        %v4208 = vpack.c.bf16 %v3578, %v3579
        %v4209 = vpack.c.bf16 %v3576, %v3577
        %v4210 = vpack.c.bf16 %v3574, %v3575
        %v4211 = vpack.c.bf16 %v3592, %v3573
        %s4212 = scalar_lea.vmem [#allocation2], 1024
        %v4213 = vld [vmem:[%s4212] sm:$0xff]
        %v4214 = vld [vmem:[%s4212 + $0x8] sm:$0xff]
        %v4215 = vld [vmem:[%s4212 + $0x10] sm:$0xff]
        %v4216 = vld [vmem:[%s4212 + $0x18] sm:$0xff]
        %v4217 = vld [vmem:[%s4212 + $0x20] sm:$0xff]
        %v4218 = vld [vmem:[%s4212 + $0x28] sm:$0xff]
        %v4219 = vld [vmem:[%s4212 + $0x30] sm:$0xff]
        %v4220 = vld [vmem:[%s4212 + $0x38] sm:$0xff]
        %v4221 = vld [vmem:[%s4212 + $0x40] sm:$0xff]
        %v4222 = vld [vmem:[%s4212 + $0x48] sm:$0xff]
        %v4223 = vld [vmem:[%s4212 + $0x50] sm:$0xff]
        %v4224 = vld [vmem:[%s4212 + $0x58] sm:$0xff]
        %v4225 = vld [vmem:[%s4212 + $0x60] sm:$0xff]
        %v4226 = vld [vmem:[%s4212 + $0x68] sm:$0xff]
        %v4227 = vld [vmem:[%s4212 + $0x70] sm:$0xff]
        %v4228 = vld [vmem:[%s4212 + $0x78] sm:$0xff]
        %v4245 = vunpack.c.l.b16 %v4213
        %v4246 = vunpack.c.h.b16 %v4213
        %v4247 = vunpack.c.l.b16 %v4214
        %v4248 = vunpack.c.h.b16 %v4214
        %v4249 = vunpack.c.l.b16 %v4215
        %v4250 = vunpack.c.h.b16 %v4215
        %v4251 = vunpack.c.l.b16 %v4216
        %v4252 = vunpack.c.h.b16 %v4216
        %v4253 = vunpack.c.l.b16 %v4217
        %v4254 = vunpack.c.h.b16 %v4217
        %v4255 = vunpack.c.l.b16 %v4218
        %v4256 = vunpack.c.h.b16 %v4218
        %v4257 = vunpack.c.l.b16 %v4219
        %v4258 = vunpack.c.h.b16 %v4219
        %v4259 = vunpack.c.l.b16 %v4220
        %v4260 = vunpack.c.h.b16 %v4220
        %v4261 = vunpack.c.l.b16 %v4221
        %v4262 = vunpack.c.h.b16 %v4221
        %v4263 = vunpack.c.l.b16 %v4222
        %v4264 = vunpack.c.h.b16 %v4222
        %v4265 = vunpack.c.l.b16 %v4223
        %v4266 = vunpack.c.h.b16 %v4223
        %v4267 = vunpack.c.l.b16 %v4224
        %v4268 = vunpack.c.h.b16 %v4224
        %v4269 = vunpack.c.l.b16 %v4225
        %v4270 = vunpack.c.h.b16 %v4225
        %v4271 = vunpack.c.l.b16 %v4226
        %v4272 = vunpack.c.h.b16 %v4226
        %v4273 = vunpack.c.l.b16 %v4227
        %v4274 = vunpack.c.h.b16 %v4227
        %v4275 = vunpack.c.l.b16 %v4228
        %v4276 = vunpack.c.h.b16 %v4228
        %v4277 = vpack.c.b16 %v4247, %v4245
        %v4278 = vpack.c.b16 %v4248, %v4246
        %v4279 = vpack.c.b16 %v4251, %v4249
        %v4280 = vpack.c.b16 %v4252, %v4250
        %v4281 = vpack.c.b16 %v4255, %v4253
        %v4282 = vpack.c.b16 %v4256, %v4254
        %v4283 = vpack.c.b16 %v4259, %v4257
        %v4284 = vpack.c.b16 %v4260, %v4258
        %v4285 = vpack.c.b16 %v4263, %v4261
        %v4286 = vpack.c.b16 %v4264, %v4262
        %v4287 = vpack.c.b16 %v4267, %v4265
        %v4288 = vpack.c.b16 %v4268, %v4266
        %v4289 = vpack.c.b16 %v4271, %v4269
        %v4290 = vpack.c.b16 %v4272, %v4270
        %v4291 = vpack.c.b16 %v4275, %v4273
        %v4292 = vpack.c.b16 %v4276, %v4274
        %4309 = vmatpush.bf16.msra.mxu0 %v4291
        %4310 = vmatpush.bf16.msra.mxu0 %v4289
        %4311 = vmatpush.bf16.msra.mxu0 %v4287
        %4312 = vmatpush.bf16.msra.mxu0 %v4285
        %4313 = vmatpush.bf16.msra.mxu0 %v4283
        %4314 = vmatpush.bf16.msra.mxu0 %v4281
        %4315 = vmatpush.bf16.msra.mxu0 %v4279
        %4316 = vmatpush.bf16.msra.mxu0 %v4277
        %4317 = vmatmul.bf16.gmra.mxu0 %v4202
        %v4318 = vpop.f32.mrf.mxu0
        %v4319 = vadd.f32 0.0, %v4318
        %v4320 = vpop.f32.mrf.mxu0
        %v4321 = vadd.f32 0.0, %v4320
        %4322 = vmatmul.bf16.gmra.mxu0 %v4203
        %v4323 = vpop.f32.mrf.mxu0
        %v4324 = vadd.f32 0.0, %v4323
        %v4325 = vpop.f32.mrf.mxu0
        %v4326 = vadd.f32 0.0, %v4325
        %4327 = vmatmul.bf16.gmra.mxu0 %v4204
        %v4328 = vpop.f32.mrf.mxu0
        %v4329 = vadd.f32 0.0, %v4328
        %v4330 = vpop.f32.mrf.mxu0
        %v4331 = vadd.f32 0.0, %v4330
        %4332 = vmatmul.bf16.gmra.mxu0 %v4205
        %v4333 = vpop.f32.mrf.mxu0
        %v4334 = vadd.f32 0.0, %v4333
        %v4335 = vpop.f32.mrf.mxu0
        %v4336 = vadd.f32 0.0, %v4335
        %4337 = vmatmul.bf16.gmra.mxu0 %v4206
        %v4338 = vpop.f32.mrf.mxu0
        %v4339 = vadd.f32 0.0, %v4338
        %v4340 = vpop.f32.mrf.mxu0
        %v4341 = vadd.f32 0.0, %v4340
        %4342 = vmatmul.bf16.gmra.mxu0 %v4207
        %v4343 = vpop.f32.mrf.mxu0
        %v4344 = vadd.f32 0.0, %v4343
        %v4345 = vpop.f32.mrf.mxu0
        %v4346 = vadd.f32 0.0, %v4345
        %4347 = vmatmul.bf16.gmra.mxu0 %v4208
        %v4348 = vpop.f32.mrf.mxu0
        %v4349 = vadd.f32 0.0, %v4348
        %v4350 = vpop.f32.mrf.mxu0
        %v4351 = vadd.f32 0.0, %v4350
        %4352 = vmatmul.bf16.gmra.mxu0 %v4209
        %v4353 = vpop.f32.mrf.mxu0
        %v4354 = vadd.f32 0.0, %v4353
        %v4355 = vpop.f32.mrf.mxu0
        %v4356 = vadd.f32 0.0, %v4355
        %4357 = vmatmul.bf16.gmra.mxu0 %v4210
        %v4358 = vpop.f32.mrf.mxu0
        %v4359 = vadd.f32 0.0, %v4358
        %v4360 = vpop.f32.mrf.mxu0
        %v4361 = vadd.f32 0.0, %v4360
        %4362 = vmatmul.bf16.gmra.mxu0 %v4211
        %v4363 = vpop.f32.mrf.mxu0
        %v4364 = vadd.f32 0.0, %v4363
        %v4365 = vpop.f32.mrf.mxu0
        %v4366 = vadd.f32 0.0, %v4365
        %4367 = vdwg.mxu0
        %4368 = vmatpush.bf16.msra.mxu0 %v4292
        %4369 = vmatpush.bf16.msra.mxu0 %v4290
        %4370 = vmatpush.bf16.msra.mxu0 %v4288
        %4371 = vmatpush.bf16.msra.mxu0 %v4286
        %4372 = vmatpush.bf16.msra.mxu0 %v4284
        %4373 = vmatpush.bf16.msra.mxu0 %v4282
        %4374 = vmatpush.bf16.msra.mxu0 %v4280
        %4375 = vmatpush.bf16.msra.mxu0 %v4278
        %4376 = vmatmul.bf16.gmra.mxu0 %v4202
        %v4377 = vpop.f32.mrf.mxu0
        %v4378 = vadd.f32 0.0, %v4377
        %v4379 = vpop.f32.mrf.mxu0
        %v4380 = vadd.f32 0.0, %v4379
        %4381 = vmatmul.bf16.gmra.mxu0 %v4203
        %v4382 = vpop.f32.mrf.mxu0
        %v4383 = vadd.f32 0.0, %v4382
        %v4384 = vpop.f32.mrf.mxu0
        %v4385 = vadd.f32 0.0, %v4384
        %4386 = vmatmul.bf16.gmra.mxu0 %v4204
        %v4387 = vpop.f32.mrf.mxu0
        %v4388 = vadd.f32 0.0, %v4387
        %v4389 = vpop.f32.mrf.mxu0
        %v4390 = vadd.f32 0.0, %v4389
        %4391 = vmatmul.bf16.gmra.mxu0 %v4205
        %v4392 = vpop.f32.mrf.mxu0
        %v4393 = vadd.f32 0.0, %v4392
        %v4394 = vpop.f32.mrf.mxu0
        %v4395 = vadd.f32 0.0, %v4394
        %4396 = vmatmul.bf16.gmra.mxu0 %v4206
        %v4397 = vpop.f32.mrf.mxu0
        %v4398 = vadd.f32 0.0, %v4397
        %v4399 = vpop.f32.mrf.mxu0
        %v4400 = vadd.f32 0.0, %v4399
        %4401 = vmatmul.bf16.gmra.mxu0 %v4207
        %v4402 = vpop.f32.mrf.mxu0
        %v4403 = vadd.f32 0.0, %v4402
        %v4404 = vpop.f32.mrf.mxu0
        %v4405 = vadd.f32 0.0, %v4404
        %4406 = vmatmul.bf16.gmra.mxu0 %v4208
        %v4407 = vpop.f32.mrf.mxu0
        %v4408 = vadd.f32 0.0, %v4407
        %v4409 = vpop.f32.mrf.mxu0
        %v4410 = vadd.f32 0.0, %v4409
        %4411 = vmatmul.bf16.gmra.mxu0 %v4209
        %v4412 = vpop.f32.mrf.mxu0
        %v4413 = vadd.f32 0.0, %v4412
        %v4414 = vpop.f32.mrf.mxu0
        %v4415 = vadd.f32 0.0, %v4414
        %4416 = vmatmul.bf16.gmra.mxu0 %v4210
        %v4417 = vpop.f32.mrf.mxu0
        %v4418 = vadd.f32 0.0, %v4417
        %v4419 = vpop.f32.mrf.mxu0
        %v4420 = vadd.f32 0.0, %v4419
        %4421 = vmatmul.bf16.gmra.mxu0 %v4211
        %v4422 = vpop.f32.mrf.mxu0
        %v4423 = vadd.f32 0.0, %v4422
        %v4424 = vpop.f32.mrf.mxu0
        %v4425 = vadd.f32 0.0, %v4424
        %4426 = vdwg.mxu0
        %v4427 = vadd.f32 %v4162, %v4319
        %v4428 = vadd.f32 %v4163, %v4378
        %v4429 = vadd.f32 %v4164, %v4321
        %v4430 = vadd.f32 %v4165, %v4380
        %v4431 = vadd.f32 %v4166, %v4324
        %v4432 = vadd.f32 %v4167, %v4383
        %v4433 = vadd.f32 %v4168, %v4326
        %v4434 = vadd.f32 %v4169, %v4385
        %v4435 = vadd.f32 %v4170, %v4329
        %v4436 = vadd.f32 %v4171, %v4388
        %v4437 = vadd.f32 %v4172, %v4331
        %v4438 = vadd.f32 %v4173, %v4390
        %v4439 = vadd.f32 %v4174, %v4334
        %v4440 = vadd.f32 %v4175, %v4393
        %v4441 = vadd.f32 %v4176, %v4336
        %v4442 = vadd.f32 %v4177, %v4395
        %v4443 = vadd.f32 %v4178, %v4339
        %v4444 = vadd.f32 %v4179, %v4398
        %v4445 = vadd.f32 %v4180, %v4341
        %v4446 = vadd.f32 %v4181, %v4400
        %v4447 = vadd.f32 %v4182, %v4344
        %v4448 = vadd.f32 %v4183, %v4403
        %v4449 = vadd.f32 %v4184, %v4346
        %v4450 = vadd.f32 %v4185, %v4405
        %v4451 = vadd.f32 %v4186, %v4349
        %v4452 = vadd.f32 %v4187, %v4408
        %v4453 = vadd.f32 %v4188, %v4351
        %v4454 = vadd.f32 %v4189, %v4410
        %v4455 = vadd.f32 %v4190, %v4354
        %v4456 = vadd.f32 %v4191, %v4413
        %v4457 = vadd.f32 %v4192, %v4356
        %v4458 = vadd.f32 %v4193, %v4415
        %v4459 = vadd.f32 %v4194, %v4359
        %v4460 = vadd.f32 %v4195, %v4418
        %v4461 = vadd.f32 %v4196, %v4361
        %v4462 = vadd.f32 %v4197, %v4420
        %v4463 = vadd.f32 %v4198, %v4364
        %v4464 = vadd.f32 %v4199, %v4423
        %v4465 = vadd.f32 %v4200, %v4366
        %v4466 = vadd.f32 %v4201, %v4425
        %v4467 = vtanh.pop %v4427
        %v4468 = vtanh.pop %v4429
        %v4469 = vtanh.pop %v4431
        %v4470 = vtanh.pop %v4433
        %v4471 = vtanh.pop %v4435
        %v4472 = vtanh.pop %v4437
        %v4473 = vtanh.pop %v4439
        %v4474 = vtanh.pop %v4441
        %v4475 = vtanh.pop %v4443
        %v4476 = vtanh.pop %v4445
        %v4477 = vtanh.pop %v4447
        %v4478 = vtanh.pop %v4449
        %v4479 = vtanh.pop %v4451
        %v4480 = vtanh.pop %v4453
        %v4481 = vtanh.pop %v4455
        %v4482 = vtanh.pop %v4457
        %v4483 = vtanh.pop %v4459
        %v4484 = vtanh.pop %v4461
        %v4485 = vtanh.pop %v4463
        %v4486 = vtanh.pop %v4465
        %v4487 = vsub.f32 0.0, %v4428
        %v4488 = vsub.f32 0.0, %v4430
        %v4489 = vsub.f32 0.0, %v4432
        %v4490 = vsub.f32 0.0, %v4434
        %v4491 = vsub.f32 0.0, %v4436
        %v4492 = vsub.f32 0.0, %v4438
        %v4493 = vsub.f32 0.0, %v4440
        %v4494 = vsub.f32 0.0, %v4442
        %v4495 = vsub.f32 0.0, %v4444
        %v4496 = vsub.f32 0.0, %v4446
        %v4497 = vsub.f32 0.0, %v4448
        %v4498 = vsub.f32 0.0, %v4450
        %v4499 = vsub.f32 0.0, %v4452
        %v4500 = vsub.f32 0.0, %v4454
        %v4501 = vsub.f32 0.0, %v4456
        %v4502 = vsub.f32 0.0, %v4458
        %v4503 = vsub.f32 0.0, %v4460
        %v4504 = vsub.f32 0.0, %v4462
        %v4505 = vsub.f32 0.0, %v4464
        %v4506 = vsub.f32 0.0, %v4466
        %v4507 = vmul.f32 %v4487, 1.442695
        %v4508 = vpow.pop %v4507
        %v4509 = vmul.f32 %v4488, 1.442695
        %v4510 = vpow.pop %v4509
        %v4511 = vmul.f32 %v4489, 1.442695
        %v4512 = vpow.pop %v4511
        %v4513 = vmul.f32 %v4490, 1.442695
        %v4514 = vpow.pop %v4513
        %v4515 = vmul.f32 %v4491, 1.442695
        %v4516 = vpow.pop %v4515
        %v4517 = vmul.f32 %v4492, 1.442695
        %v4518 = vpow.pop %v4517
        %v4519 = vmul.f32 %v4493, 1.442695
        %v4520 = vpow.pop %v4519
        %v4521 = vmul.f32 %v4494, 1.442695
        %v4522 = vpow.pop %v4521
        %v4523 = vmul.f32 %v4495, 1.442695
        %v4524 = vpow.pop %v4523
        %v4525 = vmul.f32 %v4496, 1.442695
        %v4526 = vpow.pop %v4525
        %v4527 = vmul.f32 %v4497, 1.442695
        %v4528 = vpow.pop %v4527
        %v4529 = vmul.f32 %v4498, 1.442695
        %v4530 = vpow.pop %v4529
        %v4531 = vmul.f32 %v4499, 1.442695
        %v4532 = vpow.pop %v4531
        %v4533 = vmul.f32 %v4500, 1.442695
        %v4534 = vpow.pop %v4533
        %v4535 = vmul.f32 %v4501, 1.442695
        %v4536 = vpow.pop %v4535
        %v4537 = vmul.f32 %v4502, 1.442695
        %v4538 = vpow.pop %v4537
        %v4539 = vmul.f32 %v4503, 1.442695
        %v4540 = vpow.pop %v4539
        %v4541 = vmul.f32 %v4504, 1.442695
        %v4542 = vpow.pop %v4541
        %v4543 = vmul.f32 %v4505, 1.442695
        %v4544 = vpow.pop %v4543
        %v4545 = vmul.f32 %v4506, 1.442695
        %v4546 = vpow.pop %v4545
        %v4547 = vadd.f32 %v4508, 1.0
        %v4548 = vadd.f32 %v4510, 1.0
        %v4549 = vadd.f32 %v4512, 1.0
        %v4550 = vadd.f32 %v4514, 1.0
        %v4551 = vadd.f32 %v4516, 1.0
        %v4552 = vadd.f32 %v4518, 1.0
        %v4553 = vadd.f32 %v4520, 1.0
        %v4554 = vadd.f32 %v4522, 1.0
        %v4555 = vadd.f32 %v4524, 1.0
        %v4556 = vadd.f32 %v4526, 1.0
        %v4557 = vadd.f32 %v4528, 1.0
        %v4558 = vadd.f32 %v4530, 1.0
        %v4559 = vadd.f32 %v4532, 1.0
        %v4560 = vadd.f32 %v4534, 1.0
        %v4561 = vadd.f32 %v4536, 1.0
        %v4562 = vadd.f32 %v4538, 1.0
        %v4563 = vadd.f32 %v4540, 1.0
        %v4564 = vadd.f32 %v4542, 1.0
        %v4565 = vadd.f32 %v4544, 1.0
        %v4566 = vadd.f32 %v4546, 1.0
        %v4567 = vrcp.pop %v4547
        %v4568 = vrcp.pop %v4548
        %v4569 = vrcp.pop %v4549
        %v4570 = vrcp.pop %v4550
        %v4571 = vrcp.pop %v4551
        %v4572 = vrcp.pop %v4552
        %v4573 = vrcp.pop %v4553
        %v4574 = vrcp.pop %v4554
        %v4575 = vrcp.pop %v4555
        %v4576 = vrcp.pop %v4556
        %v4577 = vrcp.pop %v4557
        %v4578 = vrcp.pop %v4558
        %v4579 = vrcp.pop %v4559
        %v4580 = vrcp.pop %v4560
        %v4581 = vrcp.pop %v4561
        %v4582 = vrcp.pop %v4562
        %v4583 = vrcp.pop %v4563
        %v4584 = vrcp.pop %v4564
        %v4585 = vrcp.pop %v4565
        %v4586 = vrcp.pop %v4566
        %v4587 = vmul.f32 %v4467, %v4567
        %v4588 = vmul.f32 %v4468, %v4568
        %v4589 = vmul.f32 %v4469, %v4569
        %v4590 = vmul.f32 %v4470, %v4570
        %v4591 = vmul.f32 %v4471, %v4571
        %v4592 = vmul.f32 %v4472, %v4572
        %v4593 = vmul.f32 %v4473, %v4573
        %v4594 = vmul.f32 %v4474, %v4574
        %v4595 = vmul.f32 %v4475, %v4575
        %v4596 = vmul.f32 %v4476, %v4576
        %v4597 = vmul.f32 %v4477, %v4577
        %v4598 = vmul.f32 %v4478, %v4578
        %v4599 = vmul.f32 %v4479, %v4579
        %v4600 = vmul.f32 %v4480, %v4580
        %v4601 = vmul.f32 %v4481, %v4581
        %v4602 = vmul.f32 %v4482, %v4582
        %v4603 = vmul.f32 %v4483, %v4583
        %v4604 = vmul.f32 %v4484, %v4584
        %v4605 = vmul.f32 %v4485, %v4585
        %v4606 = vmul.f32 %v4486, %v4586
        %v4607 = vmul.f32 %v4587, %v526
        %v4608 = vmul.f32 %v4588, %v527
        %v4609 = vmul.f32 %v4589, %v528
        %v4610 = vmul.f32 %v4590, %v529
        %v4611 = vmul.f32 %v4591, %v530
        %v4612 = vmul.f32 %v4592, %v531
        %v4613 = vmul.f32 %v4593, %v532
        %v4614 = vmul.f32 %v4594, %v533
        %v4615 = vmul.f32 %v4595, %v534
        %v4616 = vmul.f32 %v4596, %v535
        %v4617 = vmul.f32 %v4597, %v536
        %v4618 = vmul.f32 %v4598, %v537
        %v4619 = vmul.f32 %v4599, %v538
        %v4620 = vmul.f32 %v4600, %v539
        %v4621 = vmul.f32 %v4601, %v540
        %v4622 = vmul.f32 %v4602, %v541
        %v4623 = vmul.f32 %v4603, %v542
        %v4624 = vmul.f32 %v4604, %v543
        %v4625 = vmul.f32 %v4605, %v544
        %v4626 = vmul.f32 %v4606, %v545
        %v4627 = vpack.c.bf16 %v4608, %v4607
        %v4628 = vpack.c.bf16 %v4610, %v4609
        %v4629 = vpack.c.bf16 %v4612, %v4611
        %v4630 = vpack.c.bf16 %v4614, %v4613
        %v4631 = vpack.c.bf16 %v4616, %v4615
        %v4632 = vpack.c.bf16 %v4618, %v4617
        %v4633 = vpack.c.bf16 %v4620, %v4619
        %v4634 = vpack.c.bf16 %v4622, %v4621
        %v4635 = vpack.c.bf16 %v4624, %v4623
        %v4636 = vpack.c.bf16 %v4626, %v4625
        %s4637 = scalar_lea.vmem %s5, 256
        %v4638 = vld [vmem:[%s4637] sm:$0xff]
        %v4639 = vld [vmem:[%s4637 + $0x8] sm:$0xff]
        %v4640 = vld [vmem:[%s4637 + $0x10] sm:$0xff]
        %v4641 = vld [vmem:[%s4637 + $0x18] sm:$0xff]
        %v4642 = vld [vmem:[%s4637 + $0x20] sm:$0xff]
        %v4643 = vld [vmem:[%s4637 + $0x28] sm:$0xff]
        %v4644 = vld [vmem:[%s4637 + $0x30] sm:$0xff]
        %v4645 = vld [vmem:[%s4637 + $0x38] sm:$0xff]
        %v4646 = vld [vmem:[%s4637 + $0x40] sm:$0xff]
        %v4647 = vld [vmem:[%s4637 + $0x48] sm:$0xff]
        %v4648 = vld [vmem:[%s4637 + $0x50] sm:$0xff]
        %v4649 = vld [vmem:[%s4637 + $0x58] sm:$0xff]
        %v4650 = vld [vmem:[%s4637 + $0x60] sm:$0xff]
        %v4651 = vld [vmem:[%s4637 + $0x68] sm:$0xff]
        %v4652 = vld [vmem:[%s4637 + $0x70] sm:$0xff]
        %v4653 = vld [vmem:[%s4637 + $0x78] sm:$0xff]
        %v4670 = vunpack.c.l.b16 %v4638
        %v4671 = vunpack.c.h.b16 %v4638
        %v4672 = vunpack.c.l.b16 %v4639
        %v4673 = vunpack.c.h.b16 %v4639
        %v4674 = vunpack.c.l.b16 %v4640
        %v4675 = vunpack.c.h.b16 %v4640
        %v4676 = vunpack.c.l.b16 %v4641
        %v4677 = vunpack.c.h.b16 %v4641
        %v4678 = vunpack.c.l.b16 %v4642
        %v4679 = vunpack.c.h.b16 %v4642
        %v4680 = vunpack.c.l.b16 %v4643
        %v4681 = vunpack.c.h.b16 %v4643
        %v4682 = vunpack.c.l.b16 %v4644
        %v4683 = vunpack.c.h.b16 %v4644
        %v4684 = vunpack.c.l.b16 %v4645
        %v4685 = vunpack.c.h.b16 %v4645
        %v4686 = vunpack.c.l.b16 %v4646
        %v4687 = vunpack.c.h.b16 %v4646
        %v4688 = vunpack.c.l.b16 %v4647
        %v4689 = vunpack.c.h.b16 %v4647
        %v4690 = vunpack.c.l.b16 %v4648
        %v4691 = vunpack.c.h.b16 %v4648
        %v4692 = vunpack.c.l.b16 %v4649
        %v4693 = vunpack.c.h.b16 %v4649
        %v4694 = vunpack.c.l.b16 %v4650
        %v4695 = vunpack.c.h.b16 %v4650
        %v4696 = vunpack.c.l.b16 %v4651
        %v4697 = vunpack.c.h.b16 %v4651
        %v4698 = vunpack.c.l.b16 %v4652
        %v4699 = vunpack.c.h.b16 %v4652
        %v4700 = vunpack.c.l.b16 %v4653
        %v4701 = vunpack.c.h.b16 %v4653
        %v4702 = vpack.c.b16 %v4672, %v4670
        %v4703 = vpack.c.b16 %v4673, %v4671
        %v4704 = vpack.c.b16 %v4676, %v4674
        %v4705 = vpack.c.b16 %v4677, %v4675
        %v4706 = vpack.c.b16 %v4680, %v4678
        %v4707 = vpack.c.b16 %v4681, %v4679
        %v4708 = vpack.c.b16 %v4684, %v4682
        %v4709 = vpack.c.b16 %v4685, %v4683
        %v4710 = vpack.c.b16 %v4688, %v4686
        %v4711 = vpack.c.b16 %v4689, %v4687
        %v4712 = vpack.c.b16 %v4692, %v4690
        %v4713 = vpack.c.b16 %v4693, %v4691
        %v4714 = vpack.c.b16 %v4696, %v4694
        %v4715 = vpack.c.b16 %v4697, %v4695
        %v4716 = vpack.c.b16 %v4700, %v4698
        %v4717 = vpack.c.b16 %v4701, %v4699
        %4734 = vmatpush.bf16.msra.mxu0 %v4716
        %4735 = vmatpush.bf16.msra.mxu0 %v4714
        %4736 = vmatpush.bf16.msra.mxu0 %v4712
        %4737 = vmatpush.bf16.msra.mxu0 %v4710
        %4738 = vmatpush.bf16.msra.mxu0 %v4708
        %4739 = vmatpush.bf16.msra.mxu0 %v4706
        %4740 = vmatpush.bf16.msra.mxu0 %v4704
        %4741 = vmatpush.bf16.msra.mxu0 %v4702
        %4742 = vmatmul.bf16.gmra.mxu0 %v4627
        %v4743 = vpop.f32.mrf.mxu0
        %v4744 = vadd.f32 0.0, %v4743
        %v4745 = vpop.f32.mrf.mxu0
        %v4746 = vadd.f32 0.0, %v4745
        %4747 = vmatmul.bf16.gmra.mxu0 %v4628
        %v4748 = vpop.f32.mrf.mxu0
        %v4749 = vadd.f32 0.0, %v4748
        %v4750 = vpop.f32.mrf.mxu0
        %v4751 = vadd.f32 0.0, %v4750
        %4752 = vmatmul.bf16.gmra.mxu0 %v4629
        %v4753 = vpop.f32.mrf.mxu0
        %v4754 = vadd.f32 0.0, %v4753
        %v4755 = vpop.f32.mrf.mxu0
        %v4756 = vadd.f32 0.0, %v4755
        %4757 = vmatmul.bf16.gmra.mxu0 %v4630
        %v4758 = vpop.f32.mrf.mxu0
        %v4759 = vadd.f32 0.0, %v4758
        %v4760 = vpop.f32.mrf.mxu0
        %v4761 = vadd.f32 0.0, %v4760
        %4762 = vmatmul.bf16.gmra.mxu0 %v4631
        %v4763 = vpop.f32.mrf.mxu0
        %v4764 = vadd.f32 0.0, %v4763
        %v4765 = vpop.f32.mrf.mxu0
        %v4766 = vadd.f32 0.0, %v4765
        %4767 = vmatmul.bf16.gmra.mxu0 %v4632
        %v4768 = vpop.f32.mrf.mxu0
        %v4769 = vadd.f32 0.0, %v4768
        %v4770 = vpop.f32.mrf.mxu0
        %v4771 = vadd.f32 0.0, %v4770
        %4772 = vmatmul.bf16.gmra.mxu0 %v4633
        %v4773 = vpop.f32.mrf.mxu0
        %v4774 = vadd.f32 0.0, %v4773
        %v4775 = vpop.f32.mrf.mxu0
        %v4776 = vadd.f32 0.0, %v4775
        %4777 = vmatmul.bf16.gmra.mxu0 %v4634
        %v4778 = vpop.f32.mrf.mxu0
        %v4779 = vadd.f32 0.0, %v4778
        %v4780 = vpop.f32.mrf.mxu0
        %v4781 = vadd.f32 0.0, %v4780
        %4782 = vmatmul.bf16.gmra.mxu0 %v4635
        %v4783 = vpop.f32.mrf.mxu0
        %v4784 = vadd.f32 0.0, %v4783
        %v4785 = vpop.f32.mrf.mxu0
        %v4786 = vadd.f32 0.0, %v4785
        %4787 = vmatmul.bf16.gmra.mxu0 %v4636
        %v4788 = vpop.f32.mrf.mxu0
        %v4789 = vadd.f32 0.0, %v4788
        %v4790 = vpop.f32.mrf.mxu0
        %v4791 = vadd.f32 0.0, %v4790
        %4792 = vdwg.mxu0
        %4793 = vmatpush.bf16.msra.mxu0 %v4717
        %4794 = vmatpush.bf16.msra.mxu0 %v4715
        %4795 = vmatpush.bf16.msra.mxu0 %v4713
        %4796 = vmatpush.bf16.msra.mxu0 %v4711
        %4797 = vmatpush.bf16.msra.mxu0 %v4709
        %4798 = vmatpush.bf16.msra.mxu0 %v4707
        %4799 = vmatpush.bf16.msra.mxu0 %v4705
        %4800 = vmatpush.bf16.msra.mxu0 %v4703
        %4801 = vmatmul.bf16.gmra.mxu0 %v4627
        %v4802 = vpop.f32.mrf.mxu0
        %v4803 = vpop.f32.mrf.mxu0
        %4804 = vmatmul.bf16.gmra.mxu0 %v4628
        %v4805 = vpop.f32.mrf.mxu0
        %v4806 = vadd.f32 0.0, %v4805
        %v4807 = vpop.f32.mrf.mxu0
        %v4808 = vadd.f32 0.0, %v4807
        %4809 = vmatmul.bf16.gmra.mxu0 %v4629
        %v4810 = vpop.f32.mrf.mxu0
        %v4811 = vadd.f32 0.0, %v4810
        %v4812 = vpop.f32.mrf.mxu0
        %v4813 = vadd.f32 0.0, %v4812
        %4814 = vmatmul.bf16.gmra.mxu0 %v4630
        %v4815 = vpop.f32.mrf.mxu0
        %v4816 = vadd.f32 0.0, %v4815
        %v4817 = vpop.f32.mrf.mxu0
        %v4818 = vadd.f32 0.0, %v4817
        %4819 = vmatmul.bf16.gmra.mxu0 %v4631
        %v4820 = vpop.f32.mrf.mxu0
        %v4821 = vadd.f32 0.0, %v4820
        %v4822 = vpop.f32.mrf.mxu0
        %v4823 = vadd.f32 0.0, %v4822
        %4824 = vmatmul.bf16.gmra.mxu0 %v4632
        %v4825 = vpop.f32.mrf.mxu0
        %v4826 = vadd.f32 0.0, %v4825
        %v4827 = vpop.f32.mrf.mxu0
        %v4828 = vadd.f32 0.0, %v4827
        %4829 = vmatmul.bf16.gmra.mxu0 %v4633
        %v4830 = vpop.f32.mrf.mxu0
        %v4831 = vadd.f32 0.0, %v4830
        %v4832 = vpop.f32.mrf.mxu0
        %v4833 = vadd.f32 0.0, %v4832
        %4834 = vmatmul.bf16.gmra.mxu0 %v4634
        %v4835 = vpop.f32.mrf.mxu0
        %v4836 = vadd.f32 0.0, %v4835
        %v4837 = vpop.f32.mrf.mxu0
        %v4838 = vadd.f32 0.0, %v4837
        %4839 = vmatmul.bf16.gmra.mxu0 %v4635
        %v4840 = vpop.f32.mrf.mxu0
        %v4841 = vadd.f32 0.0, %v4840
        %v4842 = vpop.f32.mrf.mxu0
        %v4843 = vadd.f32 0.0, %v4842
        %4844 = vmatmul.bf16.gmra.mxu0 %v4636
        %v4845 = vpop.f32.mrf.mxu0
        %v4846 = vpop.f32.mrf.mxu0
        %4847 = vdwg.mxu0
        %v4848 = vadd.f32 %v3504, %v4744
        %v4849 = vadd.f32 %v3505, %v4746
        %v4850 = vadd.f32 %v3506, %v4749
        %v4851 = vadd.f32 %v3507, %v4751
        %v4852 = vadd.f32 %v3508, %v4754
        %v4853 = vadd.f32 %v3509, %v4756
        %v4854 = vadd.f32 %v3510, %v4759
        %v4855 = vadd.f32 %v3511, %v4761
        %v4856 = vadd.f32 %v3512, %v4764
        %v4857 = vadd.f32 %v3513, %v4766
        %v4858 = vadd.f32 %v3514, %v4769
        %v4859 = vadd.f32 %v3515, %v4771
        %v4860 = vadd.f32 %v3516, %v4774
        %v4861 = vadd.f32 %v3517, %v4776
        %v4862 = vadd.f32 %v3518, %v4779
        %v4863 = vadd.f32 %v3519, %v4781
        %v4864 = vadd.f32 %v3520, %v4784
        %v4865 = vadd.f32 %v3521, %v4786
        %v4866 = vadd.f32 %v3522, %v4789
        %v4867 = vadd.f32 %v3523, %v4791
        %v4868 = vadd.f32 %v3524, %v4806
        %v4869 = vadd.f32 %v3525, %v4808
        %v4870 = vadd.f32 %v3526, %v4811
        %v4871 = vadd.f32 %v3527, %v4813
        %v4872 = vadd.f32 %v3528, %v4816
        %v4873 = vadd.f32 %v3529, %v4818
        %v4874 = vadd.f32 %v3530, %v4821
        %v4875 = vadd.f32 %v3531, %v4823
        %v4876 = vadd.f32 %v3532, %v4826
        %v4877 = vadd.f32 %v3533, %v4828
        %v4878 = vadd.f32 %v3534, %v4831
        %v4879 = vadd.f32 %v3535, %v4833
        %v4880 = vadd.f32 %v3536, %v4836
        %v4881 = vadd.f32 %v3537, %v4838
        %v4882 = vadd.f32 %v3538, %v4841
        %v4883 = vadd.f32 %v3539, %v4843
        %s4884 = scalar_lea.vmem %s3, 24
        %v4885 = vld [vmem:[%s4884] sm:$0x77]
        %v4886 = vpack.c.bf16 %v4849, %v4848
        %v4887 = vpack.c.bf16 %v4851, %v4850
        %v4888 = vpack.c.bf16 %v4853, %v4852
        %v4889 = vpack.c.bf16 %v4855, %v4854
        %v4890 = vpack.c.bf16 %v4857, %v4856
        %v4891 = vpack.c.bf16 %v4859, %v4858
        %v4892 = vpack.c.bf16 %v4861, %v4860
        %v4893 = vpack.c.bf16 %v4863, %v4862
        %v4894 = vpack.c.bf16 %v4865, %v4864
        %v4895 = vpack.c.bf16 %v4867, %v4866
        %v4896 = vpack.c.bf16 %v4848, %v4867
        %v4897 = vpack.c.bf16 %v4850, %v4849
        %v4898 = vpack.c.bf16 %v4852, %v4851
        %v4899 = vpack.c.bf16 %v4854, %v4853
        %v4900 = vpack.c.bf16 %v4856, %v4855
        %v4901 = vpack.c.bf16 %v4858, %v4857
        %v4902 = vpack.c.bf16 %v4860, %v4859
        %v4903 = vpack.c.bf16 %v4862, %v4861
        %v4904 = vpack.c.bf16 %v4864, %v4863
        %v4905 = vpack.c.bf16 %v4866, %v4865
        %s4906 = scalar_lea.vmem [#allocation2], 1152
        %v4907 = vld [vmem:[%s4906] sm:$0xff]
        %v4908 = vld [vmem:[%s4906 + $0x8] sm:$0xff]
        %v4909 = vld [vmem:[%s4906 + $0x10] sm:$0xff]
        %v4910 = vld [vmem:[%s4906 + $0x18] sm:$0xff]
        %v4911 = vld [vmem:[%s4906 + $0x20] sm:$0xff]
        %v4912 = vld [vmem:[%s4906 + $0x28] sm:$0xff]
        %v4913 = vld [vmem:[%s4906 + $0x30] sm:$0xff]
        %v4914 = vld [vmem:[%s4906 + $0x38] sm:$0xff]
        %v4915 = vld [vmem:[%s4906 + $0x40] sm:$0xff]
        %v4916 = vld [vmem:[%s4906 + $0x48] sm:$0xff]
        %v4917 = vld [vmem:[%s4906 + $0x50] sm:$0xff]
        %v4918 = vld [vmem:[%s4906 + $0x58] sm:$0xff]
        %v4919 = vld [vmem:[%s4906 + $0x60] sm:$0xff]
        %v4920 = vld [vmem:[%s4906 + $0x68] sm:$0xff]
        %v4921 = vld [vmem:[%s4906 + $0x70] sm:$0xff]
        %v4922 = vld [vmem:[%s4906 + $0x78] sm:$0xff]
        %v4939 = vunpack.c.l.b16 %v4907
        %v4940 = vunpack.c.h.b16 %v4907
        %v4941 = vunpack.c.l.b16 %v4908
        %v4942 = vunpack.c.h.b16 %v4908
        %v4943 = vunpack.c.l.b16 %v4909
        %v4944 = vunpack.c.h.b16 %v4909
        %v4945 = vunpack.c.l.b16 %v4910
        %v4946 = vunpack.c.h.b16 %v4910
        %v4947 = vunpack.c.l.b16 %v4911
        %v4948 = vunpack.c.h.b16 %v4911
        %v4949 = vunpack.c.l.b16 %v4912
        %v4950 = vunpack.c.h.b16 %v4912
        %v4951 = vunpack.c.l.b16 %v4913
        %v4952 = vunpack.c.h.b16 %v4913
        %v4953 = vunpack.c.l.b16 %v4914
        %v4954 = vunpack.c.h.b16 %v4914
        %v4955 = vunpack.c.l.b16 %v4915
        %v4956 = vunpack.c.h.b16 %v4915
        %v4957 = vunpack.c.l.b16 %v4916
        %v4958 = vunpack.c.h.b16 %v4916
        %v4959 = vunpack.c.l.b16 %v4917
        %v4960 = vunpack.c.h.b16 %v4917
        %v4961 = vunpack.c.l.b16 %v4918
        %v4962 = vunpack.c.h.b16 %v4918
        %v4963 = vunpack.c.l.b16 %v4919
        %v4964 = vunpack.c.h.b16 %v4919
        %v4965 = vunpack.c.l.b16 %v4920
        %v4966 = vunpack.c.h.b16 %v4920
        %v4967 = vunpack.c.l.b16 %v4921
        %v4968 = vunpack.c.h.b16 %v4921
        %v4969 = vunpack.c.l.b16 %v4922
        %v4970 = vunpack.c.h.b16 %v4922
        %v4971 = vpack.c.b16 %v4941, %v4939
        %v4972 = vpack.c.b16 %v4942, %v4940
        %v4973 = vpack.c.b16 %v4945, %v4943
        %v4974 = vpack.c.b16 %v4946, %v4944
        %v4975 = vpack.c.b16 %v4949, %v4947
        %v4976 = vpack.c.b16 %v4950, %v4948
        %v4977 = vpack.c.b16 %v4953, %v4951
        %v4978 = vpack.c.b16 %v4954, %v4952
        %v4979 = vpack.c.b16 %v4957, %v4955
        %v4980 = vpack.c.b16 %v4958, %v4956
        %v4981 = vpack.c.b16 %v4961, %v4959
        %v4982 = vpack.c.b16 %v4962, %v4960
        %v4983 = vpack.c.b16 %v4965, %v4963
        %v4984 = vpack.c.b16 %v4966, %v4964
        %v4985 = vpack.c.b16 %v4969, %v4967
        %v4986 = vpack.c.b16 %v4970, %v4968
        %5003 = vmatpush.bf16.msra.mxu0 %v4985
        %5004 = vmatpush.bf16.msra.mxu0 %v4983
        %5005 = vmatpush.bf16.msra.mxu0 %v4981
        %5006 = vmatpush.bf16.msra.mxu0 %v4979
        %5007 = vmatpush.bf16.msra.mxu0 %v4977
        %5008 = vmatpush.bf16.msra.mxu0 %v4975
        %5009 = vmatpush.bf16.msra.mxu0 %v4973
        %5010 = vmatpush.bf16.msra.mxu0 %v4971
        %5011 = vmatmul.bf16.gmra.mxu0 %v4896
        %v5012 = vpop.f32.mrf.mxu0
        %v5013 = vpop.f32.mrf.mxu0
        %5014 = vmatmul.bf16.gmra.mxu0 %v4897
        %v5015 = vpop.f32.mrf.mxu0
        %v5016 = vadd.f32 0.0, %v5015
        %v5017 = vpop.f32.mrf.mxu0
        %v5018 = vadd.f32 0.0, %v5017
        %5019 = vmatmul.bf16.gmra.mxu0 %v4898
        %v5020 = vpop.f32.mrf.mxu0
        %v5021 = vadd.f32 0.0, %v5020
        %v5022 = vpop.f32.mrf.mxu0
        %v5023 = vadd.f32 0.0, %v5022
        %5024 = vmatmul.bf16.gmra.mxu0 %v4899
        %v5025 = vpop.f32.mrf.mxu0
        %v5026 = vadd.f32 0.0, %v5025
        %v5027 = vpop.f32.mrf.mxu0
        %v5028 = vadd.f32 0.0, %v5027
        %5029 = vmatmul.bf16.gmra.mxu0 %v4900
        %v5030 = vpop.f32.mrf.mxu0
        %v5031 = vadd.f32 0.0, %v5030
        %v5032 = vpop.f32.mrf.mxu0
        %v5033 = vadd.f32 0.0, %v5032
        %5034 = vmatmul.bf16.gmra.mxu0 %v4901
        %v5035 = vpop.f32.mrf.mxu0
        %v5036 = vadd.f32 0.0, %v5035
        %v5037 = vpop.f32.mrf.mxu0
        %v5038 = vadd.f32 0.0, %v5037
        %5039 = vmatmul.bf16.gmra.mxu0 %v4902
        %v5040 = vpop.f32.mrf.mxu0
        %v5041 = vadd.f32 0.0, %v5040
        %v5042 = vpop.f32.mrf.mxu0
        %v5043 = vadd.f32 0.0, %v5042
        %5044 = vmatmul.bf16.gmra.mxu0 %v4903
        %v5045 = vpop.f32.mrf.mxu0
        %v5046 = vadd.f32 0.0, %v5045
        %v5047 = vpop.f32.mrf.mxu0
        %v5048 = vadd.f32 0.0, %v5047
        %5049 = vmatmul.bf16.gmra.mxu0 %v4904
        %v5050 = vpop.f32.mrf.mxu0
        %v5051 = vadd.f32 0.0, %v5050
        %v5052 = vpop.f32.mrf.mxu0
        %v5053 = vadd.f32 0.0, %v5052
        %5054 = vmatmul.bf16.gmra.mxu0 %v4905
        %v5055 = vpop.f32.mrf.mxu0
        %v5056 = vpop.f32.mrf.mxu0
        %5057 = vdwg.mxu0
        %5058 = vmatpush.bf16.msra.mxu0 %v4986
        %5059 = vmatpush.bf16.msra.mxu0 %v4984
        %5060 = vmatpush.bf16.msra.mxu0 %v4982
        %5061 = vmatpush.bf16.msra.mxu0 %v4980
        %5062 = vmatpush.bf16.msra.mxu0 %v4978
        %5063 = vmatpush.bf16.msra.mxu0 %v4976
        %5064 = vmatpush.bf16.msra.mxu0 %v4974
        %5065 = vmatpush.bf16.msra.mxu0 %v4972
        %5066 = vmatmul.bf16.gmra.mxu0 %v4896
        %v5067 = vpop.f32.mrf.mxu0
        %v5068 = vpop.f32.mrf.mxu0
        %5069 = vmatmul.bf16.gmra.mxu0 %v4897
        %v5070 = vpop.f32.mrf.mxu0
        %v5071 = vadd.f32 0.0, %v5070
        %v5072 = vpop.f32.mrf.mxu0
        %v5073 = vadd.f32 0.0, %v5072
        %5074 = vmatmul.bf16.gmra.mxu0 %v4898
        %v5075 = vpop.f32.mrf.mxu0
        %v5076 = vadd.f32 0.0, %v5075
        %v5077 = vpop.f32.mrf.mxu0
        %v5078 = vadd.f32 0.0, %v5077
        %5079 = vmatmul.bf16.gmra.mxu0 %v4899
        %v5080 = vpop.f32.mrf.mxu0
        %v5081 = vadd.f32 0.0, %v5080
        %v5082 = vpop.f32.mrf.mxu0
        %v5083 = vadd.f32 0.0, %v5082
        %5084 = vmatmul.bf16.gmra.mxu0 %v4900
        %v5085 = vpop.f32.mrf.mxu0
        %v5086 = vadd.f32 0.0, %v5085
        %v5087 = vpop.f32.mrf.mxu0
        %v5088 = vadd.f32 0.0, %v5087
        %5089 = vmatmul.bf16.gmra.mxu0 %v4901
        %v5090 = vpop.f32.mrf.mxu0
        %v5091 = vadd.f32 0.0, %v5090
        %v5092 = vpop.f32.mrf.mxu0
        %v5093 = vadd.f32 0.0, %v5092
        %5094 = vmatmul.bf16.gmra.mxu0 %v4902
        %v5095 = vpop.f32.mrf.mxu0
        %v5096 = vadd.f32 0.0, %v5095
        %v5097 = vpop.f32.mrf.mxu0
        %v5098 = vadd.f32 0.0, %v5097
        %5099 = vmatmul.bf16.gmra.mxu0 %v4903
        %v5100 = vpop.f32.mrf.mxu0
        %v5101 = vadd.f32 0.0, %v5100
        %v5102 = vpop.f32.mrf.mxu0
        %v5103 = vadd.f32 0.0, %v5102
        %5104 = vmatmul.bf16.gmra.mxu0 %v4904
        %v5105 = vpop.f32.mrf.mxu0
        %v5106 = vadd.f32 0.0, %v5105
        %v5107 = vpop.f32.mrf.mxu0
        %v5108 = vadd.f32 0.0, %v5107
        %5109 = vmatmul.bf16.gmra.mxu0 %v4905
        %v5110 = vpop.f32.mrf.mxu0
        %v5111 = vpop.f32.mrf.mxu0
        %5112 = vdwg.mxu0
        %v5114 = vunpack.c.l.b16 %v4885
        %v5115 = vunpack.c.h.b16 %v4885
        %v5116 = vpack.c.b16 %v5114, %v5114
        %v5117 = vpack.c.b16 %v5115, %v5115
        %v5119 = vsel %vm1053, %v5116, 0
        %v5122 = vsel %vm1053, %v5117, 0
        %5124 = vmatpush.bf16.msra.mxu0 0
        %5125 = vmatpush.bf16.msra.mxu0 0
        %5126 = vmatpush.bf16.msra.mxu0 0
        %5127 = vmatpush.bf16.msra.mxu0 0
        %5128 = vmatpush.bf16.msra.mxu0 0
        %5129 = vmatpush.bf16.msra.mxu0 0
        %5130 = vmatpush.bf16.msra.mxu0 0
        %5131 = vmatpush.bf16.msra.mxu0 %v5119
        %5132 = vmatmul.bf16.gmra.mxu0 %v1024
        %v5133 = vpop.f32.mrf.mxu0
        %v5134 = vpop.f32.mrf.mxu0
        %5135 = vmatmul.bf16.gmra.mxu0 %v1027
        %v5136 = vpop.f32.mrf.mxu0
        %v5137 = vadd.f32 %v5016, %v5136
        %v5138 = vpop.f32.mrf.mxu0
        %v5139 = vadd.f32 %v5018, %v5138
        %5140 = vmatmul.bf16.gmra.mxu0 %v1030
        %v5141 = vpop.f32.mrf.mxu0
        %v5142 = vadd.f32 %v5021, %v5141
        %v5143 = vpop.f32.mrf.mxu0
        %v5144 = vadd.f32 %v5023, %v5143
        %5145 = vmatmul.bf16.gmra.mxu0 %v1033
        %v5146 = vpop.f32.mrf.mxu0
        %v5147 = vadd.f32 %v5026, %v5146
        %v5148 = vpop.f32.mrf.mxu0
        %v5149 = vadd.f32 %v5028, %v5148
        %5150 = vmatmul.bf16.gmra.mxu0 %v1036
        %v5151 = vpop.f32.mrf.mxu0
        %v5152 = vadd.f32 %v5031, %v5151
        %v5153 = vpop.f32.mrf.mxu0
        %v5154 = vadd.f32 %v5033, %v5153
        %5155 = vmatmul.bf16.gmra.mxu0 %v1039
        %v5156 = vpop.f32.mrf.mxu0
        %v5157 = vadd.f32 %v5036, %v5156
        %v5158 = vpop.f32.mrf.mxu0
        %v5159 = vadd.f32 %v5038, %v5158
        %5160 = vmatmul.bf16.gmra.mxu0 %v1042
        %v5161 = vpop.f32.mrf.mxu0
        %v5162 = vadd.f32 %v5041, %v5161
        %v5163 = vpop.f32.mrf.mxu0
        %v5164 = vadd.f32 %v5043, %v5163
        %5165 = vmatmul.bf16.gmra.mxu0 %v1045
        %v5166 = vpop.f32.mrf.mxu0
        %v5167 = vadd.f32 %v5046, %v5166
        %v5168 = vpop.f32.mrf.mxu0
        %v5169 = vadd.f32 %v5048, %v5168
        %5170 = vmatmul.bf16.gmra.mxu0 %v1048
        %v5171 = vpop.f32.mrf.mxu0
        %v5172 = vadd.f32 %v5051, %v5171
        %v5173 = vpop.f32.mrf.mxu0
        %v5174 = vadd.f32 %v5053, %v5173
        %5175 = vmatmul.bf16.gmra.mxu0 %v1051
        %v5176 = vpop.f32.mrf.mxu0
        %v5177 = vpop.f32.mrf.mxu0
        %5178 = vdwg.mxu0
        %5179 = vmatpush.bf16.msra.mxu0 0
        %5180 = vmatpush.bf16.msra.mxu0 0
        %5181 = vmatpush.bf16.msra.mxu0 0
        %5182 = vmatpush.bf16.msra.mxu0 0
        %5183 = vmatpush.bf16.msra.mxu0 0
        %5184 = vmatpush.bf16.msra.mxu0 0
        %5185 = vmatpush.bf16.msra.mxu0 0
        %5186 = vmatpush.bf16.msra.mxu0 %v5122
        %5187 = vmatmul.bf16.gmra.mxu0 %v1024
        %v5188 = vpop.f32.mrf.mxu0
        %v5189 = vpop.f32.mrf.mxu0
        %5190 = vmatmul.bf16.gmra.mxu0 %v1027
        %v5191 = vpop.f32.mrf.mxu0
        %v5192 = vadd.f32 %v5071, %v5191
        %v5193 = vpop.f32.mrf.mxu0
        %v5194 = vadd.f32 %v5073, %v5193
        %5195 = vmatmul.bf16.gmra.mxu0 %v1030
        %v5196 = vpop.f32.mrf.mxu0
        %v5197 = vadd.f32 %v5076, %v5196
        %v5198 = vpop.f32.mrf.mxu0
        %v5199 = vadd.f32 %v5078, %v5198
        %5200 = vmatmul.bf16.gmra.mxu0 %v1033
        %v5201 = vpop.f32.mrf.mxu0
        %v5202 = vadd.f32 %v5081, %v5201
        %v5203 = vpop.f32.mrf.mxu0
        %v5204 = vadd.f32 %v5083, %v5203
        %5205 = vmatmul.bf16.gmra.mxu0 %v1036
        %v5206 = vpop.f32.mrf.mxu0
        %v5207 = vadd.f32 %v5086, %v5206
        %v5208 = vpop.f32.mrf.mxu0
        %v5209 = vadd.f32 %v5088, %v5208
        %5210 = vmatmul.bf16.gmra.mxu0 %v1039
        %v5211 = vpop.f32.mrf.mxu0
        %v5212 = vadd.f32 %v5091, %v5211
        %v5213 = vpop.f32.mrf.mxu0
        %v5214 = vadd.f32 %v5093, %v5213
        %5215 = vmatmul.bf16.gmra.mxu0 %v1042
        %v5216 = vpop.f32.mrf.mxu0
        %v5217 = vadd.f32 %v5096, %v5216
        %v5218 = vpop.f32.mrf.mxu0
        %v5219 = vadd.f32 %v5098, %v5218
        %5220 = vmatmul.bf16.gmra.mxu0 %v1045
        %v5221 = vpop.f32.mrf.mxu0
        %v5222 = vadd.f32 %v5101, %v5221
        %v5223 = vpop.f32.mrf.mxu0
        %v5224 = vadd.f32 %v5103, %v5223
        %5225 = vmatmul.bf16.gmra.mxu0 %v1048
        %v5226 = vpop.f32.mrf.mxu0
        %v5227 = vadd.f32 %v5106, %v5226
        %v5228 = vpop.f32.mrf.mxu0
        %v5229 = vadd.f32 %v5108, %v5228
        %5230 = vmatmul.bf16.gmra.mxu0 %v1051
        %v5231 = vpop.f32.mrf.mxu0
        %v5232 = vpop.f32.mrf.mxu0
        %5233 = vdwg.mxu0
        %s5234 = scalar_lea.vmem [#allocation2], 1280
        %v5235 = vld [vmem:[%s5234] sm:$0xff]
        %v5236 = vld [vmem:[%s5234 + $0x8] sm:$0xff]
        %v5237 = vld [vmem:[%s5234 + $0x10] sm:$0xff]
        %v5238 = vld [vmem:[%s5234 + $0x18] sm:$0xff]
        %v5239 = vld [vmem:[%s5234 + $0x20] sm:$0xff]
        %v5240 = vld [vmem:[%s5234 + $0x28] sm:$0xff]
        %v5241 = vld [vmem:[%s5234 + $0x30] sm:$0xff]
        %v5242 = vld [vmem:[%s5234 + $0x38] sm:$0xff]
        %v5243 = vld [vmem:[%s5234 + $0x40] sm:$0xff]
        %v5244 = vld [vmem:[%s5234 + $0x48] sm:$0xff]
        %v5245 = vld [vmem:[%s5234 + $0x50] sm:$0xff]
        %v5246 = vld [vmem:[%s5234 + $0x58] sm:$0xff]
        %v5247 = vld [vmem:[%s5234 + $0x60] sm:$0xff]
        %v5248 = vld [vmem:[%s5234 + $0x68] sm:$0xff]
        %v5249 = vld [vmem:[%s5234 + $0x70] sm:$0xff]
        %v5250 = vld [vmem:[%s5234 + $0x78] sm:$0xff]
        %v5267 = vunpack.c.l.b16 %v5235
        %v5268 = vunpack.c.h.b16 %v5235
        %v5269 = vunpack.c.l.b16 %v5236
        %v5270 = vunpack.c.h.b16 %v5236
        %v5271 = vunpack.c.l.b16 %v5237
        %v5272 = vunpack.c.h.b16 %v5237
        %v5273 = vunpack.c.l.b16 %v5238
        %v5274 = vunpack.c.h.b16 %v5238
        %v5275 = vunpack.c.l.b16 %v5239
        %v5276 = vunpack.c.h.b16 %v5239
        %v5277 = vunpack.c.l.b16 %v5240
        %v5278 = vunpack.c.h.b16 %v5240
        %v5279 = vunpack.c.l.b16 %v5241
        %v5280 = vunpack.c.h.b16 %v5241
        %v5281 = vunpack.c.l.b16 %v5242
        %v5282 = vunpack.c.h.b16 %v5242
        %v5283 = vunpack.c.l.b16 %v5243
        %v5284 = vunpack.c.h.b16 %v5243
        %v5285 = vunpack.c.l.b16 %v5244
        %v5286 = vunpack.c.h.b16 %v5244
        %v5287 = vunpack.c.l.b16 %v5245
        %v5288 = vunpack.c.h.b16 %v5245
        %v5289 = vunpack.c.l.b16 %v5246
        %v5290 = vunpack.c.h.b16 %v5246
        %v5291 = vunpack.c.l.b16 %v5247
        %v5292 = vunpack.c.h.b16 %v5247
        %v5293 = vunpack.c.l.b16 %v5248
        %v5294 = vunpack.c.h.b16 %v5248
        %v5295 = vunpack.c.l.b16 %v5249
        %v5296 = vunpack.c.h.b16 %v5249
        %v5297 = vunpack.c.l.b16 %v5250
        %v5298 = vunpack.c.h.b16 %v5250
        %v5299 = vpack.c.b16 %v5269, %v5267
        %v5300 = vpack.c.b16 %v5270, %v5268
        %v5301 = vpack.c.b16 %v5273, %v5271
        %v5302 = vpack.c.b16 %v5274, %v5272
        %v5303 = vpack.c.b16 %v5277, %v5275
        %v5304 = vpack.c.b16 %v5278, %v5276
        %v5305 = vpack.c.b16 %v5281, %v5279
        %v5306 = vpack.c.b16 %v5282, %v5280
        %v5307 = vpack.c.b16 %v5285, %v5283
        %v5308 = vpack.c.b16 %v5286, %v5284
        %v5309 = vpack.c.b16 %v5289, %v5287
        %v5310 = vpack.c.b16 %v5290, %v5288
        %v5311 = vpack.c.b16 %v5293, %v5291
        %v5312 = vpack.c.b16 %v5294, %v5292
        %v5313 = vpack.c.b16 %v5297, %v5295
        %v5314 = vpack.c.b16 %v5298, %v5296
        %5331 = vmatpush.bf16.msra.mxu0 %v5313
        %5332 = vmatpush.bf16.msra.mxu0 %v5311
        %5333 = vmatpush.bf16.msra.mxu0 %v5309
        %5334 = vmatpush.bf16.msra.mxu0 %v5307
        %5335 = vmatpush.bf16.msra.mxu0 %v5305
        %5336 = vmatpush.bf16.msra.mxu0 %v5303
        %5337 = vmatpush.bf16.msra.mxu0 %v5301
        %5338 = vmatpush.bf16.msra.mxu0 %v5299
        %5339 = vmatmul.bf16.gmra.mxu0 %v4886
        %v5340 = vpop.f32.mrf.mxu0
        %v5341 = vpop.f32.mrf.mxu0
        %5342 = vmatmul.bf16.gmra.mxu0 %v4887
        %v5343 = vpop.f32.mrf.mxu0
        %v5344 = vadd.f32 0.0, %v5343
        %v5345 = vpop.f32.mrf.mxu0
        %v5346 = vadd.f32 0.0, %v5345
        %5347 = vmatmul.bf16.gmra.mxu0 %v4888
        %v5348 = vpop.f32.mrf.mxu0
        %v5349 = vadd.f32 0.0, %v5348
        %v5350 = vpop.f32.mrf.mxu0
        %v5351 = vadd.f32 0.0, %v5350
        %5352 = vmatmul.bf16.gmra.mxu0 %v4889
        %v5353 = vpop.f32.mrf.mxu0
        %v5354 = vadd.f32 0.0, %v5353
        %v5355 = vpop.f32.mrf.mxu0
        %v5356 = vadd.f32 0.0, %v5355
        %5357 = vmatmul.bf16.gmra.mxu0 %v4890
        %v5358 = vpop.f32.mrf.mxu0
        %v5359 = vadd.f32 0.0, %v5358
        %v5360 = vpop.f32.mrf.mxu0
        %v5361 = vadd.f32 0.0, %v5360
        %5362 = vmatmul.bf16.gmra.mxu0 %v4891
        %v5363 = vpop.f32.mrf.mxu0
        %v5364 = vadd.f32 0.0, %v5363
        %v5365 = vpop.f32.mrf.mxu0
        %v5366 = vadd.f32 0.0, %v5365
        %5367 = vmatmul.bf16.gmra.mxu0 %v4892
        %v5368 = vpop.f32.mrf.mxu0
        %v5369 = vadd.f32 0.0, %v5368
        %v5370 = vpop.f32.mrf.mxu0
        %v5371 = vadd.f32 0.0, %v5370
        %5372 = vmatmul.bf16.gmra.mxu0 %v4893
        %v5373 = vpop.f32.mrf.mxu0
        %v5374 = vadd.f32 0.0, %v5373
        %v5375 = vpop.f32.mrf.mxu0
        %v5376 = vadd.f32 0.0, %v5375
        %5377 = vmatmul.bf16.gmra.mxu0 %v4894
        %v5378 = vpop.f32.mrf.mxu0
        %v5379 = vadd.f32 0.0, %v5378
        %v5380 = vpop.f32.mrf.mxu0
        %v5381 = vadd.f32 0.0, %v5380
        %5382 = vmatmul.bf16.gmra.mxu0 %v4895
        %v5383 = vpop.f32.mrf.mxu0
        %v5384 = vpop.f32.mrf.mxu0
        %5385 = vdwg.mxu0
        %5386 = vmatpush.bf16.msra.mxu0 %v5314
        %5387 = vmatpush.bf16.msra.mxu0 %v5312
        %5388 = vmatpush.bf16.msra.mxu0 %v5310
        %5389 = vmatpush.bf16.msra.mxu0 %v5308
        %5390 = vmatpush.bf16.msra.mxu0 %v5306
        %5391 = vmatpush.bf16.msra.mxu0 %v5304
        %5392 = vmatpush.bf16.msra.mxu0 %v5302
        %5393 = vmatpush.bf16.msra.mxu0 %v5300
        %5394 = vmatmul.bf16.gmra.mxu0 %v4886
        %v5395 = vpop.f32.mrf.mxu0
        %v5396 = vpop.f32.mrf.mxu0
        %5397 = vmatmul.bf16.gmra.mxu0 %v4887
        %v5398 = vpop.f32.mrf.mxu0
        %v5399 = vadd.f32 0.0, %v5398
        %v5400 = vpop.f32.mrf.mxu0
        %v5401 = vadd.f32 0.0, %v5400
        %5402 = vmatmul.bf16.gmra.mxu0 %v4888
        %v5403 = vpop.f32.mrf.mxu0
        %v5404 = vadd.f32 0.0, %v5403
        %v5405 = vpop.f32.mrf.mxu0
        %v5406 = vadd.f32 0.0, %v5405
        %5407 = vmatmul.bf16.gmra.mxu0 %v4889
        %v5408 = vpop.f32.mrf.mxu0
        %v5409 = vadd.f32 0.0, %v5408
        %v5410 = vpop.f32.mrf.mxu0
        %v5411 = vadd.f32 0.0, %v5410
        %5412 = vmatmul.bf16.gmra.mxu0 %v4890
        %v5413 = vpop.f32.mrf.mxu0
        %v5414 = vadd.f32 0.0, %v5413
        %v5415 = vpop.f32.mrf.mxu0
        %v5416 = vadd.f32 0.0, %v5415
        %5417 = vmatmul.bf16.gmra.mxu0 %v4891
        %v5418 = vpop.f32.mrf.mxu0
        %v5419 = vadd.f32 0.0, %v5418
        %v5420 = vpop.f32.mrf.mxu0
        %v5421 = vadd.f32 0.0, %v5420
        %5422 = vmatmul.bf16.gmra.mxu0 %v4892
        %v5423 = vpop.f32.mrf.mxu0
        %v5424 = vadd.f32 0.0, %v5423
        %v5425 = vpop.f32.mrf.mxu0
        %v5426 = vadd.f32 0.0, %v5425
        %5427 = vmatmul.bf16.gmra.mxu0 %v4893
        %v5428 = vpop.f32.mrf.mxu0
        %v5429 = vadd.f32 0.0, %v5428
        %v5430 = vpop.f32.mrf.mxu0
        %v5431 = vadd.f32 0.0, %v5430
        %5432 = vmatmul.bf16.gmra.mxu0 %v4894
        %v5433 = vpop.f32.mrf.mxu0
        %v5434 = vadd.f32 0.0, %v5433
        %v5435 = vpop.f32.mrf.mxu0
        %v5436 = vadd.f32 0.0, %v5435
        %5437 = vmatmul.bf16.gmra.mxu0 %v4895
        %v5438 = vpop.f32.mrf.mxu0
        %v5439 = vpop.f32.mrf.mxu0
        %5440 = vdwg.mxu0
        %v5441 = vadd.f32 %v5137, %v5344
        %v5442 = vadd.f32 %v5192, %v5399
        %v5443 = vadd.f32 %v5139, %v5346
        %v5444 = vadd.f32 %v5194, %v5401
        %v5445 = vadd.f32 %v5142, %v5349
        %v5446 = vadd.f32 %v5197, %v5404
        %v5447 = vadd.f32 %v5144, %v5351
        %v5448 = vadd.f32 %v5199, %v5406
        %v5449 = vadd.f32 %v5147, %v5354
        %v5450 = vadd.f32 %v5202, %v5409
        %v5451 = vadd.f32 %v5149, %v5356
        %v5452 = vadd.f32 %v5204, %v5411
        %v5453 = vadd.f32 %v5152, %v5359
        %v5454 = vadd.f32 %v5207, %v5414
        %v5455 = vadd.f32 %v5154, %v5361
        %v5456 = vadd.f32 %v5209, %v5416
        %v5457 = vadd.f32 %v5157, %v5364
        %v5458 = vadd.f32 %v5212, %v5419
        %v5459 = vadd.f32 %v5159, %v5366
        %v5460 = vadd.f32 %v5214, %v5421
        %v5461 = vadd.f32 %v5162, %v5369
        %v5462 = vadd.f32 %v5217, %v5424
        %v5463 = vadd.f32 %v5164, %v5371
        %v5464 = vadd.f32 %v5219, %v5426
        %v5465 = vadd.f32 %v5167, %v5374
        %v5466 = vadd.f32 %v5222, %v5429
        %v5467 = vadd.f32 %v5169, %v5376
        %v5468 = vadd.f32 %v5224, %v5431
        %v5469 = vadd.f32 %v5172, %v5379
        %v5470 = vadd.f32 %v5227, %v5434
        %v5471 = vadd.f32 %v5174, %v5381
        %v5472 = vadd.f32 %v5229, %v5436
        %s5473 = scalar_lea.vmem [#allocation2], 1408
        %v5474 = vld [vmem:[%s5473] sm:$0xff]
        %v5475 = vld [vmem:[%s5473 + $0x8] sm:$0xff]
        %v5476 = vld [vmem:[%s5473 + $0x10] sm:$0xff]
        %v5477 = vld [vmem:[%s5473 + $0x18] sm:$0xff]
        %v5478 = vld [vmem:[%s5473 + $0x20] sm:$0xff]
        %v5479 = vld [vmem:[%s5473 + $0x28] sm:$0xff]
        %v5480 = vld [vmem:[%s5473 + $0x30] sm:$0xff]
        %v5481 = vld [vmem:[%s5473 + $0x38] sm:$0xff]
        %v5482 = vld [vmem:[%s5473 + $0x40] sm:$0xff]
        %v5483 = vld [vmem:[%s5473 + $0x48] sm:$0xff]
        %v5484 = vld [vmem:[%s5473 + $0x50] sm:$0xff]
        %v5485 = vld [vmem:[%s5473 + $0x58] sm:$0xff]
        %v5486 = vld [vmem:[%s5473 + $0x60] sm:$0xff]
        %v5487 = vld [vmem:[%s5473 + $0x68] sm:$0xff]
        %v5488 = vld [vmem:[%s5473 + $0x70] sm:$0xff]
        %v5489 = vld [vmem:[%s5473 + $0x78] sm:$0xff]
        %v5506 = vunpack.c.l.b16 %v5474
        %v5507 = vunpack.c.h.b16 %v5474
        %v5508 = vunpack.c.l.b16 %v5475
        %v5509 = vunpack.c.h.b16 %v5475
        %v5510 = vunpack.c.l.b16 %v5476
        %v5511 = vunpack.c.h.b16 %v5476
        %v5512 = vunpack.c.l.b16 %v5477
        %v5513 = vunpack.c.h.b16 %v5477
        %v5514 = vunpack.c.l.b16 %v5478
        %v5515 = vunpack.c.h.b16 %v5478
        %v5516 = vunpack.c.l.b16 %v5479
        %v5517 = vunpack.c.h.b16 %v5479
        %v5518 = vunpack.c.l.b16 %v5480
        %v5519 = vunpack.c.h.b16 %v5480
        %v5520 = vunpack.c.l.b16 %v5481
        %v5521 = vunpack.c.h.b16 %v5481
        %v5522 = vunpack.c.l.b16 %v5482
        %v5523 = vunpack.c.h.b16 %v5482
        %v5524 = vunpack.c.l.b16 %v5483
        %v5525 = vunpack.c.h.b16 %v5483
        %v5526 = vunpack.c.l.b16 %v5484
        %v5527 = vunpack.c.h.b16 %v5484
        %v5528 = vunpack.c.l.b16 %v5485
        %v5529 = vunpack.c.h.b16 %v5485
        %v5530 = vunpack.c.l.b16 %v5486
        %v5531 = vunpack.c.h.b16 %v5486
        %v5532 = vunpack.c.l.b16 %v5487
        %v5533 = vunpack.c.h.b16 %v5487
        %v5534 = vunpack.c.l.b16 %v5488
        %v5535 = vunpack.c.h.b16 %v5488
        %v5536 = vunpack.c.l.b16 %v5489
        %v5537 = vunpack.c.h.b16 %v5489
        %v5538 = vpack.c.b16 %v5508, %v5506
        %v5539 = vpack.c.b16 %v5509, %v5507
        %v5540 = vpack.c.b16 %v5512, %v5510
        %v5541 = vpack.c.b16 %v5513, %v5511
        %v5542 = vpack.c.b16 %v5516, %v5514
        %v5543 = vpack.c.b16 %v5517, %v5515
        %v5544 = vpack.c.b16 %v5520, %v5518
        %v5545 = vpack.c.b16 %v5521, %v5519
        %v5546 = vpack.c.b16 %v5524, %v5522
        %v5547 = vpack.c.b16 %v5525, %v5523
        %v5548 = vpack.c.b16 %v5528, %v5526
        %v5549 = vpack.c.b16 %v5529, %v5527
        %v5550 = vpack.c.b16 %v5532, %v5530
        %v5551 = vpack.c.b16 %v5533, %v5531
        %v5552 = vpack.c.b16 %v5536, %v5534
        %v5553 = vpack.c.b16 %v5537, %v5535
        %5570 = vmatpush.bf16.msra.mxu0 %v5552
        %5571 = vmatpush.bf16.msra.mxu0 %v5550
        %5572 = vmatpush.bf16.msra.mxu0 %v5548
        %5573 = vmatpush.bf16.msra.mxu0 %v5546
        %5574 = vmatpush.bf16.msra.mxu0 %v5544
        %5575 = vmatpush.bf16.msra.mxu0 %v5542
        %5576 = vmatpush.bf16.msra.mxu0 %v5540
        %5577 = vmatpush.bf16.msra.mxu0 %v5538
        %5578 = vmatmul.bf16.gmra.mxu0 %v4897
        %v5579 = vpop.f32.mrf.mxu0
        %v5580 = vpop.f32.mrf.mxu0
        %5581 = vmatmul.bf16.gmra.mxu0 %v4898
        %v5582 = vpop.f32.mrf.mxu0
        %v5583 = vadd.f32 0.0, %v5582
        %v5584 = vpop.f32.mrf.mxu0
        %v5585 = vadd.f32 0.0, %v5584
        %5586 = vmatmul.bf16.gmra.mxu0 %v4899
        %v5587 = vpop.f32.mrf.mxu0
        %v5588 = vadd.f32 0.0, %v5587
        %v5589 = vpop.f32.mrf.mxu0
        %v5590 = vadd.f32 0.0, %v5589
        %5591 = vmatmul.bf16.gmra.mxu0 %v4900
        %v5592 = vpop.f32.mrf.mxu0
        %v5593 = vadd.f32 0.0, %v5592
        %v5594 = vpop.f32.mrf.mxu0
        %v5595 = vadd.f32 0.0, %v5594
        %5596 = vmatmul.bf16.gmra.mxu0 %v4901
        %v5597 = vpop.f32.mrf.mxu0
        %v5598 = vadd.f32 0.0, %v5597
        %v5599 = vpop.f32.mrf.mxu0
        %v5600 = vadd.f32 0.0, %v5599
        %5601 = vmatmul.bf16.gmra.mxu0 %v4902
        %v5602 = vpop.f32.mrf.mxu0
        %v5603 = vadd.f32 0.0, %v5602
        %v5604 = vpop.f32.mrf.mxu0
        %v5605 = vadd.f32 0.0, %v5604
        %5606 = vmatmul.bf16.gmra.mxu0 %v4903
        %v5607 = vpop.f32.mrf.mxu0
        %v5608 = vadd.f32 0.0, %v5607
        %v5609 = vpop.f32.mrf.mxu0
        %v5610 = vadd.f32 0.0, %v5609
        %5611 = vmatmul.bf16.gmra.mxu0 %v4904
        %v5612 = vpop.f32.mrf.mxu0
        %v5613 = vadd.f32 0.0, %v5612
        %v5614 = vpop.f32.mrf.mxu0
        %v5615 = vadd.f32 0.0, %v5614
        %5616 = vmatmul.bf16.gmra.mxu0 %v4905
        %v5617 = vpop.f32.mrf.mxu0
        %v5618 = vadd.f32 0.0, %v5617
        %v5619 = vpop.f32.mrf.mxu0
        %v5620 = vadd.f32 0.0, %v5619
        %5621 = vmatmul.bf16.gmra.mxu0 %v4896
        %v5622 = vpop.f32.mrf.mxu0
        %v5623 = vpop.f32.mrf.mxu0
        %5624 = vdwg.mxu0
        %5625 = vmatpush.bf16.msra.mxu0 %v5553
        %5626 = vmatpush.bf16.msra.mxu0 %v5551
        %5627 = vmatpush.bf16.msra.mxu0 %v5549
        %5628 = vmatpush.bf16.msra.mxu0 %v5547
        %5629 = vmatpush.bf16.msra.mxu0 %v5545
        %5630 = vmatpush.bf16.msra.mxu0 %v5543
        %5631 = vmatpush.bf16.msra.mxu0 %v5541
        %5632 = vmatpush.bf16.msra.mxu0 %v5539
        %5633 = vmatmul.bf16.gmra.mxu0 %v4897
        %v5634 = vpop.f32.mrf.mxu0
        %v5635 = vpop.f32.mrf.mxu0
        %5636 = vmatmul.bf16.gmra.mxu0 %v4898
        %v5637 = vpop.f32.mrf.mxu0
        %v5638 = vadd.f32 0.0, %v5637
        %v5639 = vpop.f32.mrf.mxu0
        %v5640 = vadd.f32 0.0, %v5639
        %5641 = vmatmul.bf16.gmra.mxu0 %v4899
        %v5642 = vpop.f32.mrf.mxu0
        %v5643 = vadd.f32 0.0, %v5642
        %v5644 = vpop.f32.mrf.mxu0
        %v5645 = vadd.f32 0.0, %v5644
        %5646 = vmatmul.bf16.gmra.mxu0 %v4900
        %v5647 = vpop.f32.mrf.mxu0
        %v5648 = vadd.f32 0.0, %v5647
        %v5649 = vpop.f32.mrf.mxu0
        %v5650 = vadd.f32 0.0, %v5649
        %5651 = vmatmul.bf16.gmra.mxu0 %v4901
        %v5652 = vpop.f32.mrf.mxu0
        %v5653 = vadd.f32 0.0, %v5652
        %v5654 = vpop.f32.mrf.mxu0
        %v5655 = vadd.f32 0.0, %v5654
        %5656 = vmatmul.bf16.gmra.mxu0 %v4902
        %v5657 = vpop.f32.mrf.mxu0
        %v5658 = vadd.f32 0.0, %v5657
        %v5659 = vpop.f32.mrf.mxu0
        %v5660 = vadd.f32 0.0, %v5659
        %5661 = vmatmul.bf16.gmra.mxu0 %v4903
        %v5662 = vpop.f32.mrf.mxu0
        %v5663 = vadd.f32 0.0, %v5662
        %v5664 = vpop.f32.mrf.mxu0
        %v5665 = vadd.f32 0.0, %v5664
        %5666 = vmatmul.bf16.gmra.mxu0 %v4904
        %v5667 = vpop.f32.mrf.mxu0
        %v5668 = vadd.f32 0.0, %v5667
        %v5669 = vpop.f32.mrf.mxu0
        %v5670 = vadd.f32 0.0, %v5669
        %5671 = vmatmul.bf16.gmra.mxu0 %v4905
        %v5672 = vpop.f32.mrf.mxu0
        %v5673 = vadd.f32 0.0, %v5672
        %v5674 = vpop.f32.mrf.mxu0
        %v5675 = vadd.f32 0.0, %v5674
        %5676 = vmatmul.bf16.gmra.mxu0 %v4896
        %v5677 = vpop.f32.mrf.mxu0
        %v5678 = vpop.f32.mrf.mxu0
        %5679 = vdwg.mxu0
        %v5680 = vadd.f32 %v5441, %v5583
        %v5681 = vadd.f32 %v5442, %v5638
        %v5682 = vadd.f32 %v5443, %v5585
        %v5683 = vadd.f32 %v5444, %v5640
        %v5684 = vadd.f32 %v5445, %v5588
        %v5685 = vadd.f32 %v5446, %v5643
        %v5686 = vadd.f32 %v5447, %v5590
        %v5687 = vadd.f32 %v5448, %v5645
        %v5688 = vadd.f32 %v5449, %v5593
        %v5689 = vadd.f32 %v5450, %v5648
        %v5690 = vadd.f32 %v5451, %v5595
        %v5691 = vadd.f32 %v5452, %v5650
        %v5692 = vadd.f32 %v5453, %v5598
        %v5693 = vadd.f32 %v5454, %v5653
        %v5694 = vadd.f32 %v5455, %v5600
        %v5695 = vadd.f32 %v5456, %v5655
        %v5696 = vadd.f32 %v5457, %v5603
        %v5697 = vadd.f32 %v5458, %v5658
        %v5698 = vadd.f32 %v5459, %v5605
        %v5699 = vadd.f32 %v5460, %v5660
        %v5700 = vadd.f32 %v5461, %v5608
        %v5701 = vadd.f32 %v5462, %v5663
        %v5702 = vadd.f32 %v5463, %v5610
        %v5703 = vadd.f32 %v5464, %v5665
        %v5704 = vadd.f32 %v5465, %v5613
        %v5705 = vadd.f32 %v5466, %v5668
        %v5706 = vadd.f32 %v5467, %v5615
        %v5707 = vadd.f32 %v5468, %v5670
        %v5708 = vadd.f32 %v5469, %v5618
        %v5709 = vadd.f32 %v5470, %v5673
        %v5710 = vadd.f32 %v5471, %v5620
        %v5711 = vadd.f32 %v5472, %v5675
        %v5712 = vtanh.pop %v5680
        %v5713 = vtanh.pop %v5682
        %v5714 = vtanh.pop %v5684
        %v5715 = vtanh.pop %v5686
        %v5716 = vtanh.pop %v5688
        %v5717 = vtanh.pop %v5690
        %v5718 = vtanh.pop %v5692
        %v5719 = vtanh.pop %v5694
        %v5720 = vtanh.pop %v5696
        %v5721 = vtanh.pop %v5698
        %v5722 = vtanh.pop %v5700
        %v5723 = vtanh.pop %v5702
        %v5724 = vtanh.pop %v5704
        %v5725 = vtanh.pop %v5706
        %v5726 = vtanh.pop %v5708
        %v5727 = vtanh.pop %v5710
        %v5728 = vsub.f32 0.0, %v5681
        %v5729 = vsub.f32 0.0, %v5683
        %v5730 = vsub.f32 0.0, %v5685
        %v5731 = vsub.f32 0.0, %v5687
        %v5732 = vsub.f32 0.0, %v5689
        %v5733 = vsub.f32 0.0, %v5691
        %v5734 = vsub.f32 0.0, %v5693
        %v5735 = vsub.f32 0.0, %v5695
        %v5736 = vsub.f32 0.0, %v5697
        %v5737 = vsub.f32 0.0, %v5699
        %v5738 = vsub.f32 0.0, %v5701
        %v5739 = vsub.f32 0.0, %v5703
        %v5740 = vsub.f32 0.0, %v5705
        %v5741 = vsub.f32 0.0, %v5707
        %v5742 = vsub.f32 0.0, %v5709
        %v5743 = vsub.f32 0.0, %v5711
        %v5744 = vmul.f32 %v5728, 1.442695
        %v5745 = vpow.pop %v5744
        %v5746 = vmul.f32 %v5729, 1.442695
        %v5747 = vpow.pop %v5746
        %v5748 = vmul.f32 %v5730, 1.442695
        %v5749 = vpow.pop %v5748
        %v5750 = vmul.f32 %v5731, 1.442695
        %v5751 = vpow.pop %v5750
        %v5752 = vmul.f32 %v5732, 1.442695
        %v5753 = vpow.pop %v5752
        %v5754 = vmul.f32 %v5733, 1.442695
        %v5755 = vpow.pop %v5754
        %v5756 = vmul.f32 %v5734, 1.442695
        %v5757 = vpow.pop %v5756
        %v5758 = vmul.f32 %v5735, 1.442695
        %v5759 = vpow.pop %v5758
        %v5760 = vmul.f32 %v5736, 1.442695
        %v5761 = vpow.pop %v5760
        %v5762 = vmul.f32 %v5737, 1.442695
        %v5763 = vpow.pop %v5762
        %v5764 = vmul.f32 %v5738, 1.442695
        %v5765 = vpow.pop %v5764
        %v5766 = vmul.f32 %v5739, 1.442695
        %v5767 = vpow.pop %v5766
        %v5768 = vmul.f32 %v5740, 1.442695
        %v5769 = vpow.pop %v5768
        %v5770 = vmul.f32 %v5741, 1.442695
        %v5771 = vpow.pop %v5770
        %v5772 = vmul.f32 %v5742, 1.442695
        %v5773 = vpow.pop %v5772
        %v5774 = vmul.f32 %v5743, 1.442695
        %v5775 = vpow.pop %v5774
        %v5776 = vadd.f32 %v5745, 1.0
        %v5777 = vadd.f32 %v5747, 1.0
        %v5778 = vadd.f32 %v5749, 1.0
        %v5779 = vadd.f32 %v5751, 1.0
        %v5780 = vadd.f32 %v5753, 1.0
        %v5781 = vadd.f32 %v5755, 1.0
        %v5782 = vadd.f32 %v5757, 1.0
        %v5783 = vadd.f32 %v5759, 1.0
        %v5784 = vadd.f32 %v5761, 1.0
        %v5785 = vadd.f32 %v5763, 1.0
        %v5786 = vadd.f32 %v5765, 1.0
        %v5787 = vadd.f32 %v5767, 1.0
        %v5788 = vadd.f32 %v5769, 1.0
        %v5789 = vadd.f32 %v5771, 1.0
        %v5790 = vadd.f32 %v5773, 1.0
        %v5791 = vadd.f32 %v5775, 1.0
        %v5792 = vrcp.pop %v5776
        %v5793 = vrcp.pop %v5777
        %v5794 = vrcp.pop %v5778
        %v5795 = vrcp.pop %v5779
        %v5796 = vrcp.pop %v5780
        %v5797 = vrcp.pop %v5781
        %v5798 = vrcp.pop %v5782
        %v5799 = vrcp.pop %v5783
        %v5800 = vrcp.pop %v5784
        %v5801 = vrcp.pop %v5785
        %v5802 = vrcp.pop %v5786
        %v5803 = vrcp.pop %v5787
        %v5804 = vrcp.pop %v5788
        %v5805 = vrcp.pop %v5789
        %v5806 = vrcp.pop %v5790
        %v5807 = vrcp.pop %v5791
        %v5808 = vmul.f32 %v5712, %v5792
        %v5809 = vmul.f32 %v5713, %v5793
        %v5810 = vmul.f32 %v5714, %v5794
        %v5811 = vmul.f32 %v5715, %v5795
        %v5812 = vmul.f32 %v5716, %v5796
        %v5813 = vmul.f32 %v5717, %v5797
        %v5814 = vmul.f32 %v5718, %v5798
        %v5815 = vmul.f32 %v5719, %v5799
        %v5816 = vmul.f32 %v5720, %v5800
        %v5817 = vmul.f32 %v5721, %v5801
        %v5818 = vmul.f32 %v5722, %v5802
        %v5819 = vmul.f32 %v5723, %v5803
        %v5820 = vmul.f32 %v5724, %v5804
        %v5821 = vmul.f32 %v5725, %v5805
        %v5822 = vmul.f32 %v5726, %v5806
        %v5823 = vmul.f32 %v5727, %v5807
        %v5824 = vmul.f32 %v5808, %v528
        %v5825 = vmul.f32 %v5809, %v529
        %v5826 = vmul.f32 %v5810, %v530
        %v5827 = vmul.f32 %v5811, %v531
        %v5828 = vmul.f32 %v5812, %v532
        %v5829 = vmul.f32 %v5813, %v533
        %v5830 = vmul.f32 %v5814, %v534
        %v5831 = vmul.f32 %v5815, %v535
        %v5832 = vmul.f32 %v5816, %v536
        %v5833 = vmul.f32 %v5817, %v537
        %v5834 = vmul.f32 %v5818, %v538
        %v5835 = vmul.f32 %v5819, %v539
        %v5836 = vmul.f32 %v5820, %v540
        %v5837 = vmul.f32 %v5821, %v541
        %v5838 = vmul.f32 %v5822, %v542
        %v5839 = vmul.f32 %v5823, %v543
        %v5840 = vpack.c.bf16 %v5824, %v5824
        %v5841 = vpack.c.bf16 %v5825, %v5825
        %v5842 = vpack.c.bf16 %v5826, %v5826
        %v5843 = vpack.c.bf16 %v5827, %v5827
        %v5844 = vpack.c.bf16 %v5828, %v5828
        %v5845 = vpack.c.bf16 %v5829, %v5829
        %v5846 = vpack.c.bf16 %v5830, %v5830
        %v5847 = vpack.c.bf16 %v5831, %v5831
        %v5848 = vpack.c.bf16 %v5832, %v5832
        %v5849 = vpack.c.bf16 %v5833, %v5833
        %v5850 = vpack.c.bf16 %v5834, %v5834
        %v5851 = vpack.c.bf16 %v5835, %v5835
        %v5852 = vpack.c.bf16 %v5836, %v5836
        %v5853 = vpack.c.bf16 %v5837, %v5837
        %v5854 = vpack.c.bf16 %v5838, %v5838
        %v5855 = vpack.c.bf16 %v5839, %v5839
        %v5856 = vld [vmem:[%s6] sm:$0xf]
        %v5857 = vld [vmem:[%s6 + $0x4] sm:$0xf]
        %v5858 = vld [vmem:[%s6 + $0x8] sm:$0xf]
        %v5859 = vld [vmem:[%s6 + $0xc] sm:$0xf]
        %v5860 = vld [vmem:[%s6 + $0x10] sm:$0xf]
        %v5861 = vld [vmem:[%s6 + $0x14] sm:$0xf]
        %v5862 = vld [vmem:[%s6 + $0x18] sm:$0xf]
        %v5863 = vld [vmem:[%s6 + $0x1c] sm:$0xf]
        %v5864 = vld [vmem:[%s6 + $0x20] sm:$0xf]
        %v5865 = vld [vmem:[%s6 + $0x24] sm:$0xf]
        %v5866 = vld [vmem:[%s6 + $0x28] sm:$0xf]
        %v5867 = vld [vmem:[%s6 + $0x2c] sm:$0xf]
        %v5868 = vld [vmem:[%s6 + $0x30] sm:$0xf]
        %v5869 = vld [vmem:[%s6 + $0x34] sm:$0xf]
        %v5870 = vld [vmem:[%s6 + $0x38] sm:$0xf]
        %v5871 = vld [vmem:[%s6 + $0x3c] sm:$0xf]
        %v5888 = vunpack.c.l.b16 %v5840
        %v5889 = vunpack.c.l.b16 %v5841
        %v5890 = vunpack.c.l.b16 %v5842
        %v5891 = vunpack.c.l.b16 %v5843
        %v5892 = vunpack.c.l.b16 %v5844
        %v5893 = vunpack.c.l.b16 %v5845
        %v5894 = vunpack.c.l.b16 %v5846
        %v5895 = vunpack.c.l.b16 %v5847
        %v5896 = vunpack.c.l.b16 %v5848
        %v5897 = vunpack.c.l.b16 %v5849
        %v5898 = vunpack.c.l.b16 %v5850
        %v5899 = vunpack.c.l.b16 %v5851
        %v5900 = vunpack.c.l.b16 %v5852
        %v5901 = vunpack.c.l.b16 %v5853
        %v5902 = vunpack.c.l.b16 %v5854
        %v5903 = vunpack.c.l.b16 %v5855
        %v5904 = vpack.c.b16 %v5889, %v5888
        %v5905 = vpack.c.b16 %v5891, %v5890
        %v5906 = vpack.c.b16 %v5893, %v5892
        %v5907 = vpack.c.b16 %v5895, %v5894
        %v5908 = vpack.c.b16 %v5897, %v5896
        %v5909 = vpack.c.b16 %v5899, %v5898
        %v5910 = vpack.c.b16 %v5901, %v5900
        %v5911 = vpack.c.b16 %v5903, %v5902
        %v5936 = vunpack.c.l.b16 %v5856
        %v5937 = vunpack.c.l.b16 %v5857
        %v5938 = vunpack.c.l.b16 %v5858
        %v5939 = vunpack.c.l.b16 %v5859
        %v5940 = vunpack.c.l.b16 %v5860
        %v5941 = vunpack.c.l.b16 %v5861
        %v5942 = vunpack.c.l.b16 %v5862
        %v5943 = vunpack.c.l.b16 %v5863
        %v5944 = vunpack.c.l.b16 %v5864
        %v5945 = vunpack.c.l.b16 %v5865
        %v5946 = vunpack.c.l.b16 %v5866
        %v5947 = vunpack.c.l.b16 %v5867
        %v5948 = vunpack.c.l.b16 %v5868
        %v5949 = vunpack.c.l.b16 %v5869
        %v5950 = vunpack.c.l.b16 %v5870
        %v5951 = vunpack.c.l.b16 %v5871
        %v5952 = vpack.c.b16 %v5937, %v5936
        %v5953 = vpack.c.b16 %v5939, %v5938
        %v5954 = vpack.c.b16 %v5941, %v5940
        %v5955 = vpack.c.b16 %v5943, %v5942
        %v5956 = vpack.c.b16 %v5945, %v5944
        %v5957 = vpack.c.b16 %v5947, %v5946
        %v5958 = vpack.c.b16 %v5949, %v5948
        %v5959 = vpack.c.b16 %v5951, %v5950
        %5968 = vmatpush.bf16.msra.mxu0 %v5959
        %5969 = vmatpush.bf16.msra.mxu0 %v5958
        %5970 = vmatpush.bf16.msra.mxu0 %v5957
        %5971 = vmatpush.bf16.msra.mxu0 %v5956
        %5972 = vmatpush.bf16.msra.mxu0 %v5955
        %5973 = vmatpush.bf16.msra.mxu0 %v5954
        %5974 = vmatpush.bf16.msra.mxu0 %v5953
        %5975 = vmatpush.bf16.msra.mxu0 %v5952
        %5976 = vmatmul.bf16.gmra.mxu0 %v5904
        %v5977 = vpop.f32.mrf.mxu0
        %v5978 = vadd.f32 0.0, %v5977
        %v5979 = vpop.f32.mrf.mxu0
        %v5980 = vadd.f32 0.0, %v5979
        %5981 = vmatmul.bf16.gmra.mxu0 %v5905
        %v5982 = vpop.f32.mrf.mxu0
        %v5983 = vadd.f32 0.0, %v5982
        %v5984 = vpop.f32.mrf.mxu0
        %v5985 = vadd.f32 0.0, %v5984
        %5986 = vmatmul.bf16.gmra.mxu0 %v5906
        %v5987 = vpop.f32.mrf.mxu0
        %v5988 = vadd.f32 0.0, %v5987
        %v5989 = vpop.f32.mrf.mxu0
        %v5990 = vadd.f32 0.0, %v5989
        %5991 = vmatmul.bf16.gmra.mxu0 %v5907
        %v5992 = vpop.f32.mrf.mxu0
        %v5993 = vadd.f32 0.0, %v5992
        %v5994 = vpop.f32.mrf.mxu0
        %v5995 = vadd.f32 0.0, %v5994
        %5996 = vmatmul.bf16.gmra.mxu0 %v5908
        %v5997 = vpop.f32.mrf.mxu0
        %v5998 = vadd.f32 0.0, %v5997
        %v5999 = vpop.f32.mrf.mxu0
        %v6000 = vadd.f32 0.0, %v5999
        %6001 = vmatmul.bf16.gmra.mxu0 %v5909
        %v6002 = vpop.f32.mrf.mxu0
        %v6003 = vadd.f32 0.0, %v6002
        %v6004 = vpop.f32.mrf.mxu0
        %v6005 = vadd.f32 0.0, %v6004
        %6006 = vmatmul.bf16.gmra.mxu0 %v5910
        %v6007 = vpop.f32.mrf.mxu0
        %v6008 = vadd.f32 0.0, %v6007
        %v6009 = vpop.f32.mrf.mxu0
        %v6010 = vadd.f32 0.0, %v6009
        %6011 = vmatmul.bf16.gmra.mxu0 %v5911
        %v6012 = vpop.f32.mrf.mxu0
        %v6013 = vadd.f32 0.0, %v6012
        %v6014 = vpop.f32.mrf.mxu0
        %v6015 = vadd.f32 0.0, %v6014
        %6016 = vdwg.mxu0
        %v6017 = vadd.f32 %v4868, %v5978
        %v6018 = vadd.f32 %v4869, %v5980
        %v6019 = vadd.f32 %v4870, %v5983
        %v6020 = vadd.f32 %v4871, %v5985
        %v6021 = vadd.f32 %v4872, %v5988
        %v6022 = vadd.f32 %v4873, %v5990
        %v6023 = vadd.f32 %v4874, %v5993
        %v6024 = vadd.f32 %v4875, %v5995
        %v6025 = vadd.f32 %v4876, %v5998
        %v6026 = vadd.f32 %v4877, %v6000
        %v6027 = vadd.f32 %v4878, %v6003
        %v6028 = vadd.f32 %v4879, %v6005
        %v6029 = vadd.f32 %v4880, %v6008
        %v6030 = vadd.f32 %v4881, %v6010
        %v6031 = vadd.f32 %v4882, %v6013
        %v6032 = vadd.f32 %v4883, %v6015
        %v6033 = vld [vmem:[%s7] sm:$0xf]
        %v6034 = vpack.c.bf16 %v6018, %v6017
        %v6035 = vpack.c.bf16 %v6020, %v6019
        %v6036 = vpack.c.bf16 %v6022, %v6021
        %v6037 = vpack.c.bf16 %v6024, %v6023
        %v6038 = vpack.c.bf16 %v6026, %v6025
        %v6039 = vpack.c.bf16 %v6028, %v6027
        %v6040 = vpack.c.bf16 %v6030, %v6029
        %v6041 = vpack.c.bf16 %v6032, %v6031
        %6042 = vmatpush.bf16.xpose.msra.mxu0 %v6041
        %6043 = vmatpush.bf16.xpose.msra.mxu0 %v6040
        %6044 = vmatpush.bf16.xpose.msra.mxu0 %v6039
        %6045 = vmatpush.bf16.xpose.msra.mxu0 %v6038
        %6046 = vmatpush.bf16.xpose.msra.mxu0 %v6037
        %6047 = vmatpush.bf16.xpose.msra.mxu0 %v6036
        %6048 = vmatpush.bf16.xpose.msra.mxu0 %v6035
        %6049 = vmatpush.bf16.xpose.msra.mxu0 %v6034
        %6050 = vmatmul.bf16.gmra.mxu0 %v6033
        %v6051 = vpop.f32.mrf.mxu0
        %v6052 = vadd.f32 0.0, %v6051
        %v6053 = vpop.f32.mrf.mxu0
        %6054 = vdwg.mxu0
        %6055 = vst [vmem:[%s344] sm:$0xff] %v6052
        %s6056 = sand.u32 %s223, 1
        %s6057 = scalar_lea.sflag [#allocation4], %s6056
        %s6058 = sand.u32 %s223, 1
        %s6059 = smul.addr %s6058, 8
        %s6060 = scalar_lea.vmem [#allocation5], %s6059
        // Predicated region
        $region57: #{tpu_custom_call.1} parent=51 // pred_check
          %p6061 = pneg %p233
        $region58: #{tpu_custom_call.1} parent=51 // pred_check_branch
          %6063 = sbr.rel (%p6061) target = $region60
        $region59: #{tpu_custom_call.1} parent=51 // pred_region
          %6065 = vsyncadd %s6057, 0
          %s6066 = smul.addr %s27, 2
          %s6067 = sadd.s32 %s28, %s6066
          %s6068 = smul.addr %s6067, 8
          %s6069 = scalar_lea.hbm %s8, %s6068
          %s6071 = sshll.u32 %s6060, 4
          %s6072 = int_to_ptr.vmem [resolvable:$true] %s6071
          %s6073 = sshll.u32 %s6069, 4
          %s6074 = int_to_ptr.hbm [resolvable:$true] %s6073
          %6076 = dma.vmem_to_hbm [thread:$0]  %s6072, 128, %s6074, %s6057
        $region60: #{tpu_custom_call.1} parent=51 // pred_fallthru
          _
      $region52: #{tpu_custom_call.1} parent=5 // pred_fallthru
        _
      %p6077 = scmp.le.s32.totalorder 2, %s18
      // Predicated region
      $region61: #{tpu_custom_call.1} parent=5 // pred_check
        %p6078 = pneg %p6077
      $region62: #{tpu_custom_call.1} parent=5 // pred_check_branch
        %6080 = sbr.rel (%p6078) target = $region64
      $region63: #{tpu_custom_call.1} parent=5 // pred_region
        %s6081 = ssub.s32 %s18, 2
        // Predicated region
        $region65: #{tpu_custom_call.1} parent=63 // pred_check
          %p6082 = pneg %p239
        $region66: #{tpu_custom_call.1} parent=63 // pred_check_branch
          %6084 = sbr.rel (%p6082) target = $region68
        $region67: #{tpu_custom_call.1} parent=63 // pred_region
          %s6085 = sand.u32 %s224, 1
          %s6086 = scalar_lea.sflag [#allocation4], %s6085
          %s6087 = sand.u32 %s224, 1
          %s6088 = smul.addr %s6087, 8
          %s6089 = scalar_lea.vmem [#allocation5], %s6088
          %6091 = dma.done %s6086, 128
        $region68: #{tpu_custom_call.1} parent=63 // pred_fallthru
          _
      $region64: #{tpu_custom_call.1} parent=5 // pred_fallthru
        _
    $region6: #{tpu_custom_call.1} parent=1 // loop_footer
      %s22 = sadd.s32 1, %s18
    $region7: #{tpu_custom_call.1} parent=1 // loop_footer_branch
      %17 = sbr.rel target = $region3
    $region8: #{tpu_custom_call.1} parent=1 // loop_exit
      _
    %6092 = vsyncpa [#allocation3], 1
    %s6093 = scalar_lea.sflag [#allocation3], 1
    %6094 = vsyncpa %s6093, 1
    %6095 = vsyncpa [#allocation4], 1
    %s6096 = scalar_lea.sflag [#allocation4], 1
    %6097 = vsyncpa %s6096, 1

</llo_original>
